<compile_context>
chip_gen: v7x
topology: tpu7x:2x2x1
jax: 0.10.0
libtpu: 0.0.40
codegen_flags: <defaults>
</compile_context>

<pallas_src>
import functools

import jax
import jax.numpy as jnp
from jax import lax
from jax.experimental import pallas as pl
from jax.experimental.pallas import tpu as pltpu


def _fused_mha_kernel(x_ref, wq_ref, wkv_ref, wproj_ref, bproj_ref, o_ref,
                      k_sc, v_sc, *, num_heads, dp, tq):
    """One (batch, q-tile) grid step: QKV projection (K/V once per batch
    element into scratch), causal flash attention over all heads, and the
    output projection, fused."""
    qi = pl.program_id(1)
    E = x_ref.shape[2]
    hdp = num_heads * dp
    cdt = x_ref.dtype  # compute dtype for MXU operands (bf16 -> fast path)

    # --- K/V projection for the whole sequence, once per batch element. ---
    @pl.when(qi == 0)
    def _():
        x_all = x_ref[0]                                           # (T, E)
        kv = jnp.dot(x_all, wkv_ref[...],
                     preferred_element_type=jnp.float32)           # (T, 2*HDp)
        k_sc[...] = kv[:, :hdp].astype(k_sc.dtype)
        v_sc[...] = kv[:, hdp:].astype(v_sc.dtype)

    # --- Q for this query tile (softmax scale already folded into Wq). ---
    row0 = pl.multiple_of(qi * tq, tq)
    x_q = x_ref[0, pl.ds(row0, tq), :]                             # (tq, E)
    q = jnp.dot(x_q, wq_ref[...],
                preferred_element_type=jnp.float32).astype(cdt)    # (tq, HDp)

    # Local causal mask for the diagonal KV block only (tk == tq); built once
    # per step, outside the head / KV loops.
    rows = lax.broadcasted_iota(jnp.int32, (tq, tq), 0)
    cols = lax.broadcasted_iota(jnp.int32, (tq, tq), 1)
    diag_mask = cols <= rows

    # Output-projection accumulator (torch.cat folded into the projection).
    y = jnp.zeros((tq, E), jnp.float32)

    for h in range(num_heads):                       # static, small trip count
        lo = h * dp
        qh = q[:, lo:lo + dp]                        # (tq, Dp) 128-aligned view

        def kv_step(j, carry, masked, lo=lo, qh=qh):
            m, l, acc = carry
            off = pl.multiple_of(j * tq, tq)
            kt = k_sc[pl.ds(off, tq), lo:lo + dp]    # (tq, Dp)
            vt = v_sc[pl.ds(off, tq), lo:lo + dp]    # (tq, Dp)
            # Contract head dim directly -- no (Dp, tq) transpose via XLU.
            s = lax.dot_general(qh, kt, (((1,), (1,)), ((), ())),
                                preferred_element_type=jnp.float32)  # (tq,tq)
            if masked:
                s = jnp.where(diag_mask, s, -jnp.inf)
            m_new = jnp.maximum(m, jnp.max(s, axis=-1, keepdims=True))
            alpha = jnp.exp(m - m_new)
            p = jnp.exp(s - m_new)
            l_new = alpha * l + jnp.sum(p, axis=-1, keepdims=True)
            acc_new = alpha * acc + jnp.dot(p.astype(cdt), vt,
                                            preferred_element_type=jnp.float32)
            return m_new, l_new, acc_new

        carry0 = (jnp.full((tq, 1), -jnp.inf, jnp.float32),   # running max
                  jnp.zeros((tq, 1), jnp.float32),            # running denom
                  jnp.zeros((tq, dp), jnp.float32))           # f32 accumulator
        # Fully-visible KV blocks strictly below the diagonal: no mask.
        carry = lax.fori_loop(0, qi, lambda j, c: kv_step(j, c, False), carry0)
        # Diagonal KV block: local tril mask.  (Blocks above the diagonal are
        # never visited -> causal FLOPs ~halved, no fully-masked-row NaNs.)
        _, l, acc = kv_step(qi, carry, True)

        out_h = acc * pl.reciprocal(l, approx=True)            # (tq, Dp) f32
        # Fold torch.cat(heads) into the projection: per-head accumulate.
        y = y + jnp.dot(out_h.astype(cdt), wproj_ref[lo:lo + dp, :],
                        preferred_element_type=jnp.float32)

    o_ref[0] = (y + bproj_ref[...]).astype(o_ref.dtype)


def multi_head_attention_decoder(x, wq, wk, wv, w_proj, b_proj, *, q_tile=128):
    """x: (B, T, E); wq/wk/wv: (H, E, D); w_proj: (E, E) in (in, out) layout;
    b_proj: (E,).  Returns (B, T, E).  Pass bf16 x for the fast MXU path."""
    B, T, E = x.shape
    H, E2, D = wq.shape
    assert E2 == E and H * D == E
    scale = float(E) ** -0.5          # module uses C**-0.5 with C = embedding_dim

    dp = ((D + 127) // 128) * 128     # pad head dim to the 128-lane width
    hdp = H * dp
    tq = min(T, q_tile)
    if T % tq != 0:
        tq = T                        # fallback: one q tile (demo-sized seqs)
    nq = T // tq
    dtype = x.dtype

    def pad_heads(w):                 # (H, E, D) -> (E, H*Dp), zero-padded heads
        w = jnp.transpose(w, (1, 0, 2))                       # (E, H, D)
        w = jnp.pad(w, ((0, 0), (0, 0), (0, dp - D)))         # (E, H, Dp)
        return w.reshape(E, hdp)

    # Scale folded into Wq host-side (one-time weight prep, zero kernel cost).
    w_q = (pad_heads(wq) * scale).astype(dtype)                       # (E, HDp)
    w_kv = jnp.concatenate([pad_heads(wk), pad_heads(wv)], -1).astype(dtype)
    w_p = jnp.pad(w_proj.reshape(H, D, E),
                  ((0, 0), (0, dp - D), (0, 0))).reshape(hdp, E).astype(dtype)
    b_p = b_proj.reshape(1, E).astype(jnp.float32)

    kernel = functools.partial(_fused_mha_kernel, num_heads=H, dp=dp, tq=tq)

    out = pl.pallas_call(
        kernel,
        out_shape=jax.ShapeDtypeStruct((B, T, E), dtype),
        grid=(B, nq),
        in_specs=[
            # Full sequence per batch element (re-fetched only when b changes).
            pl.BlockSpec((1, T, E), lambda b, q: (b, 0, 0)),
            pl.BlockSpec((E, hdp), lambda b, q: (0, 0)),       # Wq (scaled), resident
            pl.BlockSpec((E, 2 * hdp), lambda b, q: (0, 0)),   # Wk|Wv, resident
            pl.BlockSpec((hdp, E), lambda b, q: (0, 0)),       # W_proj (padded rows)
            pl.BlockSpec((1, E), lambda b, q: (0, 0)),         # proj bias
        ],
        out_specs=pl.BlockSpec((1, tq, E), lambda b, q: (b, q, 0)),
        scratch_shapes=[
            pltpu.VMEM((T, hdp), dtype),   # K (all heads, padded) for current b
            pltpu.VMEM((T, hdp), dtype),   # V
        ],
        compiler_params=pltpu.CompilerParams(
            dimension_semantics=("parallel", "arbitrary"),
            vmem_limit_bytes=32 * 1024 * 1024,
        ),
    )(x, w_q, w_kv, w_p, b_p)
    return out


def _reference(x, wq, wk, wv, w_proj, b_proj):
    """Pure-JAX reference matching the PyTorch module's forward (eval mode)."""
    B, T, E = x.shape
    scale = float(E) ** -0.5
    q = jnp.einsum("bte,hed->bhtd", x, wq)
    k = jnp.einsum("bte,hed->bhtd", x, wk)
    v = jnp.einsum("bte,hed->bhtd", x, wv)
    wei = jnp.einsum("bhtd,bhsd->bhts", q, k) * scale
    mask = jnp.tril(jnp.ones((T, T), dtype=bool))
    wei = jnp.where(mask, wei, -jnp.inf)
    wei = jax.nn.softmax(wei, axis=-1)
    out = jnp.einsum("bhts,bhsd->bhtd", wei, v)
    cat = jnp.transpose(out, (0, 2, 1, 3)).reshape(B, T, E)
    return cat @ w_proj + b_proj


if __name__ == "__main__":
    # Small, module-consistent shapes: embedding_dim=32, num_heads=4, seq_len=8
    B, T, E, H = 2, 8, 32, 4
    D = E // H

    key = jax.random.PRNGKey(0)
    kx, kq, kk, kv, kw, kb = jax.random.split(key, 6)

    x = jax.random.normal(kx, (B, T, E), dtype=jnp.float32)
    wq = jax.random.normal(kq, (H, E, D), dtype=jnp.float32) * 0.1
    wk = jax.random.normal(kk, (H, E, D), dtype=jnp.float32) * 0.1
    wv = jax.random.normal(kv, (H, E, D), dtype=jnp.float32) * 0.1
    w_proj = jax.random.normal(kw, (E, E), dtype=jnp.float32) * 0.1
    b_proj = jax.random.normal(kb, (E,), dtype=jnp.float32) * 0.1

    ref = _reference(x, wq, wk, wv, w_proj, b_proj)

    # f32 path: matches the PyTorch float32 reference (approx EUP reciprocal
    # in the softmax denominator -> slightly loosened tolerance).
    out = multi_head_attention_decoder(x, wq, wk, wv, w_proj, b_proj)
    out = jax.block_until_ready(out)
    assert out.shape == (B, T, E)
    assert jnp.allclose(out, ref, atol=1e-2, rtol=1e-2), "f32 mismatch vs reference"

    # bf16 path: fast MXU route on v5e/v6e/v7x (f32 accumulation inside).
    out_bf16 = multi_head_attention_decoder(
        x.astype(jnp.bfloat16), wq, wk, wv, w_proj, b_proj)
    out_bf16 = jax.block_until_ready(out_bf16)
    assert jnp.allclose(out_bf16.astype(jnp.float32), ref,
                        atol=5e-2, rtol=5e-2), "bf16 mismatch vs reference"

    print("KERNEL_OK")
</pallas_src>

<mosaic_0001>
module attributes {stable_mosaic.version = 11 : i64} {
  func.func @_fused_mha_kernel(%arg0: i32, %arg1: i32, %arg2: memref<1x8x32xf32, #tpu.memory_space<vmem>>, %arg3: memref<32x512xf32, #tpu.memory_space<vmem>>, %arg4: memref<32x1024xf32, #tpu.memory_space<vmem>>, %arg5: memref<512x32xf32, #tpu.memory_space<vmem>>, %arg6: memref<1x32xf32, #tpu.memory_space<vmem>>, %arg7: memref<1x8x32xf32, #tpu.memory_space<vmem>>, %arg8: memref<8x512xf32, #tpu.memory_space<vmem>>, %arg9: memref<8x512xf32, #tpu.memory_space<vmem>>) attributes {dimension_semantics = [#tpu.dimension_semantics<parallel>, #tpu.dimension_semantics<arbitrary>], iteration_bounds = array<i64: 2, 1>, scalar_prefetch = 0 : i64, scratch_operands = 2 : i64, tpu.core_type = #tpu.core_type<tc>, window_params = [{transform_indices = @transform_0, window_bounds = array<i64: 1, 8, 32>}, {pipeline_mode = #tpu.pipeline_mode<synchronous>, transform_indices = @transform_1, window_bounds = array<i64: 32, 512>}, {pipeline_mode = #tpu.pipeline_mode<synchronous>, transform_indices = @transform_2, window_bounds = array<i64: 32, 1024>}, {pipeline_mode = #tpu.pipeline_mode<synchronous>, transform_indices = @transform_3, window_bounds = array<i64: 512, 32>}, {pipeline_mode = #tpu.pipeline_mode<synchronous>, transform_indices = @transform_4, window_bounds = array<i64: 1, 32>}, {transform_indices = @transform_5, window_bounds = array<i64: 1, 8, 32>}]} {
    %c0_i32 = arith.constant 0 : i32
    %0 = arith.cmpi eq, %arg1, %c0_i32 : i32
    %1 = arith.extui %0 : i1 to i32
    %c0_i32_0 = arith.constant 0 : i32
    %2 = arith.cmpi ne, %1, %c0_i32_0 : i32
    scf.if %2 {
      %c0_70 = arith.constant 0 : index
      %c0_71 = arith.constant 0 : index
      %c0_72 = arith.constant 0 : index
      %172 = vector.load %arg2[%c0_70, %c0_71, %c0_72] : memref<1x8x32xf32, #tpu.memory_space<vmem>>, vector<1x8x32xf32>
      %173 = vector.shape_cast %172 : vector<1x8x32xf32> to vector<8x32xf32>
      %c0_73 = arith.constant 0 : index
      %c0_74 = arith.constant 0 : index
      %174 = vector.load %arg4[%c0_73, %c0_74] : memref<32x1024xf32, #tpu.memory_space<vmem>>, vector<32x1024xf32>
      %cst_75 = arith.constant dense<0.000000e+00> : vector<8x1024xf32>
      %175 = tpu.matmul %173, %174, %cst_75 {dimension_numbers = #tpu.dot_dimension_numbers<[1], [0], [0], [1], [0, 0, 1, 1], [], []>} : vector<8x32xf32>, vector<32x1024xf32>, vector<8x1024xf32> -> vector<8x1024xf32>
      %176 = vector.extract_strided_slice %175 {offsets = [0, 0], sizes = [8, 512], strides = [1, 1]} : vector<8x1024xf32> to vector<8x512xf32>
      %c0_76 = arith.constant 0 : index
      %c0_77 = arith.constant 0 : index
      %177 = vector.load %arg8[%c0_76, %c0_77] : memref<8x512xf32, #tpu.memory_space<vmem>>, vector<8x512xf32>
      tpu.vector_store %arg8[%c0_76, %c0_77], %176 {strides = array<i32>} : memref<8x512xf32, #tpu.memory_space<vmem>>, vector<8x512xf32>,
      %178 = vector.extract_strided_slice %175 {offsets = [0, 512], sizes = [8, 512], strides = [1, 1]} : vector<8x1024xf32> to vector<8x512xf32>
      %c0_78 = arith.constant 0 : index
      %c0_79 = arith.constant 0 : index
      %179 = vector.load %arg9[%c0_78, %c0_79] : memref<8x512xf32, #tpu.memory_space<vmem>>, vector<8x512xf32>
      tpu.vector_store %arg9[%c0_78, %c0_79], %178 {strides = array<i32>} : memref<8x512xf32, #tpu.memory_space<vmem>>, vector<8x512xf32>,
    } else {
    }
    %c8_i32 = arith.constant 8 : i32
    %3 = arith.muli %arg1, %c8_i32 : i32
    %4 = tpu.assume_multiple %3, 8 : i32
    %c0 = arith.constant 0 : index
    %5 = arith.index_cast %4 : i32 to index
    %c0_1 = arith.constant 0 : index
    %6 = vector.load %arg2[%c0, %5, %c0_1] : memref<1x8x32xf32, #tpu.memory_space<vmem>>, vector<1x8x32xf32>
    %7 = vector.shape_cast %6 : vector<1x8x32xf32> to vector<8x32xf32>
    %c0_2 = arith.constant 0 : index
    %c0_3 = arith.constant 0 : index
    %8 = vector.load %arg3[%c0_2, %c0_3] : memref<32x512xf32, #tpu.memory_space<vmem>>, vector<32x512xf32>
    %cst = arith.constant dense<0.000000e+00> : vector<8x512xf32>
    %9 = tpu.matmul %7, %8, %cst {dimension_numbers = #tpu.dot_dimension_numbers<[1], [0], [0], [1], [0, 0, 1, 1], [], []>} : vector<8x32xf32>, vector<32x512xf32>, vector<8x512xf32> -> vector<8x512xf32>
    %10 = tpu.iota {dimensions = array<i32: 0>} : vector<8x8xi32>
    %11 = tpu.iota {dimensions = array<i32: 1>} : vector<8x8xi32>
    %12 = arith.cmpi sle, %11, %10 : vector<8x8xi32>
    %cst_4 = arith.constant 0.000000e+00 : f32
    %13 = vector.broadcast %cst_4 : f32 to vector<8x32xf32>
    %14 = vector.extract_strided_slice %9 {offsets = [0, 0], sizes = [8, 128], strides = [1, 1]} : vector<8x512xf32> to vector<8x128xf32>
    %cst_5 = arith.constant 0xFF800000 : f32
    %15 = vector.broadcast %cst_5 : f32 to vector<8x1xf32>
    %cst_6 = arith.constant 0.000000e+00 : f32
    %16 = vector.broadcast %cst_6 : f32 to vector<8x1xf32>
    %cst_7 = arith.constant 0.000000e+00 : f32
    %17 = vector.broadcast %cst_7 : f32 to vector<8x128xf32>
    %c0_i32_8 = arith.constant 0 : i32
    %18 = arith.subi %arg1, %c0_i32_8 : i32
    %19 = arith.addi %c0_i32_8, %18 : i32
    %c1_i32 = arith.constant 1 : i32
    %20:3 = scf.for %arg10 = %c0_i32_8 to %19 step %c1_i32 iter_args(%arg11 = %15, %arg12 = %16, %arg13 = %17) -> (vector<8x1xf32>, vector<8x1xf32>, vector<8x128xf32>)  : i32 {
      %c8_i32_70 = arith.constant 8 : i32
      %172 = arith.muli %arg10, %c8_i32_70 : i32
      %173 = tpu.assume_multiple %172, 8 : i32
      %174 = arith.index_cast %173 : i32 to index
      %c0_71 = arith.constant 0 : index
      %175 = vector.load %arg8[%174, %c0_71] : memref<8x512xf32, #tpu.memory_space<vmem>>, vector<8x128xf32>
      %176 = arith.index_cast %173 : i32 to index
      %c0_72 = arith.constant 0 : index
      %177 = vector.load %arg9[%176, %c0_72] : memref<8x512xf32, #tpu.memory_space<vmem>>, vector<8x128xf32>
      %cst_73 = arith.constant dense<0.000000e+00> : vector<8x8xf32>
      %178 = tpu.matmul %14, %175, %cst_73 {dimension_numbers = #tpu.dot_dimension_numbers<[1], [1], [0], [0], [0, 0, 1, 0], [], []>} : vector<8x128xf32>, vector<8x128xf32>, vector<8x8xf32> -> vector<8x8xf32>
      %cst_74 = arith.constant dense<0xFF800000> : vector<8xf32>
      %179 = vector.multi_reduction <maximumf>, %178, %cst_74 [1] : vector<8x8xf32> to vector<8xf32>
      %180 = vector.shape_cast %179 : vector<8xf32> to vector<8x1xf32>
      %181 = arith.maximumf %arg11, %180 : vector<8x1xf32>
      %182 = arith.subf %arg11, %181 : vector<8x1xf32>
      %183 = math.exp %182 : vector<8x1xf32>
      %184 = vector.broadcast %181 : vector<8x1xf32> to vector<8x8xf32>
      %185 = arith.subf %178, %184 : vector<8x8xf32>
      %186 = math.exp %185 : vector<8x8xf32>
      %187 = arith.mulf %183, %arg12 : vector<8x1xf32>
      %cst_75 = arith.constant dense<0.000000e+00> : vector<8xf32>
      %188 = vector.multi_reduction <add>, %186, %cst_75 [1] : vector<8x8xf32> to vector<8xf32>
      %189 = vector.shape_cast %188 : vector<8xf32> to vector<8x1xf32>
      %190 = arith.addf %187, %189 : vector<8x1xf32>
      %191 = vector.broadcast %183 : vector<8x1xf32> to vector<8x128xf32>
      %192 = arith.mulf %191, %arg13 : vector<8x128xf32>
      %cst_76 = arith.constant dense<0.000000e+00> : vector<8x128xf32>
      %193 = tpu.matmul %186, %177, %cst_76 {dimension_numbers = #tpu.dot_dimension_numbers<[1], [0], [0], [1], [0, 0, 1, 1], [], []>} : vector<8x8xf32>, vector<8x128xf32>, vector<8x128xf32> -> vector<8x128xf32>
      %194 = arith.addf %192, %193 : vector<8x128xf32>
      scf.yield %181, %190, %194 : vector<8x1xf32>, vector<8x1xf32>, vector<8x128xf32>
    }
    %c8_i32_9 = arith.constant 8 : i32
    %21 = arith.muli %arg1, %c8_i32_9 : i32
    %22 = tpu.assume_multiple %21, 8 : i32
    %23 = arith.index_cast %22 : i32 to index
    %c0_10 = arith.constant 0 : index
    %24 = vector.load %arg8[%23, %c0_10] : memref<8x512xf32, #tpu.memory_space<vmem>>, vector<8x128xf32>
    %25 = arith.index_cast %22 : i32 to index
    %c0_11 = arith.constant 0 : index
    %26 = vector.load %arg9[%25, %c0_11] : memref<8x512xf32, #tpu.memory_space<vmem>>, vector<8x128xf32>
    %cst_12 = arith.constant dense<0.000000e+00> : vector<8x8xf32>
    %27 = tpu.matmul %14, %24, %cst_12 {dimension_numbers = #tpu.dot_dimension_numbers<[1], [1], [0], [0], [0, 0, 1, 0], [], []>} : vector<8x128xf32>, vector<8x128xf32>, vector<8x8xf32> -> vector<8x8xf32>
    %cst_13 = arith.constant 0xFF800000 : f32
    %28 = vector.broadcast %cst_13 : f32 to vector<8x8xf32>
    %29 = arith.select %12, %27, %28 : vector<8x8xi1>, vector<8x8xf32>
    %cst_14 = arith.constant dense<0xFF800000> : vector<8xf32>
    %30 = vector.multi_reduction <maximumf>, %29, %cst_14 [1] : vector<8x8xf32> to vector<8xf32>
    %31 = vector.shape_cast %30 : vector<8xf32> to vector<8x1xf32>
    %32 = arith.maximumf %20#0, %31 : vector<8x1xf32>
    %33 = arith.subf %20#0, %32 : vector<8x1xf32>
    %34 = math.exp %33 : vector<8x1xf32>
    %35 = vector.broadcast %32 : vector<8x1xf32> to vector<8x8xf32>
    %36 = arith.subf %29, %35 : vector<8x8xf32>
    %37 = math.exp %36 : vector<8x8xf32>
    %38 = arith.mulf %34, %20#1 : vector<8x1xf32>
    %cst_15 = arith.constant dense<0.000000e+00> : vector<8xf32>
    %39 = vector.multi_reduction <add>, %37, %cst_15 [1] : vector<8x8xf32> to vector<8xf32>
    %40 = vector.shape_cast %39 : vector<8xf32> to vector<8x1xf32>
    %41 = arith.addf %38, %40 : vector<8x1xf32>
    %42 = vector.broadcast %34 : vector<8x1xf32> to vector<8x128xf32>
    %43 = arith.mulf %42, %20#2 : vector<8x128xf32>
    %cst_16 = arith.constant dense<0.000000e+00> : vector<8x128xf32>
    %44 = tpu.matmul %37, %26, %cst_16 {dimension_numbers = #tpu.dot_dimension_numbers<[1], [0], [0], [1], [0, 0, 1, 1], [], []>} : vector<8x8xf32>, vector<8x128xf32>, vector<8x128xf32> -> vector<8x128xf32>
    %45 = arith.addf %43, %44 : vector<8x128xf32>
    %46 = tpu.reciprocal %41 {approx = true} : vector<8x1xf32> -> vector<8x1xf32>
    %47 = vector.broadcast %46 : vector<8x1xf32> to vector<8x128xf32>
    %48 = arith.mulf %45, %47 : vector<8x128xf32>
    %c0_17 = arith.constant 0 : index
    %c0_18 = arith.constant 0 : index
    %49 = vector.load %arg5[%c0_17, %c0_18] : memref<512x32xf32, #tpu.memory_space<vmem>>, vector<128x32xf32>
    %cst_19 = arith.constant dense<0.000000e+00> : vector<8x32xf32>
    %50 = tpu.matmul %48, %49, %cst_19 {dimension_numbers = #tpu.dot_dimension_numbers<[1], [0], [0], [1], [0, 0, 1, 1], [], []>} : vector<8x128xf32>, vector<128x32xf32>, vector<8x32xf32> -> vector<8x32xf32>
    %51 = arith.addf %13, %50 : vector<8x32xf32>
    %52 = vector.extract_strided_slice %9 {offsets = [0, 128], sizes = [8, 128], strides = [1, 1]} : vector<8x512xf32> to vector<8x128xf32>
    %cst_20 = arith.constant 0xFF800000 : f32
    %53 = vector.broadcast %cst_20 : f32 to vector<8x1xf32>
    %cst_21 = arith.constant 0.000000e+00 : f32
    %54 = vector.broadcast %cst_21 : f32 to vector<8x1xf32>
    %cst_22 = arith.constant 0.000000e+00 : f32
    %55 = vector.broadcast %cst_22 : f32 to vector<8x128xf32>
    %c0_i32_23 = arith.constant 0 : i32
    %56 = arith.subi %arg1, %c0_i32_23 : i32
    %57 = arith.addi %c0_i32_23, %56 : i32
    %c1_i32_24 = arith.constant 1 : i32
    %58:3 = scf.for %arg10 = %c0_i32_23 to %57 step %c1_i32_24 iter_args(%arg11 = %53, %arg12 = %54, %arg13 = %55) -> (vector<8x1xf32>, vector<8x1xf32>, vector<8x128xf32>)  : i32 {
      %c8_i32_70 = arith.constant 8 : i32
      %172 = arith.muli %arg10, %c8_i32_70 : i32
      %173 = tpu.assume_multiple %172, 8 : i32
      %174 = arith.index_cast %173 : i32 to index
      %c128_71 = arith.constant 128 : index
      %175 = vector.load %arg8[%174, %c128_71] : memref<8x512xf32, #tpu.memory_space<vmem>>, vector<8x128xf32>
      %176 = arith.index_cast %173 : i32 to index
      %c128_72 = arith.constant 128 : index
      %177 = vector.load %arg9[%176, %c128_72] : memref<8x512xf32, #tpu.memory_space<vmem>>, vector<8x128xf32>
      %cst_73 = arith.constant dense<0.000000e+00> : vector<8x8xf32>
      %178 = tpu.matmul %52, %175, %cst_73 {dimension_numbers = #tpu.dot_dimension_numbers<[1], [1], [0], [0], [0, 0, 1, 0], [], []>} : vector<8x128xf32>, vector<8x128xf32>, vector<8x8xf32> -> vector<8x8xf32>
      %cst_74 = arith.constant dense<0xFF800000> : vector<8xf32>
      %179 = vector.multi_reduction <maximumf>, %178, %cst_74 [1] : vector<8x8xf32> to vector<8xf32>
      %180 = vector.shape_cast %179 : vector<8xf32> to vector<8x1xf32>
      %181 = arith.maximumf %arg11, %180 : vector<8x1xf32>
      %182 = arith.subf %arg11, %181 : vector<8x1xf32>
      %183 = math.exp %182 : vector<8x1xf32>
      %184 = vector.broadcast %181 : vector<8x1xf32> to vector<8x8xf32>
      %185 = arith.subf %178, %184 : vector<8x8xf32>
      %186 = math.exp %185 : vector<8x8xf32>
      %187 = arith.mulf %183, %arg12 : vector<8x1xf32>
      %cst_75 = arith.constant dense<0.000000e+00> : vector<8xf32>
      %188 = vector.multi_reduction <add>, %186, %cst_75 [1] : vector<8x8xf32> to vector<8xf32>
      %189 = vector.shape_cast %188 : vector<8xf32> to vector<8x1xf32>
      %190 = arith.addf %187, %189 : vector<8x1xf32>
      %191 = vector.broadcast %183 : vector<8x1xf32> to vector<8x128xf32>
      %192 = arith.mulf %191, %arg13 : vector<8x128xf32>
      %cst_76 = arith.constant dense<0.000000e+00> : vector<8x128xf32>
      %193 = tpu.matmul %186, %177, %cst_76 {dimension_numbers = #tpu.dot_dimension_numbers<[1], [0], [0], [1], [0, 0, 1, 1], [], []>} : vector<8x8xf32>, vector<8x128xf32>, vector<8x128xf32> -> vector<8x128xf32>
      %194 = arith.addf %192, %193 : vector<8x128xf32>
      scf.yield %181, %190, %194 : vector<8x1xf32>, vector<8x1xf32>, vector<8x128xf32>
    }
    %c8_i32_25 = arith.constant 8 : i32
    %59 = arith.muli %arg1, %c8_i32_25 : i32
    %60 = tpu.assume_multiple %59, 8 : i32
    %61 = arith.index_cast %60 : i32 to index
    %c128 = arith.constant 128 : index
    %62 = vector.load %arg8[%61, %c128] : memref<8x512xf32, #tpu.memory_space<vmem>>, vector<8x128xf32>
    %63 = arith.index_cast %60 : i32 to index
    %c128_26 = arith.constant 128 : index
    %64 = vector.load %arg9[%63, %c128_26] : memref<8x512xf32, #tpu.memory_space<vmem>>, vector<8x128xf32>
    %cst_27 = arith.constant dense<0.000000e+00> : vector<8x8xf32>
    %65 = tpu.matmul %52, %62, %cst_27 {dimension_numbers = #tpu.dot_dimension_numbers<[1], [1], [0], [0], [0, 0, 1, 0], [], []>} : vector<8x128xf32>, vector<8x128xf32>, vector<8x8xf32> -> vector<8x8xf32>
    %cst_28 = arith.constant 0xFF800000 : f32
    %66 = vector.broadcast %cst_28 : f32 to vector<8x8xf32>
    %67 = arith.select %12, %65, %66 : vector<8x8xi1>, vector<8x8xf32>
    %cst_29 = arith.constant dense<0xFF800000> : vector<8xf32>
    %68 = vector.multi_reduction <maximumf>, %67, %cst_29 [1] : vector<8x8xf32> to vector<8xf32>
    %69 = vector.shape_cast %68 : vector<8xf32> to vector<8x1xf32>
    %70 = arith.maximumf %58#0, %69 : vector<8x1xf32>
    %71 = arith.subf %58#0, %70 : vector<8x1xf32>
    %72 = math.exp %71 : vector<8x1xf32>
    %73 = vector.broadcast %70 : vector<8x1xf32> to vector<8x8xf32>
    %74 = arith.subf %67, %73 : vector<8x8xf32>
    %75 = math.exp %74 : vector<8x8xf32>
    %76 = arith.mulf %72, %58#1 : vector<8x1xf32>
    %cst_30 = arith.constant dense<0.000000e+00> : vector<8xf32>
    %77 = vector.multi_reduction <add>, %75, %cst_30 [1] : vector<8x8xf32> to vector<8xf32>
    %78 = vector.shape_cast %77 : vector<8xf32> to vector<8x1xf32>
    %79 = arith.addf %76, %78 : vector<8x1xf32>
    %80 = vector.broadcast %72 : vector<8x1xf32> to vector<8x128xf32>
    %81 = arith.mulf %80, %58#2 : vector<8x128xf32>
    %cst_31 = arith.constant dense<0.000000e+00> : vector<8x128xf32>
    %82 = tpu.matmul %75, %64, %cst_31 {dimension_numbers = #tpu.dot_dimension_numbers<[1], [0], [0], [1], [0, 0, 1, 1], [], []>} : vector<8x8xf32>, vector<8x128xf32>, vector<8x128xf32> -> vector<8x128xf32>
    %83 = arith.addf %81, %82 : vector<8x128xf32>
    %84 = tpu.reciprocal %79 {approx = true} : vector<8x1xf32> -> vector<8x1xf32>
    %85 = vector.broadcast %84 : vector<8x1xf32> to vector<8x128xf32>
    %86 = arith.mulf %83, %85 : vector<8x128xf32>
    %c128_32 = arith.constant 128 : index
    %c0_33 = arith.constant 0 : index
    %87 = vector.load %arg5[%c128_32, %c0_33] : memref<512x32xf32, #tpu.memory_space<vmem>>, vector<128x32xf32>
    %cst_34 = arith.constant dense<0.000000e+00> : vector<8x32xf32>
    %88 = tpu.matmul %86, %87, %cst_34 {dimension_numbers = #tpu.dot_dimension_numbers<[1], [0], [0], [1], [0, 0, 1, 1], [], []>} : vector<8x128xf32>, vector<128x32xf32>, vector<8x32xf32> -> vector<8x32xf32>
    %89 = arith.addf %51, %88 : vector<8x32xf32>
    %90 = vector.extract_strided_slice %9 {offsets = [0, 256], sizes = [8, 128], strides = [1, 1]} : vector<8x512xf32> to vector<8x128xf32>
    %cst_35 = arith.constant 0xFF800000 : f32
    %91 = vector.broadcast %cst_35 : f32 to vector<8x1xf32>
    %cst_36 = arith.constant 0.000000e+00 : f32
    %92 = vector.broadcast %cst_36 : f32 to vector<8x1xf32>
    %cst_37 = arith.constant 0.000000e+00 : f32
    %93 = vector.broadcast %cst_37 : f32 to vector<8x128xf32>
    %c0_i32_38 = arith.constant 0 : i32
    %94 = arith.subi %arg1, %c0_i32_38 : i32
    %95 = arith.addi %c0_i32_38, %94 : i32
    %c1_i32_39 = arith.constant 1 : i32
    %96:3 = scf.for %arg10 = %c0_i32_38 to %95 step %c1_i32_39 iter_args(%arg11 = %91, %arg12 = %92, %arg13 = %93) -> (vector<8x1xf32>, vector<8x1xf32>, vector<8x128xf32>)  : i32 {
      %c8_i32_70 = arith.constant 8 : i32
      %172 = arith.muli %arg10, %c8_i32_70 : i32
      %173 = tpu.assume_multiple %172, 8 : i32
      %174 = arith.index_cast %173 : i32 to index
      %c256_71 = arith.constant 256 : index
      %175 = vector.load %arg8[%174, %c256_71] : memref<8x512xf32, #tpu.memory_space<vmem>>, vector<8x128xf32>
      %176 = arith.index_cast %173 : i32 to index
      %c256_72 = arith.constant 256 : index
      %177 = vector.load %arg9[%176, %c256_72] : memref<8x512xf32, #tpu.memory_space<vmem>>, vector<8x128xf32>
      %cst_73 = arith.constant dense<0.000000e+00> : vector<8x8xf32>
      %178 = tpu.matmul %90, %175, %cst_73 {dimension_numbers = #tpu.dot_dimension_numbers<[1], [1], [0], [0], [0, 0, 1, 0], [], []>} : vector<8x128xf32>, vector<8x128xf32>, vector<8x8xf32> -> vector<8x8xf32>
      %cst_74 = arith.constant dense<0xFF800000> : vector<8xf32>
      %179 = vector.multi_reduction <maximumf>, %178, %cst_74 [1] : vector<8x8xf32> to vector<8xf32>
      %180 = vector.shape_cast %179 : vector<8xf32> to vector<8x1xf32>
      %181 = arith.maximumf %arg11, %180 : vector<8x1xf32>
      %182 = arith.subf %arg11, %181 : vector<8x1xf32>
      %183 = math.exp %182 : vector<8x1xf32>
      %184 = vector.broadcast %181 : vector<8x1xf32> to vector<8x8xf32>
      %185 = arith.subf %178, %184 : vector<8x8xf32>
      %186 = math.exp %185 : vector<8x8xf32>
      %187 = arith.mulf %183, %arg12 : vector<8x1xf32>
      %cst_75 = arith.constant dense<0.000000e+00> : vector<8xf32>
      %188 = vector.multi_reduction <add>, %186, %cst_75 [1] : vector<8x8xf32> to vector<8xf32>
      %189 = vector.shape_cast %188 : vector<8xf32> to vector<8x1xf32>
      %190 = arith.addf %187, %189 : vector<8x1xf32>
      %191 = vector.broadcast %183 : vector<8x1xf32> to vector<8x128xf32>
      %192 = arith.mulf %191, %arg13 : vector<8x128xf32>
      %cst_76 = arith.constant dense<0.000000e+00> : vector<8x128xf32>
      %193 = tpu.matmul %186, %177, %cst_76 {dimension_numbers = #tpu.dot_dimension_numbers<[1], [0], [0], [1], [0, 0, 1, 1], [], []>} : vector<8x8xf32>, vector<8x128xf32>, vector<8x128xf32> -> vector<8x128xf32>
      %194 = arith.addf %192, %193 : vector<8x128xf32>
      scf.yield %181, %190, %194 : vector<8x1xf32>, vector<8x1xf32>, vector<8x128xf32>
    }
    %c8_i32_40 = arith.constant 8 : i32
    %97 = arith.muli %arg1, %c8_i32_40 : i32
    %98 = tpu.assume_multiple %97, 8 : i32
    %99 = arith.index_cast %98 : i32 to index
    %c256 = arith.constant 256 : index
    %100 = vector.load %arg8[%99, %c256] : memref<8x512xf32, #tpu.memory_space<vmem>>, vector<8x128xf32>
    %101 = arith.index_cast %98 : i32 to index
    %c256_41 = arith.constant 256 : index
    %102 = vector.load %arg9[%101, %c256_41] : memref<8x512xf32, #tpu.memory_space<vmem>>, vector<8x128xf32>
    %cst_42 = arith.constant dense<0.000000e+00> : vector<8x8xf32>
    %103 = tpu.matmul %90, %100, %cst_42 {dimension_numbers = #tpu.dot_dimension_numbers<[1], [1], [0], [0], [0, 0, 1, 0], [], []>} : vector<8x128xf32>, vector<8x128xf32>, vector<8x8xf32> -> vector<8x8xf32>
    %cst_43 = arith.constant 0xFF800000 : f32
    %104 = vector.broadcast %cst_43 : f32 to vector<8x8xf32>
    %105 = arith.select %12, %103, %104 : vector<8x8xi1>, vector<8x8xf32>
    %cst_44 = arith.constant dense<0xFF800000> : vector<8xf32>
    %106 = vector.multi_reduction <maximumf>, %105, %cst_44 [1] : vector<8x8xf32> to vector<8xf32>
    %107 = vector.shape_cast %106 : vector<8xf32> to vector<8x1xf32>
    %108 = arith.maximumf %96#0, %107 : vector<8x1xf32>
    %109 = arith.subf %96#0, %108 : vector<8x1xf32>
    %110 = math.exp %109 : vector<8x1xf32>
    %111 = vector.broadcast %108 : vector<8x1xf32> to vector<8x8xf32>
    %112 = arith.subf %105, %111 : vector<8x8xf32>
    %113 = math.exp %112 : vector<8x8xf32>
    %114 = arith.mulf %110, %96#1 : vector<8x1xf32>
    %cst_45 = arith.constant dense<0.000000e+00> : vector<8xf32>
    %115 = vector.multi_reduction <add>, %113, %cst_45 [1] : vector<8x8xf32> to vector<8xf32>
    %116 = vector.shape_cast %115 : vector<8xf32> to vector<8x1xf32>
    %117 = arith.addf %114, %116 : vector<8x1xf32>
    %118 = vector.broadcast %110 : vector<8x1xf32> to vector<8x128xf32>
    %119 = arith.mulf %118, %96#2 : vector<8x128xf32>
    %cst_46 = arith.constant dense<0.000000e+00> : vector<8x128xf32>
    %120 = tpu.matmul %113, %102, %cst_46 {dimension_numbers = #tpu.dot_dimension_numbers<[1], [0], [0], [1], [0, 0, 1, 1], [], []>} : vector<8x8xf32>, vector<8x128xf32>, vector<8x128xf32> -> vector<8x128xf32>
    %121 = arith.addf %119, %120 : vector<8x128xf32>
    %122 = tpu.reciprocal %117 {approx = true} : vector<8x1xf32> -> vector<8x1xf32>
    %123 = vector.broadcast %122 : vector<8x1xf32> to vector<8x128xf32>
    %124 = arith.mulf %121, %123 : vector<8x128xf32>
    %c256_47 = arith.constant 256 : index
    %c0_48 = arith.constant 0 : index
    %125 = vector.load %arg5[%c256_47, %c0_48] : memref<512x32xf32, #tpu.memory_space<vmem>>, vector<128x32xf32>
    %cst_49 = arith.constant dense<0.000000e+00> : vector<8x32xf32>
    %126 = tpu.matmul %124, %125, %cst_49 {dimension_numbers = #tpu.dot_dimension_numbers<[1], [0], [0], [1], [0, 0, 1, 1], [], []>} : vector<8x128xf32>, vector<128x32xf32>, vector<8x32xf32> -> vector<8x32xf32>
    %127 = arith.addf %89, %126 : vector<8x32xf32>
    %128 = vector.extract_strided_slice %9 {offsets = [0, 384], sizes = [8, 128], strides = [1, 1]} : vector<8x512xf32> to vector<8x128xf32>
    %cst_50 = arith.constant 0xFF800000 : f32
    %129 = vector.broadcast %cst_50 : f32 to vector<8x1xf32>
    %cst_51 = arith.constant 0.000000e+00 : f32
    %130 = vector.broadcast %cst_51 : f32 to vector<8x1xf32>
    %cst_52 = arith.constant 0.000000e+00 : f32
    %131 = vector.broadcast %cst_52 : f32 to vector<8x128xf32>
    %c0_i32_53 = arith.constant 0 : i32
    %132 = arith.subi %arg1, %c0_i32_53 : i32
    %133 = arith.addi %c0_i32_53, %132 : i32
    %c1_i32_54 = arith.constant 1 : i32
    %134:3 = scf.for %arg10 = %c0_i32_53 to %133 step %c1_i32_54 iter_args(%arg11 = %129, %arg12 = %130, %arg13 = %131) -> (vector<8x1xf32>, vector<8x1xf32>, vector<8x128xf32>)  : i32 {
      %c8_i32_70 = arith.constant 8 : i32
      %172 = arith.muli %arg10, %c8_i32_70 : i32
      %173 = tpu.assume_multiple %172, 8 : i32
      %174 = arith.index_cast %173 : i32 to index
      %c384_71 = arith.constant 384 : index
      %175 = vector.load %arg8[%174, %c384_71] : memref<8x512xf32, #tpu.memory_space<vmem>>, vector<8x128xf32>
      %176 = arith.index_cast %173 : i32 to index
      %c384_72 = arith.constant 384 : index
      %177 = vector.load %arg9[%176, %c384_72] : memref<8x512xf32, #tpu.memory_space<vmem>>, vector<8x128xf32>
      %cst_73 = arith.constant dense<0.000000e+00> : vector<8x8xf32>
      %178 = tpu.matmul %128, %175, %cst_73 {dimension_numbers = #tpu.dot_dimension_numbers<[1], [1], [0], [0], [0, 0, 1, 0], [], []>} : vector<8x128xf32>, vector<8x128xf32>, vector<8x8xf32> -> vector<8x8xf32>
      %cst_74 = arith.constant dense<0xFF800000> : vector<8xf32>
      %179 = vector.multi_reduction <maximumf>, %178, %cst_74 [1] : vector<8x8xf32> to vector<8xf32>
      %180 = vector.shape_cast %179 : vector<8xf32> to vector<8x1xf32>
      %181 = arith.maximumf %arg11, %180 : vector<8x1xf32>
      %182 = arith.subf %arg11, %181 : vector<8x1xf32>
      %183 = math.exp %182 : vector<8x1xf32>
      %184 = vector.broadcast %181 : vector<8x1xf32> to vector<8x8xf32>
      %185 = arith.subf %178, %184 : vector<8x8xf32>
      %186 = math.exp %185 : vector<8x8xf32>
      %187 = arith.mulf %183, %arg12 : vector<8x1xf32>
      %cst_75 = arith.constant dense<0.000000e+00> : vector<8xf32>
      %188 = vector.multi_reduction <add>, %186, %cst_75 [1] : vector<8x8xf32> to vector<8xf32>
      %189 = vector.shape_cast %188 : vector<8xf32> to vector<8x1xf32>
      %190 = arith.addf %187, %189 : vector<8x1xf32>
      %191 = vector.broadcast %183 : vector<8x1xf32> to vector<8x128xf32>
      %192 = arith.mulf %191, %arg13 : vector<8x128xf32>
      %cst_76 = arith.constant dense<0.000000e+00> : vector<8x128xf32>
      %193 = tpu.matmul %186, %177, %cst_76 {dimension_numbers = #tpu.dot_dimension_numbers<[1], [0], [0], [1], [0, 0, 1, 1], [], []>} : vector<8x8xf32>, vector<8x128xf32>, vector<8x128xf32> -> vector<8x128xf32>
      %194 = arith.addf %192, %193 : vector<8x128xf32>
      scf.yield %181, %190, %194 : vector<8x1xf32>, vector<8x1xf32>, vector<8x128xf32>
    }
    %c8_i32_55 = arith.constant 8 : i32
    %135 = arith.muli %arg1, %c8_i32_55 : i32
    %136 = tpu.assume_multiple %135, 8 : i32
    %137 = arith.index_cast %136 : i32 to index
    %c384 = arith.constant 384 : index
    %138 = vector.load %arg8[%137, %c384] : memref<8x512xf32, #tpu.memory_space<vmem>>, vector<8x128xf32>
    %139 = arith.index_cast %136 : i32 to index
    %c384_56 = arith.constant 384 : index
    %140 = vector.load %arg9[%139, %c384_56] : memref<8x512xf32, #tpu.memory_space<vmem>>, vector<8x128xf32>
    %cst_57 = arith.constant dense<0.000000e+00> : vector<8x8xf32>
    %141 = tpu.matmul %128, %138, %cst_57 {dimension_numbers = #tpu.dot_dimension_numbers<[1], [1], [0], [0], [0, 0, 1, 0], [], []>} : vector<8x128xf32>, vector<8x128xf32>, vector<8x8xf32> -> vector<8x8xf32>
    %cst_58 = arith.constant 0xFF800000 : f32
    %142 = vector.broadcast %cst_58 : f32 to vector<8x8xf32>
    %143 = arith.select %12, %141, %142 : vector<8x8xi1>, vector<8x8xf32>
    %cst_59 = arith.constant dense<0xFF800000> : vector<8xf32>
    %144 = vector.multi_reduction <maximumf>, %143, %cst_59 [1] : vector<8x8xf32> to vector<8xf32>
    %145 = vector.shape_cast %144 : vector<8xf32> to vector<8x1xf32>
    %146 = arith.maximumf %134#0, %145 : vector<8x1xf32>
    %147 = arith.subf %134#0, %146 : vector<8x1xf32>
    %148 = math.exp %147 : vector<8x1xf32>
    %149 = vector.broadcast %146 : vector<8x1xf32> to vector<8x8xf32>
    %150 = arith.subf %143, %149 : vector<8x8xf32>
    %151 = math.exp %150 : vector<8x8xf32>
    %152 = arith.mulf %148, %134#1 : vector<8x1xf32>
    %cst_60 = arith.constant dense<0.000000e+00> : vector<8xf32>
    %153 = vector.multi_reduction <add>, %151, %cst_60 [1] : vector<8x8xf32> to vector<8xf32>
    %154 = vector.shape_cast %153 : vector<8xf32> to vector<8x1xf32>
    %155 = arith.addf %152, %154 : vector<8x1xf32>
    %156 = vector.broadcast %148 : vector<8x1xf32> to vector<8x128xf32>
    %157 = arith.mulf %156, %134#2 : vector<8x128xf32>
    %cst_61 = arith.constant dense<0.000000e+00> : vector<8x128xf32>
    %158 = tpu.matmul %151, %140, %cst_61 {dimension_numbers = #tpu.dot_dimension_numbers<[1], [0], [0], [1], [0, 0, 1, 1], [], []>} : vector<8x8xf32>, vector<8x128xf32>, vector<8x128xf32> -> vector<8x128xf32>
    %159 = arith.addf %157, %158 : vector<8x128xf32>
    %160 = tpu.reciprocal %155 {approx = true} : vector<8x1xf32> -> vector<8x1xf32>
    %161 = vector.broadcast %160 : vector<8x1xf32> to vector<8x128xf32>
    %162 = arith.mulf %159, %161 : vector<8x128xf32>
    %c384_62 = arith.constant 384 : index
    %c0_63 = arith.constant 0 : index
    %163 = vector.load %arg5[%c384_62, %c0_63] : memref<512x32xf32, #tpu.memory_space<vmem>>, vector<128x32xf32>
    %cst_64 = arith.constant dense<0.000000e+00> : vector<8x32xf32>
    %164 = tpu.matmul %162, %163, %cst_64 {dimension_numbers = #tpu.dot_dimension_numbers<[1], [0], [0], [1], [0, 0, 1, 1], [], []>} : vector<8x128xf32>, vector<128x32xf32>, vector<8x32xf32> -> vector<8x32xf32>
    %165 = arith.addf %127, %164 : vector<8x32xf32>
    %c0_65 = arith.constant 0 : index
    %c0_66 = arith.constant 0 : index
    %166 = vector.load %arg6[%c0_65, %c0_66] : memref<1x32xf32, #tpu.memory_space<vmem>>, vector<1x32xf32>
    %167 = vector.broadcast %166 : vector<1x32xf32> to vector<8x32xf32>
    %168 = arith.addf %165, %167 : vector<8x32xf32>
    %c0_67 = arith.constant 0 : index
    %c0_68 = arith.constant 0 : index
    %c0_69 = arith.constant 0 : index
    %169 = vector.load %arg7[%c0_67, %c0_68, %c0_69] : memref<1x8x32xf32, #tpu.memory_space<vmem>>, vector<1x8x32xf32>
    %170 = vector.shape_cast %169 : vector<1x8x32xf32> to vector<8x32xf32>
    %171 = vector.shape_cast %168 : vector<8x32xf32> to vector<1x8x32xf32>
    tpu.vector_store %arg7[%c0_67, %c0_68, %c0_69], %171 {strides = array<i32>} : memref<1x8x32xf32, #tpu.memory_space<vmem>>, vector<1x8x32xf32>,
    return
  }
  func.func @transform_0(%arg0: i32, %arg1: i32) -> (i32, i32, i32) {
    %c0_i32 = arith.constant 0 : i32
    %c0_i32_0 = arith.constant 0 : i32
    %c0_i32_1 = arith.constant 0 : i32
    return %arg0, %c0_i32, %c0_i32_0 : i32, i32, i32
  }
  func.func @transform_1(%arg0: i32, %arg1: i32) -> (i32, i32) {
    %c0_i32 = arith.constant 0 : i32
    %c0_i32_0 = arith.constant 0 : i32
    %c0_i32_1 = arith.constant 0 : i32
    return %c0_i32, %c0_i32_0 : i32, i32
  }
  func.func @transform_2(%arg0: i32, %arg1: i32) -> (i32, i32) {
    %c0_i32 = arith.constant 0 : i32
    %c0_i32_0 = arith.constant 0 : i32
    %c0_i32_1 = arith.constant 0 : i32
    return %c0_i32, %c0_i32_0 : i32, i32
  }
  func.func @transform_3(%arg0: i32, %arg1: i32) -> (i32, i32) {
    %c0_i32 = arith.constant 0 : i32
    %c0_i32_0 = arith.constant 0 : i32
    %c0_i32_1 = arith.constant 0 : i32
    return %c0_i32, %c0_i32_0 : i32, i32
  }
  func.func @transform_4(%arg0: i32, %arg1: i32) -> (i32, i32) {
    %c0_i32 = arith.constant 0 : i32
    %c0_i32_0 = arith.constant 0 : i32
    %c0_i32_1 = arith.constant 0 : i32
    return %c0_i32, %c0_i32_0 : i32, i32
  }
  func.func @transform_5(%arg0: i32, %arg1: i32) -> (i32, i32, i32) {
    %c0_i32 = arith.constant 0 : i32
    %c0_i32_0 = arith.constant 0 : i32
    return %arg0, %arg1, %c0_i32 : i32, i32, i32
  }
}

</mosaic_0001>

<llo_original>
// kernel: tpu_custom_call.1
$region0: #{tpu_custom_call.1}
  #allocation0 [shape = 'u32[]', space=smem, size = 0x4, offset = 0x4, fixed_abs, tag = 'smem constant byte address 0x4 - core index']
  #allocation1 [shape = 'u32[144,128]{1,0:T(1,128)}', space=vmem, size = 0x12000, scoped, tag = 'internal scratch']
  #allocation2 [shape = 'f32[8,512]{1,0:T(8,128)}', space=vmem, size = 0x4000, scoped, tag = 'scratch operand']
  #allocation3 [shape = 'f32[8,512]{1,0:T(8,128)}', space=vmem, size = 0x4000, scoped, tag = 'scratch operand']
  %s0 = inlined_call_operand.vmem [shape: f32[2,8,32], index: 0, kind: input, shape index: {}]
  %s1 = inlined_call_operand.vmem [shape: f32[32,512], index: 1, kind: input, shape index: {}]
  %s2 = inlined_call_operand.vmem [shape: f32[32,1024], index: 2, kind: input, shape index: {}]
  %s3 = inlined_call_operand.vmem [shape: f32[512,32], index: 3, kind: input, shape index: {}]
  %s4 = inlined_call_operand.vmem [shape: f32[1,32], index: 4, kind: input, shape index: {}]
  %s5 = inlined_call_operand.hbm [shape: f32[2,8,32], index: 5, kind: output, shape index: {}]
  %s6 = sld [smem:[#allocation0]]
  $region85: #{tpu_custom_call.1} parent=0
    _
  %s8 = ssub.s32 1, %s6
  %s9 = scalar_select 0, %s8, %s6
  $region1: #{tpu_custom_call.1} parent=0
    #allocation4 [shape = 'u8[8192]{0}', space=vmem, size = 0x2000, scoped, tag = 'output window, operand 0']
    #allocation5 [shape = 's32[2]{0}', space=sflag, size = 0x8, scoped, tag = 'scoped memory for tpu_custom_call.1']
    %10 = vsyncpa [#allocation5], 0
    %s11 = scalar_lea.sflag [#allocation5], 1
    %12 = vsyncpa %s11, 0
    loop: start=0, step=1, limit=4
    $region2: #{tpu_custom_call.1} parent=1 // loop_pre_header
      _
    $region3: #{tpu_custom_call.1} parent=1 // loop_header
      %s14 = sphi 0, %s18
      %p15 = scmp.ge.s32.totalorder %s14, 4
      %s21 = sphi 0, %s33
      %s22 = sphi 0, %s29
      %s23 = sphi 0, %s21
      %s24 = sphi 0, %s22
      %s25 = sphi 0, %s23
      %s26 = sphi 0, %s24
      %s36 = sphi 0, %s38
      %s39 = sphi 0, %s36
      %s40 = sphi 0, %s39
      %s56 = sphi 0, %s40
      %s60 = sphi 0, %s60
      %s62 = sphi 0, %s60
      %s63 = sphi 0, %s62
      %s77 = sphi 0, %s63
      %s81 = sphi 0, %s81
      %s83 = sphi 0, %s81
      %s84 = sphi 0, %s83
      %s98 = sphi 0, %s84
      %s102 = sphi 0, %s102
      %s104 = sphi 0, %s102
      %s105 = sphi 0, %s104
      %s119 = sphi 0, %s105
      %s123 = sphi 0, %s123
      %s125 = sphi 0, %s123
      %s126 = sphi 0, %s125
      %s140 = sphi 0, %s126
      %s148 = sphi 0, %s150
      %s151 = sphi 0, %s148
      %s152 = sphi 0, %s151
      %s168 = sphi 0, %s152
    $region4: #{tpu_custom_call.1} parent=1 // loop_header_branch
      %17 = sbr.rel (%p15) target = $region8
    $region5: #{tpu_custom_call.1} parent=1 // loop_body
      %s19 = ssub.s32 %s14, 1
      %s20 = ssub.s32 %s14, 2
      %s27 = sadd.s32 1, %s22
      %p28 = scmp.ge.s32.totalorder %s27, 1
      %s29 = scalar_select %p28, 0, %s27
      %s30 = sadd.s32 1, %s21
      %s31 = scalar_select %p28, %s30, %s21
      %p32 = scmp.ge.s32.totalorder %s31, 2
      %s33 = scalar_select %p32, 0, %s31
      %s34 = ssub.s32 %s21, %s33
      %p35 = scmp.eq.s32.totalorder %s34, 0
      %s37 = sadd.s32 %s36, 1
      %s38 = scalar_select %p35, %s36, %s37
      %p41 = pneg %p35
      %p42 = scmp.eq.s32.totalorder %s14, 1
      %p43 = por %p41, %p42
      %p44 = scmp.ne.s32.totalorder %s36, %s39
      %p45 = scmp.eq.s32.totalorder %s14, 0
      %p46 = por %p44, %p45
      %p47 = scmp.ne.s32.totalorder %s36, %s39
      %p48 = scmp.eq.s32.totalorder %s19, 1
      %p49 = por %p47, %p48
      %p50 = scmp.ne.s32.totalorder %s39, %s40
      %p51 = scmp.eq.s32.totalorder %s19, 0
      %p52 = por %p50, %p51
      %p53 = scmp.ne.s32.totalorder %s39, %s40
      %p54 = scmp.eq.s32.totalorder %s20, 1
      %p55 = por %p53, %p54
      %p57 = scmp.ne.s32.totalorder %s40, %s56
      %p58 = scmp.eq.s32.totalorder %s20, 0
      %p59 = por %p57, %p58
      %s61 = sadd.s32 %s60, 1
      %p64 = scmp.eq.s32.totalorder %s14, 1
      %p65 = scmp.ne.s32.totalorder %s60, %s62
      %p66 = scmp.eq.s32.totalorder %s14, 0
      %p67 = por %p65, %p66
      %p68 = scmp.ne.s32.totalorder %s60, %s62
      %p69 = scmp.eq.s32.totalorder %s19, 1
      %p70 = por %p68, %p69
      %p71 = scmp.ne.s32.totalorder %s62, %s63
      %p72 = scmp.eq.s32.totalorder %s19, 0
      %p73 = por %p71, %p72
      %p74 = scmp.ne.s32.totalorder %s62, %s63
      %p75 = scmp.eq.s32.totalorder %s20, 1
      %p76 = por %p74, %p75
      %p78 = scmp.ne.s32.totalorder %s63, %s77
      %p79 = scmp.eq.s32.totalorder %s20, 0
      %p80 = por %p78, %p79
      %s82 = sadd.s32 %s81, 1
      %p85 = scmp.eq.s32.totalorder %s14, 1
      %p86 = scmp.ne.s32.totalorder %s81, %s83
      %p87 = scmp.eq.s32.totalorder %s14, 0
      %p88 = por %p86, %p87
      %p89 = scmp.ne.s32.totalorder %s81, %s83
      %p90 = scmp.eq.s32.totalorder %s19, 1
      %p91 = por %p89, %p90
      %p92 = scmp.ne.s32.totalorder %s83, %s84
      %p93 = scmp.eq.s32.totalorder %s19, 0
      %p94 = por %p92, %p93
      %p95 = scmp.ne.s32.totalorder %s83, %s84
      %p96 = scmp.eq.s32.totalorder %s20, 1
      %p97 = por %p95, %p96
      %p99 = scmp.ne.s32.totalorder %s84, %s98
      %p100 = scmp.eq.s32.totalorder %s20, 0
      %p101 = por %p99, %p100
      %s103 = sadd.s32 %s102, 1
      %p106 = scmp.eq.s32.totalorder %s14, 1
      %p107 = scmp.ne.s32.totalorder %s102, %s104
      %p108 = scmp.eq.s32.totalorder %s14, 0
      %p109 = por %p107, %p108
      %p110 = scmp.ne.s32.totalorder %s102, %s104
      %p111 = scmp.eq.s32.totalorder %s19, 1
      %p112 = por %p110, %p111
      %p113 = scmp.ne.s32.totalorder %s104, %s105
      %p114 = scmp.eq.s32.totalorder %s19, 0
      %p115 = por %p113, %p114
      %p116 = scmp.ne.s32.totalorder %s104, %s105
      %p117 = scmp.eq.s32.totalorder %s20, 1
      %p118 = por %p116, %p117
      %p120 = scmp.ne.s32.totalorder %s105, %s119
      %p121 = scmp.eq.s32.totalorder %s20, 0
      %p122 = por %p120, %p121
      %s124 = sadd.s32 %s123, 1
      %p127 = scmp.eq.s32.totalorder %s14, 1
      %p128 = scmp.ne.s32.totalorder %s123, %s125
      %p129 = scmp.eq.s32.totalorder %s14, 0
      %p130 = por %p128, %p129
      %p131 = scmp.ne.s32.totalorder %s123, %s125
      %p132 = scmp.eq.s32.totalorder %s19, 1
      %p133 = por %p131, %p132
      %p134 = scmp.ne.s32.totalorder %s125, %s126
      %p135 = scmp.eq.s32.totalorder %s19, 0
      %p136 = por %p134, %p135
      %p137 = scmp.ne.s32.totalorder %s125, %s126
      %p138 = scmp.eq.s32.totalorder %s20, 1
      %p139 = por %p137, %p138
      %p141 = scmp.ne.s32.totalorder %s126, %s140
      %p142 = scmp.eq.s32.totalorder %s20, 0
      %p143 = por %p141, %p142
      %s144 = ssub.s32 %s21, %s33
      %s145 = ssub.s32 %s22, %s29
      %s146 = sor.u32 %s144, %s145
      %p147 = scmp.eq.s32.totalorder %s146, 0
      %s149 = sadd.s32 %s148, 1
      %s150 = scalar_select %p147, %s148, %s149
      %p153 = pneg %p147
      %p154 = scmp.eq.s32.totalorder %s14, 1
      %p155 = por %p153, %p154
      %p156 = scmp.ne.s32.totalorder %s148, %s151
      %p157 = scmp.eq.s32.totalorder %s14, 0
      %p158 = por %p156, %p157
      %p159 = scmp.ne.s32.totalorder %s148, %s151
      %p160 = scmp.eq.s32.totalorder %s19, 1
      %p161 = por %p159, %p160
      %p162 = scmp.ne.s32.totalorder %s151, %s152
      %p163 = scmp.eq.s32.totalorder %s19, 0
      %p164 = por %p162, %p163
      %p165 = scmp.ne.s32.totalorder %s151, %s152
      %p166 = scmp.eq.s32.totalorder %s20, 1
      %p167 = por %p165, %p166
      %p169 = scmp.ne.s32.totalorder %s152, %s168
      %p170 = scmp.eq.s32.totalorder %s20, 0
      %p171 = por %p169, %p170
      %p172 = scmp.le.s32.totalorder 1, %s14
      %p173 = scmp.lt.s32.totalorder %s14, 3
      %p174 = pnand %p172, %p173
      %p175 = pneg %p174
      // Predicated region
      $region9: #{tpu_custom_call.1} parent=5 // pred_check
        _
      $region10: #{tpu_custom_call.1} parent=5 // pred_check_branch
        %177 = sbr.rel (%p174) target = $region12
      $region11: #{tpu_custom_call.1} parent=5 // pred_region
        %s178 = ssub.s32 %s14, 1
        // Predicated region
        $region13: #{tpu_custom_call.1} parent=11 // pred_check
          %p179 = pneg %p73
        $region14: #{tpu_custom_call.1} parent=11 // pred_check_branch
          %181 = sbr.rel (%p179) target = $region16
        $region15: #{tpu_custom_call.1} parent=11 // pred_region
          _
        $region16: #{tpu_custom_call.1} parent=11 // pred_fallthru
          _
        // Predicated region
        $region17: #{tpu_custom_call.1} parent=11 // pred_check
          %p182 = pneg %p94
        $region18: #{tpu_custom_call.1} parent=11 // pred_check_branch
          %184 = sbr.rel (%p182) target = $region20
        $region19: #{tpu_custom_call.1} parent=11 // pred_region
          _
        $region20: #{tpu_custom_call.1} parent=11 // pred_fallthru
          _
        // Predicated region
        $region21: #{tpu_custom_call.1} parent=11 // pred_check
          %p185 = pneg %p115
        $region22: #{tpu_custom_call.1} parent=11 // pred_check_branch
          %187 = sbr.rel (%p185) target = $region24
        $region23: #{tpu_custom_call.1} parent=11 // pred_region
          _
        $region24: #{tpu_custom_call.1} parent=11 // pred_fallthru
          _
        // Predicated region
        $region25: #{tpu_custom_call.1} parent=11 // pred_check
          %p188 = pneg %p136
        $region26: #{tpu_custom_call.1} parent=11 // pred_check_branch
          %190 = sbr.rel (%p188) target = $region28
        $region27: #{tpu_custom_call.1} parent=11 // pred_region
          _
        $region28: #{tpu_custom_call.1} parent=11 // pred_fallthru
          _
      $region12: #{tpu_custom_call.1} parent=5 // pred_fallthru
        _
      %p191 = scmp.lt.s32.totalorder %s14, 2
      // Predicated region
      $region29: #{tpu_custom_call.1} parent=5 // pred_check
        %p192 = pneg %p191
      $region30: #{tpu_custom_call.1} parent=5 // pred_check_branch
        %194 = sbr.rel (%p192) target = $region32
      $region31: #{tpu_custom_call.1} parent=5 // pred_region
        // Predicated region
        $region33: #{tpu_custom_call.1} parent=31 // pred_check
          %p195 = pneg %p46
        $region34: #{tpu_custom_call.1} parent=31 // pred_check_branch
          %197 = sbr.rel (%p195) target = $region36
        $region35: #{tpu_custom_call.1} parent=31 // pred_region
          %p198 = scmp.lt.s32.totalorder %s21, 1
          %s199 = scalar_select %p198, %s21, 1
          %s200 = smul.addr %s199, 8
          %s201 = scalar_lea.vmem %s0, %s200
        $region36: #{tpu_custom_call.1} parent=31 // pred_fallthru
          _
      $region32: #{tpu_custom_call.1} parent=5 // pred_fallthru
        _
      %p202 = scmp.le.s32.totalorder 1, %s14
      %p203 = scmp.lt.s32.totalorder %s14, 3
      %p204 = pnand %p202, %p203
      %p205 = pneg %p204
      // Predicated region
      $region37: #{tpu_custom_call.1} parent=5 // pred_check
        _
      $region38: #{tpu_custom_call.1} parent=5 // pred_check_branch
        %207 = sbr.rel (%p204) target = $region40
      $region39: #{tpu_custom_call.1} parent=5 // pred_region
        %s208 = ssub.s32 %s14, 1
        %p209 = scmp.lt.s32.totalorder %s23, 1
        %s210 = scalar_select %p209, %s23, 1
        %s211 = smul.addr %s210, 8
        %s212 = scalar_lea.vmem %s0, %s211
        %p213 = pneg %p52
        %p214 = pneg %p49
        %p215 = pneg %p73
        %p216 = pneg %p70
        %p217 = pneg %p94
        %p218 = pneg %p91
        %p219 = pneg %p115
        %p220 = pneg %p112
        %p221 = pneg %p136
        %p222 = pneg %p133
        %p223 = pneg %p164
        %p224 = pneg %p161
        %s225 = sand.u32 %s151, 1
        %s226 = scalar_lea.sflag [#allocation5], %s225
        %s227 = sand.u32 %s151, 1
        %s228 = smul.addr %s227, 8
        %s229 = scalar_lea.vmem [#allocation4], %s228
        %p230 = scmp.lt.s32.totalorder %s23, 1
        %s231 = scalar_select %p230, %s23, 1
        %s232 = smul.addr %s231, 8
        %s233 = scalar_lea.vmem %s0, %s232
        %p234 = scmp.eq.s32.totalorder %s24, 0
        // Predicated region
        $region41: #{tpu_custom_call.1} parent=39 // pred_check
          %p235 = pneg %p234
        $region42: #{tpu_custom_call.1} parent=39 // pred_check_branch
          %237 = sbr.rel (%p235) target = $region44
        $region43: #{tpu_custom_call.1} parent=39 // pred_region
          %v238 = vld [vmem:[%s233] sm:$0xff]
          %v239 = vld [vmem:[%s2] sm:$0xff]
          %v240 = vld [vmem:[%s2 + $0x8] sm:$0xff]
          %v241 = vld [vmem:[%s2 + $0x10] sm:$0xff]
          %v242 = vld [vmem:[%s2 + $0x18] sm:$0xff]
          %v243 = vld [vmem:[%s2 + $0x20] sm:$0xff]
          %v244 = vld [vmem:[%s2 + $0x28] sm:$0xff]
          %v245 = vld [vmem:[%s2 + $0x30] sm:$0xff]
          %v246 = vld [vmem:[%s2 + $0x38] sm:$0xff]
          %v247 = vld [vmem:[%s2 + $0x40] sm:$0xff]
          %v248 = vld [vmem:[%s2 + $0x48] sm:$0xff]
          %v249 = vld [vmem:[%s2 + $0x50] sm:$0xff]
          %v250 = vld [vmem:[%s2 + $0x58] sm:$0xff]
          %v251 = vld [vmem:[%s2 + $0x60] sm:$0xff]
          %v252 = vld [vmem:[%s2 + $0x68] sm:$0xff]
          %v253 = vld [vmem:[%s2 + $0x70] sm:$0xff]
          %v254 = vld [vmem:[%s2 + $0x78] sm:$0xff]
          %v255 = vld [vmem:[%s2 + $0x80] sm:$0xff]
          %v256 = vld [vmem:[%s2 + $0x88] sm:$0xff]
          %v257 = vld [vmem:[%s2 + $0x90] sm:$0xff]
          %v258 = vld [vmem:[%s2 + $0x98] sm:$0xff]
          %v259 = vld [vmem:[%s2 + $0xa0] sm:$0xff]
          %v260 = vld [vmem:[%s2 + $0xa8] sm:$0xff]
          %v261 = vld [vmem:[%s2 + $0xb0] sm:$0xff]
          %v262 = vld [vmem:[%s2 + $0xb8] sm:$0xff]
          %v263 = vld [vmem:[%s2 + $0xc0] sm:$0xff]
          %v264 = vld [vmem:[%s2 + $0xc8] sm:$0xff]
          %v265 = vld [vmem:[%s2 + $0xd0] sm:$0xff]
          %v266 = vld [vmem:[%s2 + $0xd8] sm:$0xff]
          %v267 = vld [vmem:[%s2 + $0xe0] sm:$0xff]
          %v268 = vld [vmem:[%s2 + $0xe8] sm:$0xff]
          %v269 = vld [vmem:[%s2 + $0xf0] sm:$0xff]
          %v270 = vld [vmem:[%s2 + $0xf8] sm:$0xff]
          %vm271 = vcmask 261120
          %v273 = vsel %vm271, %v238, 0
          %275 = vmatprep.subr.mxu0 %v240
          %276 = vmatpush1.msra.mxu0 %v239
          %277 = vmatprep.subr.mxu0 %v248
          %278 = vmatpush1.msra.mxu0 %v247
          %279 = vmatprep.subr.mxu0 %v256
          %280 = vmatpush1.msra.mxu0 %v255
          %281 = vmatprep.subr.mxu0 %v264
          %282 = vmatpush1.msra.mxu0 %v263
          %283 = vmatprep.subr.mxu0 0.0
          %284 = vmatpush1.msra.mxu0 0.0
          %285 = vmatprep.subr.mxu0 0.0
          %286 = vmatpush1.msra.mxu0 0.0
          %287 = vmatprep.subr.mxu0 0.0
          %288 = vmatpush1.msra.mxu0 0.0
          %289 = vmatprep.subr.mxu0 0.0
          %290 = vmatpush1.msra.mxu0 0.0
          %291 = vmatprep.subr.mxu0 0.0
          %292 = vmatpush1.msra.mxu0 0.0
          %293 = vmatprep.subr.mxu0 0.0
          %294 = vmatpush1.msra.mxu0 0.0
          %295 = vmatprep.subr.mxu0 0.0
          %296 = vmatpush1.msra.mxu0 0.0
          %297 = vmatprep.subr.mxu0 0.0
          %298 = vmatpush1.msra.mxu0 0.0
          %299 = vmatprep.subr.mxu0 0.0
          %300 = vmatpush1.msra.mxu0 0.0
          %301 = vmatprep.subr.mxu0 0.0
          %302 = vmatpush1.msra.mxu0 0.0
          %303 = vmatprep.subr.mxu0 0.0
          %304 = vmatpush1.msra.mxu0 0.0
          %305 = vmatprep.subr.mxu0 0.0
          %306 = vmatpush1.msra.mxu0 0.0
          %307 = vmatprep.subr.mxu0 0.0
          %308 = vmatpush1.msra.mxu0 0.0
          %309 = vmatprep.subr.mxu0 0.0
          %310 = vmatpush1.msra.mxu0 0.0
          %311 = vmatprep.subr.mxu0 0.0
          %312 = vmatpush1.msra.mxu0 0.0
          %313 = vmatprep.subr.mxu0 0.0
          %314 = vmatpush1.msra.mxu0 0.0
          %315 = vmatprep.subr.mxu0 0.0
          %316 = vmatpush1.msra.mxu0 0.0
          %317 = vmatprep.subr.mxu0 0.0
          %318 = vmatpush1.msra.mxu0 0.0
          %319 = vmatprep.subr.mxu0 0.0
          %320 = vmatpush1.msra.mxu0 0.0
          %321 = vmatprep.subr.mxu0 0.0
          %322 = vmatpush1.msra.mxu0 0.0
          %323 = vmatprep.subr.mxu0 0.0
          %324 = vmatpush1.msra.mxu0 0.0
          %325 = vmatprep.subr.mxu0 0.0
          %326 = vmatpush1.msra.mxu0 0.0
          %327 = vmatprep.subr.mxu0 0.0
          %328 = vmatpush1.msra.mxu0 0.0
          %329 = vmatprep.subr.mxu0 0.0
          %330 = vmatpush1.msra.mxu0 0.0
          %331 = vmatprep.subr.mxu0 0.0
          %332 = vmatpush1.msra.mxu0 0.0
          %333 = vmatprep.subr.mxu0 0.0
          %334 = vmatpush1.msra.mxu0 0.0
          %335 = vmatprep.subr.mxu0 0.0
          %336 = vmatpush1.msra.mxu0 0.0
          %337 = vmatprep.subr.mxu0 0.0
          %338 = vmatpush1.msra.mxu0 0.0
          %339 = vmatprep.mubr.f32.mxu0 0.0
          %340 = vmatmul.mubr.f32.gmra.mrb[0].mxu0 %v273
          %v341 = vpop.f32.mrb[0].mxu0
          %v342 = vadd.f32 0.0, %v341
          %v343 = vpop.f32.mrb[0].mxu0
          %v344 = vadd.f32 0.0, %v343
          %345 = vdwg.mxu0
          %346 = vmatprep.subr.mxu0 %v242
          %347 = vmatpush1.msra.mxu0 %v241
          %348 = vmatprep.subr.mxu0 %v250
          %349 = vmatpush1.msra.mxu0 %v249
          %350 = vmatprep.subr.mxu0 %v258
          %351 = vmatpush1.msra.mxu0 %v257
          %352 = vmatprep.subr.mxu0 %v266
          %353 = vmatpush1.msra.mxu0 %v265
          %354 = vmatprep.subr.mxu0 0.0
          %355 = vmatpush1.msra.mxu0 0.0
          %356 = vmatprep.subr.mxu0 0.0
          %357 = vmatpush1.msra.mxu0 0.0
          %358 = vmatprep.subr.mxu0 0.0
          %359 = vmatpush1.msra.mxu0 0.0
          %360 = vmatprep.subr.mxu0 0.0
          %361 = vmatpush1.msra.mxu0 0.0
          %362 = vmatprep.subr.mxu0 0.0
          %363 = vmatpush1.msra.mxu0 0.0
          %364 = vmatprep.subr.mxu0 0.0
          %365 = vmatpush1.msra.mxu0 0.0
          %366 = vmatprep.subr.mxu0 0.0
          %367 = vmatpush1.msra.mxu0 0.0
          %368 = vmatprep.subr.mxu0 0.0
          %369 = vmatpush1.msra.mxu0 0.0
          %370 = vmatprep.subr.mxu0 0.0
          %371 = vmatpush1.msra.mxu0 0.0
          %372 = vmatprep.subr.mxu0 0.0
          %373 = vmatpush1.msra.mxu0 0.0
          %374 = vmatprep.subr.mxu0 0.0
          %375 = vmatpush1.msra.mxu0 0.0
          %376 = vmatprep.subr.mxu0 0.0
          %377 = vmatpush1.msra.mxu0 0.0
          %378 = vmatprep.subr.mxu0 0.0
          %379 = vmatpush1.msra.mxu0 0.0
          %380 = vmatprep.subr.mxu0 0.0
          %381 = vmatpush1.msra.mxu0 0.0
          %382 = vmatprep.subr.mxu0 0.0
          %383 = vmatpush1.msra.mxu0 0.0
          %384 = vmatprep.subr.mxu0 0.0
          %385 = vmatpush1.msra.mxu0 0.0
          %386 = vmatprep.subr.mxu0 0.0
          %387 = vmatpush1.msra.mxu0 0.0
          %388 = vmatprep.subr.mxu0 0.0
          %389 = vmatpush1.msra.mxu0 0.0
          %390 = vmatprep.subr.mxu0 0.0
          %391 = vmatpush1.msra.mxu0 0.0
          %392 = vmatprep.subr.mxu0 0.0
          %393 = vmatpush1.msra.mxu0 0.0
          %394 = vmatprep.subr.mxu0 0.0
          %395 = vmatpush1.msra.mxu0 0.0
          %396 = vmatprep.subr.mxu0 0.0
          %397 = vmatpush1.msra.mxu0 0.0
          %398 = vmatprep.subr.mxu0 0.0
          %399 = vmatpush1.msra.mxu0 0.0
          %400 = vmatprep.subr.mxu0 0.0
          %401 = vmatpush1.msra.mxu0 0.0
          %402 = vmatprep.subr.mxu0 0.0
          %403 = vmatpush1.msra.mxu0 0.0
          %404 = vmatprep.subr.mxu0 0.0
          %405 = vmatpush1.msra.mxu0 0.0
          %406 = vmatprep.subr.mxu0 0.0
          %407 = vmatpush1.msra.mxu0 0.0
          %408 = vmatprep.subr.mxu0 0.0
          %409 = vmatpush1.msra.mxu0 0.0
          %410 = vmatprep.mubr.f32.mxu0 0.0
          %411 = vmatmul.mubr.f32.gmra.mrb[0].mxu0 %v273
          %v412 = vpop.f32.mrb[0].mxu0
          %v413 = vadd.f32 0.0, %v412
          %v414 = vpop.f32.mrb[0].mxu0
          %v415 = vadd.f32 0.0, %v414
          %416 = vdwg.mxu0
          %417 = vmatprep.subr.mxu0 %v244
          %418 = vmatpush1.msra.mxu0 %v243
          %419 = vmatprep.subr.mxu0 %v252
          %420 = vmatpush1.msra.mxu0 %v251
          %421 = vmatprep.subr.mxu0 %v260
          %422 = vmatpush1.msra.mxu0 %v259
          %423 = vmatprep.subr.mxu0 %v268
          %424 = vmatpush1.msra.mxu0 %v267
          %425 = vmatprep.subr.mxu0 0.0
          %426 = vmatpush1.msra.mxu0 0.0
          %427 = vmatprep.subr.mxu0 0.0
          %428 = vmatpush1.msra.mxu0 0.0
          %429 = vmatprep.subr.mxu0 0.0
          %430 = vmatpush1.msra.mxu0 0.0
          %431 = vmatprep.subr.mxu0 0.0
          %432 = vmatpush1.msra.mxu0 0.0
          %433 = vmatprep.subr.mxu0 0.0
          %434 = vmatpush1.msra.mxu0 0.0
          %435 = vmatprep.subr.mxu0 0.0
          %436 = vmatpush1.msra.mxu0 0.0
          %437 = vmatprep.subr.mxu0 0.0
          %438 = vmatpush1.msra.mxu0 0.0
          %439 = vmatprep.subr.mxu0 0.0
          %440 = vmatpush1.msra.mxu0 0.0
          %441 = vmatprep.subr.mxu0 0.0
          %442 = vmatpush1.msra.mxu0 0.0
          %443 = vmatprep.subr.mxu0 0.0
          %444 = vmatpush1.msra.mxu0 0.0
          %445 = vmatprep.subr.mxu0 0.0
          %446 = vmatpush1.msra.mxu0 0.0
          %447 = vmatprep.subr.mxu0 0.0
          %448 = vmatpush1.msra.mxu0 0.0
          %449 = vmatprep.subr.mxu0 0.0
          %450 = vmatpush1.msra.mxu0 0.0
          %451 = vmatprep.subr.mxu0 0.0
          %452 = vmatpush1.msra.mxu0 0.0
          %453 = vmatprep.subr.mxu0 0.0
          %454 = vmatpush1.msra.mxu0 0.0
          %455 = vmatprep.subr.mxu0 0.0
          %456 = vmatpush1.msra.mxu0 0.0
          %457 = vmatprep.subr.mxu0 0.0
          %458 = vmatpush1.msra.mxu0 0.0
          %459 = vmatprep.subr.mxu0 0.0
          %460 = vmatpush1.msra.mxu0 0.0
          %461 = vmatprep.subr.mxu0 0.0
          %462 = vmatpush1.msra.mxu0 0.0
          %463 = vmatprep.subr.mxu0 0.0
          %464 = vmatpush1.msra.mxu0 0.0
          %465 = vmatprep.subr.mxu0 0.0
          %466 = vmatpush1.msra.mxu0 0.0
          %467 = vmatprep.subr.mxu0 0.0
          %468 = vmatpush1.msra.mxu0 0.0
          %469 = vmatprep.subr.mxu0 0.0
          %470 = vmatpush1.msra.mxu0 0.0
          %471 = vmatprep.subr.mxu0 0.0
          %472 = vmatpush1.msra.mxu0 0.0
          %473 = vmatprep.subr.mxu0 0.0
          %474 = vmatpush1.msra.mxu0 0.0
          %475 = vmatprep.subr.mxu0 0.0
          %476 = vmatpush1.msra.mxu0 0.0
          %477 = vmatprep.subr.mxu0 0.0
          %478 = vmatpush1.msra.mxu0 0.0
          %479 = vmatprep.subr.mxu0 0.0
          %480 = vmatpush1.msra.mxu0 0.0
          %481 = vmatprep.mubr.f32.mxu0 0.0
          %482 = vmatmul.mubr.f32.gmra.mrb[0].mxu0 %v273
          %v483 = vpop.f32.mrb[0].mxu0
          %v484 = vadd.f32 0.0, %v483
          %v485 = vpop.f32.mrb[0].mxu0
          %v486 = vadd.f32 0.0, %v485
          %487 = vdwg.mxu0
          %488 = vmatprep.subr.mxu0 %v246
          %489 = vmatpush1.msra.mxu0 %v245
          %490 = vmatprep.subr.mxu0 %v254
          %491 = vmatpush1.msra.mxu0 %v253
          %492 = vmatprep.subr.mxu0 %v262
          %493 = vmatpush1.msra.mxu0 %v261
          %494 = vmatprep.subr.mxu0 %v270
          %495 = vmatpush1.msra.mxu0 %v269
          %496 = vmatprep.subr.mxu0 0.0
          %497 = vmatpush1.msra.mxu0 0.0
          %498 = vmatprep.subr.mxu0 0.0
          %499 = vmatpush1.msra.mxu0 0.0
          %500 = vmatprep.subr.mxu0 0.0
          %501 = vmatpush1.msra.mxu0 0.0
          %502 = vmatprep.subr.mxu0 0.0
          %503 = vmatpush1.msra.mxu0 0.0
          %504 = vmatprep.subr.mxu0 0.0
          %505 = vmatpush1.msra.mxu0 0.0
          %506 = vmatprep.subr.mxu0 0.0
          %507 = vmatpush1.msra.mxu0 0.0
          %508 = vmatprep.subr.mxu0 0.0
          %509 = vmatpush1.msra.mxu0 0.0
          %510 = vmatprep.subr.mxu0 0.0
          %511 = vmatpush1.msra.mxu0 0.0
          %512 = vmatprep.subr.mxu0 0.0
          %513 = vmatpush1.msra.mxu0 0.0
          %514 = vmatprep.subr.mxu0 0.0
          %515 = vmatpush1.msra.mxu0 0.0
          %516 = vmatprep.subr.mxu0 0.0
          %517 = vmatpush1.msra.mxu0 0.0
          %518 = vmatprep.subr.mxu0 0.0
          %519 = vmatpush1.msra.mxu0 0.0
          %520 = vmatprep.subr.mxu0 0.0
          %521 = vmatpush1.msra.mxu0 0.0
          %522 = vmatprep.subr.mxu0 0.0
          %523 = vmatpush1.msra.mxu0 0.0
          %524 = vmatprep.subr.mxu0 0.0
          %525 = vmatpush1.msra.mxu0 0.0
          %526 = vmatprep.subr.mxu0 0.0
          %527 = vmatpush1.msra.mxu0 0.0
          %528 = vmatprep.subr.mxu0 0.0
          %529 = vmatpush1.msra.mxu0 0.0
          %530 = vmatprep.subr.mxu0 0.0
          %531 = vmatpush1.msra.mxu0 0.0
          %532 = vmatprep.subr.mxu0 0.0
          %533 = vmatpush1.msra.mxu0 0.0
          %534 = vmatprep.subr.mxu0 0.0
          %535 = vmatpush1.msra.mxu0 0.0
          %536 = vmatprep.subr.mxu0 0.0
          %537 = vmatpush1.msra.mxu0 0.0
          %538 = vmatprep.subr.mxu0 0.0
          %539 = vmatpush1.msra.mxu0 0.0
          %540 = vmatprep.subr.mxu0 0.0
          %541 = vmatpush1.msra.mxu0 0.0
          %542 = vmatprep.subr.mxu0 0.0
          %543 = vmatpush1.msra.mxu0 0.0
          %544 = vmatprep.subr.mxu0 0.0
          %545 = vmatpush1.msra.mxu0 0.0
          %546 = vmatprep.subr.mxu0 0.0
          %547 = vmatpush1.msra.mxu0 0.0
          %548 = vmatprep.subr.mxu0 0.0
          %549 = vmatpush1.msra.mxu0 0.0
          %550 = vmatprep.subr.mxu0 0.0
          %551 = vmatpush1.msra.mxu0 0.0
          %552 = vmatprep.mubr.f32.mxu0 0.0
          %553 = vmatmul.mubr.f32.gmra.mrb[0].mxu0 %v273
          %v554 = vpop.f32.mrb[0].mxu0
          %v555 = vadd.f32 0.0, %v554
          %v556 = vpop.f32.mrb[0].mxu0
          %v557 = vadd.f32 0.0, %v556
          %558 = vdwg.mxu0
          %559 = vst [vmem:[#allocation2] sm:$0xff] %v342
          %560 = vst [vmem:[#allocation2 + $0x8] sm:$0xff] %v344
          %561 = vst [vmem:[#allocation2 + $0x10] sm:$0xff] %v413
          %562 = vst [vmem:[#allocation2 + $0x18] sm:$0xff] %v415
          %563 = vst [vmem:[#allocation3] sm:$0xff] %v484
          %564 = vst [vmem:[#allocation3 + $0x8] sm:$0xff] %v486
          %565 = vst [vmem:[#allocation3 + $0x10] sm:$0xff] %v555
          %566 = vst [vmem:[#allocation3 + $0x18] sm:$0xff] %v557
        $region44: #{tpu_custom_call.1} parent=39 // pred_fallthru
          _
        %s567 = smul.u32 %s24, 8
        %s568 = scalar_lea.vmem %s233, %s567
        %v569 = vld [vmem:[%s568] sm:$0xff]
        %v570 = vld [vmem:[%s1] sm:$0xff]
        %v571 = vld [vmem:[%s1 + $0x8] sm:$0xff]
        %v572 = vld [vmem:[%s1 + $0x10] sm:$0xff]
        %v573 = vld [vmem:[%s1 + $0x18] sm:$0xff]
        %v574 = vld [vmem:[%s1 + $0x20] sm:$0xff]
        %v575 = vld [vmem:[%s1 + $0x28] sm:$0xff]
        %v576 = vld [vmem:[%s1 + $0x30] sm:$0xff]
        %v577 = vld [vmem:[%s1 + $0x38] sm:$0xff]
        %v578 = vld [vmem:[%s1 + $0x40] sm:$0xff]
        %v579 = vld [vmem:[%s1 + $0x48] sm:$0xff]
        %v580 = vld [vmem:[%s1 + $0x50] sm:$0xff]
        %v581 = vld [vmem:[%s1 + $0x58] sm:$0xff]
        %v582 = vld [vmem:[%s1 + $0x60] sm:$0xff]
        %v583 = vld [vmem:[%s1 + $0x68] sm:$0xff]
        %v584 = vld [vmem:[%s1 + $0x70] sm:$0xff]
        %v585 = vld [vmem:[%s1 + $0x78] sm:$0xff]
        %vm586 = vcmask 261120
        %v588 = vsel %vm586, %v569, 0
        %590 = vmatprep.subr.mxu0 %v571
        %591 = vmatpush1.msra.mxu0 %v570
        %592 = vmatprep.subr.mxu0 %v575
        %593 = vmatpush1.msra.mxu0 %v574
        %594 = vmatprep.subr.mxu0 %v579
        %595 = vmatpush1.msra.mxu0 %v578
        %596 = vmatprep.subr.mxu0 %v583
        %597 = vmatpush1.msra.mxu0 %v582
        %598 = vmatprep.subr.mxu0 0.0
        %599 = vmatpush1.msra.mxu0 0.0
        %600 = vmatprep.subr.mxu0 0.0
        %601 = vmatpush1.msra.mxu0 0.0
        %602 = vmatprep.subr.mxu0 0.0
        %603 = vmatpush1.msra.mxu0 0.0
        %604 = vmatprep.subr.mxu0 0.0
        %605 = vmatpush1.msra.mxu0 0.0
        %606 = vmatprep.subr.mxu0 0.0
        %607 = vmatpush1.msra.mxu0 0.0
        %608 = vmatprep.subr.mxu0 0.0
        %609 = vmatpush1.msra.mxu0 0.0
        %610 = vmatprep.subr.mxu0 0.0
        %611 = vmatpush1.msra.mxu0 0.0
        %612 = vmatprep.subr.mxu0 0.0
        %613 = vmatpush1.msra.mxu0 0.0
        %614 = vmatprep.subr.mxu0 0.0
        %615 = vmatpush1.msra.mxu0 0.0
        %616 = vmatprep.subr.mxu0 0.0
        %617 = vmatpush1.msra.mxu0 0.0
        %618 = vmatprep.subr.mxu0 0.0
        %619 = vmatpush1.msra.mxu0 0.0
        %620 = vmatprep.subr.mxu0 0.0
        %621 = vmatpush1.msra.mxu0 0.0
        %622 = vmatprep.subr.mxu0 0.0
        %623 = vmatpush1.msra.mxu0 0.0
        %624 = vmatprep.subr.mxu0 0.0
        %625 = vmatpush1.msra.mxu0 0.0
        %626 = vmatprep.subr.mxu0 0.0
        %627 = vmatpush1.msra.mxu0 0.0
        %628 = vmatprep.subr.mxu0 0.0
        %629 = vmatpush1.msra.mxu0 0.0
        %630 = vmatprep.subr.mxu0 0.0
        %631 = vmatpush1.msra.mxu0 0.0
        %632 = vmatprep.subr.mxu0 0.0
        %633 = vmatpush1.msra.mxu0 0.0
        %634 = vmatprep.subr.mxu0 0.0
        %635 = vmatpush1.msra.mxu0 0.0
        %636 = vmatprep.subr.mxu0 0.0
        %637 = vmatpush1.msra.mxu0 0.0
        %638 = vmatprep.subr.mxu0 0.0
        %639 = vmatpush1.msra.mxu0 0.0
        %640 = vmatprep.subr.mxu0 0.0
        %641 = vmatpush1.msra.mxu0 0.0
        %642 = vmatprep.subr.mxu0 0.0
        %643 = vmatpush1.msra.mxu0 0.0
        %644 = vmatprep.subr.mxu0 0.0
        %645 = vmatpush1.msra.mxu0 0.0
        %646 = vmatprep.subr.mxu0 0.0
        %647 = vmatpush1.msra.mxu0 0.0
        %648 = vmatprep.subr.mxu0 0.0
        %649 = vmatpush1.msra.mxu0 0.0
        %650 = vmatprep.subr.mxu0 0.0
        %651 = vmatpush1.msra.mxu0 0.0
        %652 = vmatprep.subr.mxu0 0.0
        %653 = vmatpush1.msra.mxu0 0.0
        %654 = vmatprep.mubr.f32.mxu0 0.0
        %655 = vmatmul.mubr.f32.gmra.mrb[0].mxu0 %v588
        %v656 = vpop.f32.mrb[0].mxu0
        %v657 = vadd.f32 0.0, %v656
        %v658 = vpop.f32.mrb[0].mxu0
        %v659 = vadd.f32 0.0, %v658
        %660 = vdwg.mxu0
        %661 = vmatprep.subr.mxu0 %v573
        %662 = vmatpush1.msra.mxu0 %v572
        %663 = vmatprep.subr.mxu0 %v577
        %664 = vmatpush1.msra.mxu0 %v576
        %665 = vmatprep.subr.mxu0 %v581
        %666 = vmatpush1.msra.mxu0 %v580
        %667 = vmatprep.subr.mxu0 %v585
        %668 = vmatpush1.msra.mxu0 %v584
        %669 = vmatprep.subr.mxu0 0.0
        %670 = vmatpush1.msra.mxu0 0.0
        %671 = vmatprep.subr.mxu0 0.0
        %672 = vmatpush1.msra.mxu0 0.0
        %673 = vmatprep.subr.mxu0 0.0
        %674 = vmatpush1.msra.mxu0 0.0
        %675 = vmatprep.subr.mxu0 0.0
        %676 = vmatpush1.msra.mxu0 0.0
        %677 = vmatprep.subr.mxu0 0.0
        %678 = vmatpush1.msra.mxu0 0.0
        %679 = vmatprep.subr.mxu0 0.0
        %680 = vmatpush1.msra.mxu0 0.0
        %681 = vmatprep.subr.mxu0 0.0
        %682 = vmatpush1.msra.mxu0 0.0
        %683 = vmatprep.subr.mxu0 0.0
        %684 = vmatpush1.msra.mxu0 0.0
        %685 = vmatprep.subr.mxu0 0.0
        %686 = vmatpush1.msra.mxu0 0.0
        %687 = vmatprep.subr.mxu0 0.0
        %688 = vmatpush1.msra.mxu0 0.0
        %689 = vmatprep.subr.mxu0 0.0
        %690 = vmatpush1.msra.mxu0 0.0
        %691 = vmatprep.subr.mxu0 0.0
        %692 = vmatpush1.msra.mxu0 0.0
        %693 = vmatprep.subr.mxu0 0.0
        %694 = vmatpush1.msra.mxu0 0.0
        %695 = vmatprep.subr.mxu0 0.0
        %696 = vmatpush1.msra.mxu0 0.0
        %697 = vmatprep.subr.mxu0 0.0
        %698 = vmatpush1.msra.mxu0 0.0
        %699 = vmatprep.subr.mxu0 0.0
        %700 = vmatpush1.msra.mxu0 0.0
        %701 = vmatprep.subr.mxu0 0.0
        %702 = vmatpush1.msra.mxu0 0.0
        %703 = vmatprep.subr.mxu0 0.0
        %704 = vmatpush1.msra.mxu0 0.0
        %705 = vmatprep.subr.mxu0 0.0
        %706 = vmatpush1.msra.mxu0 0.0
        %707 = vmatprep.subr.mxu0 0.0
        %708 = vmatpush1.msra.mxu0 0.0
        %709 = vmatprep.subr.mxu0 0.0
        %710 = vmatpush1.msra.mxu0 0.0
        %711 = vmatprep.subr.mxu0 0.0
        %712 = vmatpush1.msra.mxu0 0.0
        %713 = vmatprep.subr.mxu0 0.0
        %714 = vmatpush1.msra.mxu0 0.0
        %715 = vmatprep.subr.mxu0 0.0
        %716 = vmatpush1.msra.mxu0 0.0
        %717 = vmatprep.subr.mxu0 0.0
        %718 = vmatpush1.msra.mxu0 0.0
        %719 = vmatprep.subr.mxu0 0.0
        %720 = vmatpush1.msra.mxu0 0.0
        %721 = vmatprep.subr.mxu0 0.0
        %722 = vmatpush1.msra.mxu0 0.0
        %723 = vmatprep.subr.mxu0 0.0
        %724 = vmatpush1.msra.mxu0 0.0
        %725 = vmatprep.mubr.f32.mxu0 0.0
        %726 = vmatmul.mubr.f32.gmra.mrb[0].mxu0 %v588
        %v727 = vpop.f32.mrb[0].mxu0
        %v728 = vadd.f32 0.0, %v727
        %v729 = vpop.f32.mrb[0].mxu0
        %v730 = vadd.f32 0.0, %v729
        %731 = vdwg.mxu0
        %v732 = vlaneseq
        %v733 = vshrl.u32 %v732, 7
        %v734 = vlaneseq
        %v735 = vand.u32 %v734, 127
        %vm736 = vcmp.le.s32.totalorder %v735, %v733
        // While loop
        $region45: #{tpu_custom_call.1} parent=39 // loop_pre_header
          _
        $region46: #{tpu_custom_call.1} parent=39 // loop_header
          %s738 = sphi 0, %s740
          %p739 = scmp.ge.s32.totalorder %s738, %s24
          %v743 = vphi -inf, %v830
          %v744 = vphi 0.0, %v841
          %v745 = vphi 0.0, %v916
        $region47: #{tpu_custom_call.1} parent=39 // loop_header_branch
          %742 = sbr.rel (%p739) target = $region51
        $region48: #{tpu_custom_call.1} parent=39 // loop_body
          %s746 = smul.u32 %s738, 8
          %s747 = sshra.s32 %s746, 3
          %s748 = sand.u32 %s746, 7
          %s749 = smul.u32 %s747, 4
          %s750 = smul.addr %s749, 8
          %s751 = scalar_lea.vmem [#allocation2], %s750
          %v752 = vld [vmem:[%s751] sm:$0xff]
          %s753 = smul.addr %s749, 8
          %s754 = scalar_lea.vmem [#allocation3], %s753
          %v755 = vld [vmem:[%s754] sm:$0xff]
          %756 = vmatprep.subr.mxu0 0.0
          %757 = vmatpush1.xpose.msra.mxu0 %v752
          %758 = vmatprep.subr.mxu0 0.0
          %759 = vmatpush1.xpose.msra.mxu0 0.0
          %760 = vmatprep.subr.mxu0 0.0
          %761 = vmatpush1.xpose.msra.mxu0 0.0
          %762 = vmatprep.subr.mxu0 0.0
          %763 = vmatpush1.xpose.msra.mxu0 0.0
          %764 = vmatprep.subr.mxu0 0.0
          %765 = vmatpush1.xpose.msra.mxu0 0.0
          %766 = vmatprep.subr.mxu0 0.0
          %767 = vmatpush1.xpose.msra.mxu0 0.0
          %768 = vmatprep.subr.mxu0 0.0
          %769 = vmatpush1.xpose.msra.mxu0 0.0
          %770 = vmatprep.subr.mxu0 0.0
          %771 = vmatpush1.xpose.msra.mxu0 0.0
          %772 = vmatprep.subr.mxu0 0.0
          %773 = vmatpush1.xpose.msra.mxu0 0.0
          %774 = vmatprep.subr.mxu0 0.0
          %775 = vmatpush1.xpose.msra.mxu0 0.0
          %776 = vmatprep.subr.mxu0 0.0
          %777 = vmatpush1.xpose.msra.mxu0 0.0
          %778 = vmatprep.subr.mxu0 0.0
          %779 = vmatpush1.xpose.msra.mxu0 0.0
          %780 = vmatprep.subr.mxu0 0.0
          %781 = vmatpush1.xpose.msra.mxu0 0.0
          %782 = vmatprep.subr.mxu0 0.0
          %783 = vmatpush1.xpose.msra.mxu0 0.0
          %784 = vmatprep.subr.mxu0 0.0
          %785 = vmatpush1.xpose.msra.mxu0 0.0
          %786 = vmatprep.subr.mxu0 0.0
          %787 = vmatpush1.xpose.msra.mxu0 0.0
          %788 = vmatprep.subr.mxu0 0.0
          %789 = vmatpush1.xpose.msra.mxu0 0.0
          %790 = vmatprep.subr.mxu0 0.0
          %791 = vmatpush1.xpose.msra.mxu0 0.0
          %792 = vmatprep.subr.mxu0 0.0
          %793 = vmatpush1.xpose.msra.mxu0 0.0
          %794 = vmatprep.subr.mxu0 0.0
          %795 = vmatpush1.xpose.msra.mxu0 0.0
          %796 = vmatprep.subr.mxu0 0.0
          %797 = vmatpush1.xpose.msra.mxu0 0.0
          %798 = vmatprep.subr.mxu0 0.0
          %799 = vmatpush1.xpose.msra.mxu0 0.0
          %800 = vmatprep.subr.mxu0 0.0
          %801 = vmatpush1.xpose.msra.mxu0 0.0
          %802 = vmatprep.subr.mxu0 0.0
          %803 = vmatpush1.xpose.msra.mxu0 0.0
          %804 = vmatprep.subr.mxu0 0.0
          %805 = vmatpush1.xpose.msra.mxu0 0.0
          %806 = vmatprep.subr.mxu0 0.0
          %807 = vmatpush1.xpose.msra.mxu0 0.0
          %808 = vmatprep.subr.mxu0 0.0
          %809 = vmatpush1.xpose.msra.mxu0 0.0
          %810 = vmatprep.subr.mxu0 0.0
          %811 = vmatpush1.xpose.msra.mxu0 0.0
          %812 = vmatprep.subr.mxu0 0.0
          %813 = vmatpush1.xpose.msra.mxu0 0.0
          %814 = vmatprep.subr.mxu0 0.0
          %815 = vmatpush1.xpose.msra.mxu0 0.0
          %816 = vmatprep.subr.mxu0 0.0
          %817 = vmatpush1.xpose.msra.mxu0 0.0
          %818 = vmatprep.subr.mxu0 0.0
          %819 = vmatpush1.xpose.msra.mxu0 0.0
          %820 = vmatprep.mubr.f32.mxu0 0.0
          %821 = vmatmul.mubr.f32.gmra.mrb[0].mxu0 %v657
          %v822 = vpop.f32.mrb[0].mxu0
          %v823 = vadd.f32 0.0, %v822
          %v824 = vpop.f32.mrb[0].mxu0
          %825 = vdwg.mxu0
          %vm826 = vcmask 64512
          %v827 = vsel %vm826, %v823, -inf
          %828 = vmax.xlane.f32.xlu0 %v827
          %v829 = vpop.xlane.xlu0 %828
          %v830 = vmax.f32 %v743, %v829
          %v831 = vsub.f32 %v743, %v830
          %v832 = vmul.f32 %v831, 1.442695
          %v833 = vpow.pop %v832
          %v834 = vsub.f32 %v823, %v830
          %v835 = vmul.f32 %v834, 1.442695
          %v836 = vpow.pop %v835
          %v837 = vmul.f32 %v833, %v744
          %v838 = vsel %vm826, %v836, 0.0
          %839 = vadd.xlane.f32.xlu0 %v838
          %v840 = vpop.xlane.xlu0 %839
          %v841 = vadd.f32 %v837, %v840
          %v842 = vmul.f32 %v833, %v745
          %v844 = vsel %vm826, %v836, 0
          %846 = vmatprep.subr.mxu0 0.0
          %847 = vmatpush1.msra.mxu0 %v755
          %848 = vmatprep.subr.mxu0 0.0
          %849 = vmatpush1.msra.mxu0 0.0
          %850 = vmatprep.subr.mxu0 0.0
          %851 = vmatpush1.msra.mxu0 0.0
          %852 = vmatprep.subr.mxu0 0.0
          %853 = vmatpush1.msra.mxu0 0.0
          %854 = vmatprep.subr.mxu0 0.0
          %855 = vmatpush1.msra.mxu0 0.0
          %856 = vmatprep.subr.mxu0 0.0
          %857 = vmatpush1.msra.mxu0 0.0
          %858 = vmatprep.subr.mxu0 0.0
          %859 = vmatpush1.msra.mxu0 0.0
          %860 = vmatprep.subr.mxu0 0.0
          %861 = vmatpush1.msra.mxu0 0.0
          %862 = vmatprep.subr.mxu0 0.0
          %863 = vmatpush1.msra.mxu0 0.0
          %864 = vmatprep.subr.mxu0 0.0
          %865 = vmatpush1.msra.mxu0 0.0
          %866 = vmatprep.subr.mxu0 0.0
          %867 = vmatpush1.msra.mxu0 0.0
          %868 = vmatprep.subr.mxu0 0.0
          %869 = vmatpush1.msra.mxu0 0.0
          %870 = vmatprep.subr.mxu0 0.0
          %871 = vmatpush1.msra.mxu0 0.0
          %872 = vmatprep.subr.mxu0 0.0
          %873 = vmatpush1.msra.mxu0 0.0
          %874 = vmatprep.subr.mxu0 0.0
          %875 = vmatpush1.msra.mxu0 0.0
          %876 = vmatprep.subr.mxu0 0.0
          %877 = vmatpush1.msra.mxu0 0.0
          %878 = vmatprep.subr.mxu0 0.0
          %879 = vmatpush1.msra.mxu0 0.0
          %880 = vmatprep.subr.mxu0 0.0
          %881 = vmatpush1.msra.mxu0 0.0
          %882 = vmatprep.subr.mxu0 0.0
          %883 = vmatpush1.msra.mxu0 0.0
          %884 = vmatprep.subr.mxu0 0.0
          %885 = vmatpush1.msra.mxu0 0.0
          %886 = vmatprep.subr.mxu0 0.0
          %887 = vmatpush1.msra.mxu0 0.0
          %888 = vmatprep.subr.mxu0 0.0
          %889 = vmatpush1.msra.mxu0 0.0
          %890 = vmatprep.subr.mxu0 0.0
          %891 = vmatpush1.msra.mxu0 0.0
          %892 = vmatprep.subr.mxu0 0.0
          %893 = vmatpush1.msra.mxu0 0.0
          %894 = vmatprep.subr.mxu0 0.0
          %895 = vmatpush1.msra.mxu0 0.0
          %896 = vmatprep.subr.mxu0 0.0
          %897 = vmatpush1.msra.mxu0 0.0
          %898 = vmatprep.subr.mxu0 0.0
          %899 = vmatpush1.msra.mxu0 0.0
          %900 = vmatprep.subr.mxu0 0.0
          %901 = vmatpush1.msra.mxu0 0.0
          %902 = vmatprep.subr.mxu0 0.0
          %903 = vmatpush1.msra.mxu0 0.0
          %904 = vmatprep.subr.mxu0 0.0
          %905 = vmatpush1.msra.mxu0 0.0
          %906 = vmatprep.subr.mxu0 0.0
          %907 = vmatpush1.msra.mxu0 0.0
          %908 = vmatprep.subr.mxu0 0.0
          %909 = vmatpush1.msra.mxu0 0.0
          %910 = vmatprep.mubr.f32.mxu0 0.0
          %911 = vmatmul.mubr.f32.gmra.mrb[0].mxu0 %v844
          %v912 = vpop.f32.mrb[0].mxu0
          %v913 = vadd.f32 0.0, %v912
          %v914 = vpop.f32.mrb[0].mxu0
          %915 = vdwg.mxu0
          %v916 = vadd.f32 %v842, %v913
        $region49: #{tpu_custom_call.1} parent=39 // loop_footer
          %s740 = sadd.s32 %s738, 1
        $region50: #{tpu_custom_call.1} parent=39 // loop_footer_branch
          %737 = sbr.rel target = $region46
        $region51: #{tpu_custom_call.1} parent=39 // loop_exit
          _
        %s917 = sshra.s32 %s567, 3
        %s918 = sand.u32 %s567, 7
        %s919 = smul.u32 %s917, 4
        %s920 = smul.addr %s919, 8
        %s921 = scalar_lea.vmem [#allocation2], %s920
        %v922 = vld [vmem:[%s921] sm:$0xff]
        %s923 = smul.addr %s919, 8
        %s924 = scalar_lea.vmem [#allocation3], %s923
        %v925 = vld [vmem:[%s924] sm:$0xff]
        %926 = vmatprep.subr.mxu0 0.0
        %927 = vmatpush1.xpose.msra.mxu0 %v922
        %928 = vmatprep.subr.mxu0 0.0
        %929 = vmatpush1.xpose.msra.mxu0 0.0
        %930 = vmatprep.subr.mxu0 0.0
        %931 = vmatpush1.xpose.msra.mxu0 0.0
        %932 = vmatprep.subr.mxu0 0.0
        %933 = vmatpush1.xpose.msra.mxu0 0.0
        %934 = vmatprep.subr.mxu0 0.0
        %935 = vmatpush1.xpose.msra.mxu0 0.0
        %936 = vmatprep.subr.mxu0 0.0
        %937 = vmatpush1.xpose.msra.mxu0 0.0
        %938 = vmatprep.subr.mxu0 0.0
        %939 = vmatpush1.xpose.msra.mxu0 0.0
        %940 = vmatprep.subr.mxu0 0.0
        %941 = vmatpush1.xpose.msra.mxu0 0.0
        %942 = vmatprep.subr.mxu0 0.0
        %943 = vmatpush1.xpose.msra.mxu0 0.0
        %944 = vmatprep.subr.mxu0 0.0
        %945 = vmatpush1.xpose.msra.mxu0 0.0
        %946 = vmatprep.subr.mxu0 0.0
        %947 = vmatpush1.xpose.msra.mxu0 0.0
        %948 = vmatprep.subr.mxu0 0.0
        %949 = vmatpush1.xpose.msra.mxu0 0.0
        %950 = vmatprep.subr.mxu0 0.0
        %951 = vmatpush1.xpose.msra.mxu0 0.0
        %952 = vmatprep.subr.mxu0 0.0
        %953 = vmatpush1.xpose.msra.mxu0 0.0
        %954 = vmatprep.subr.mxu0 0.0
        %955 = vmatpush1.xpose.msra.mxu0 0.0
        %956 = vmatprep.subr.mxu0 0.0
        %957 = vmatpush1.xpose.msra.mxu0 0.0
        %958 = vmatprep.subr.mxu0 0.0
        %959 = vmatpush1.xpose.msra.mxu0 0.0
        %960 = vmatprep.subr.mxu0 0.0
        %961 = vmatpush1.xpose.msra.mxu0 0.0
        %962 = vmatprep.subr.mxu0 0.0
        %963 = vmatpush1.xpose.msra.mxu0 0.0
        %964 = vmatprep.subr.mxu0 0.0
        %965 = vmatpush1.xpose.msra.mxu0 0.0
        %966 = vmatprep.subr.mxu0 0.0
        %967 = vmatpush1.xpose.msra.mxu0 0.0
        %968 = vmatprep.subr.mxu0 0.0
        %969 = vmatpush1.xpose.msra.mxu0 0.0
        %970 = vmatprep.subr.mxu0 0.0
        %971 = vmatpush1.xpose.msra.mxu0 0.0
        %972 = vmatprep.subr.mxu0 0.0
        %973 = vmatpush1.xpose.msra.mxu0 0.0
        %974 = vmatprep.subr.mxu0 0.0
        %975 = vmatpush1.xpose.msra.mxu0 0.0
        %976 = vmatprep.subr.mxu0 0.0
        %977 = vmatpush1.xpose.msra.mxu0 0.0
        %978 = vmatprep.subr.mxu0 0.0
        %979 = vmatpush1.xpose.msra.mxu0 0.0
        %980 = vmatprep.subr.mxu0 0.0
        %981 = vmatpush1.xpose.msra.mxu0 0.0
        %982 = vmatprep.subr.mxu0 0.0
        %983 = vmatpush1.xpose.msra.mxu0 0.0
        %984 = vmatprep.subr.mxu0 0.0
        %985 = vmatpush1.xpose.msra.mxu0 0.0
        %986 = vmatprep.subr.mxu0 0.0
        %987 = vmatpush1.xpose.msra.mxu0 0.0
        %988 = vmatprep.subr.mxu0 0.0
        %989 = vmatpush1.xpose.msra.mxu0 0.0
        %990 = vmatprep.mubr.f32.mxu0 0.0
        %991 = vmatmul.mubr.f32.gmra.mrb[0].mxu0 %v657
        %v992 = vpop.f32.mrb[0].mxu0
        %v993 = vadd.f32 0.0, %v992
        %v994 = vpop.f32.mrb[0].mxu0
        %995 = vdwg.mxu0
        %v996 = vsel %vm736, %v993, -inf
        %vm997 = vcmask 64512
        %v998 = vsel %vm997, %v996, -inf
        %999 = vmax.xlane.f32.xlu0 %v998
        %v1000 = vpop.xlane.xlu0 %999
        %v1001 = vmax.f32 %v743, %v1000
        %v1002 = vsub.f32 %v743, %v1001
        %v1003 = vmul.f32 %v1002, 1.442695
        %v1004 = vpow.pop %v1003
        %v1005 = vsub.f32 %v996, %v1001
        %v1006 = vmul.f32 %v1005, 1.442695
        %v1007 = vpow.pop %v1006
        %v1008 = vmul.f32 %v1004, %v744
        %v1009 = vsel %vm997, %v1007, 0.0
        %1010 = vadd.xlane.f32.xlu0 %v1009
        %v1011 = vpop.xlane.xlu0 %1010
        %v1012 = vadd.f32 %v1008, %v1011
        %v1013 = vmul.f32 %v1004, %v745
        %v1015 = vsel %vm997, %v1007, 0
        %1017 = vmatprep.subr.mxu0 0.0
        %1018 = vmatpush1.msra.mxu0 %v925
        %1019 = vmatprep.subr.mxu0 0.0
        %1020 = vmatpush1.msra.mxu0 0.0
        %1021 = vmatprep.subr.mxu0 0.0
        %1022 = vmatpush1.msra.mxu0 0.0
        %1023 = vmatprep.subr.mxu0 0.0
        %1024 = vmatpush1.msra.mxu0 0.0
        %1025 = vmatprep.subr.mxu0 0.0
        %1026 = vmatpush1.msra.mxu0 0.0
        %1027 = vmatprep.subr.mxu0 0.0
        %1028 = vmatpush1.msra.mxu0 0.0
        %1029 = vmatprep.subr.mxu0 0.0
        %1030 = vmatpush1.msra.mxu0 0.0
        %1031 = vmatprep.subr.mxu0 0.0
        %1032 = vmatpush1.msra.mxu0 0.0
        %1033 = vmatprep.subr.mxu0 0.0
        %1034 = vmatpush1.msra.mxu0 0.0
        %1035 = vmatprep.subr.mxu0 0.0
        %1036 = vmatpush1.msra.mxu0 0.0
        %1037 = vmatprep.subr.mxu0 0.0
        %1038 = vmatpush1.msra.mxu0 0.0
        %1039 = vmatprep.subr.mxu0 0.0
        %1040 = vmatpush1.msra.mxu0 0.0
        %1041 = vmatprep.subr.mxu0 0.0
        %1042 = vmatpush1.msra.mxu0 0.0
        %1043 = vmatprep.subr.mxu0 0.0
        %1044 = vmatpush1.msra.mxu0 0.0
        %1045 = vmatprep.subr.mxu0 0.0
        %1046 = vmatpush1.msra.mxu0 0.0
        %1047 = vmatprep.subr.mxu0 0.0
        %1048 = vmatpush1.msra.mxu0 0.0
        %1049 = vmatprep.subr.mxu0 0.0
        %1050 = vmatpush1.msra.mxu0 0.0
        %1051 = vmatprep.subr.mxu0 0.0
        %1052 = vmatpush1.msra.mxu0 0.0
        %1053 = vmatprep.subr.mxu0 0.0
        %1054 = vmatpush1.msra.mxu0 0.0
        %1055 = vmatprep.subr.mxu0 0.0
        %1056 = vmatpush1.msra.mxu0 0.0
        %1057 = vmatprep.subr.mxu0 0.0
        %1058 = vmatpush1.msra.mxu0 0.0
        %1059 = vmatprep.subr.mxu0 0.0
        %1060 = vmatpush1.msra.mxu0 0.0
        %1061 = vmatprep.subr.mxu0 0.0
        %1062 = vmatpush1.msra.mxu0 0.0
        %1063 = vmatprep.subr.mxu0 0.0
        %1064 = vmatpush1.msra.mxu0 0.0
        %1065 = vmatprep.subr.mxu0 0.0
        %1066 = vmatpush1.msra.mxu0 0.0
        %1067 = vmatprep.subr.mxu0 0.0
        %1068 = vmatpush1.msra.mxu0 0.0
        %1069 = vmatprep.subr.mxu0 0.0
        %1070 = vmatpush1.msra.mxu0 0.0
        %1071 = vmatprep.subr.mxu0 0.0
        %1072 = vmatpush1.msra.mxu0 0.0
        %1073 = vmatprep.subr.mxu0 0.0
        %1074 = vmatpush1.msra.mxu0 0.0
        %1075 = vmatprep.subr.mxu0 0.0
        %1076 = vmatpush1.msra.mxu0 0.0
        %1077 = vmatprep.subr.mxu0 0.0
        %1078 = vmatpush1.msra.mxu0 0.0
        %1079 = vmatprep.subr.mxu0 0.0
        %1080 = vmatpush1.msra.mxu0 0.0
        %1081 = vmatprep.mubr.f32.mxu0 0.0
        %1082 = vmatmul.mubr.f32.gmra.mrb[0].mxu0 %v1015
        %v1083 = vpop.f32.mrb[0].mxu0
        %v1084 = vadd.f32 0.0, %v1083
        %v1085 = vpop.f32.mrb[0].mxu0
        %1086 = vdwg.mxu0
        %v1087 = vadd.f32 %v1013, %v1084
        %v1088 = vrcp.pop %v1012
        %v1089 = vmul.f32 %v1087, %v1088
        %v1090 = vld [vmem:[%s3] sm:$0xff]
        %v1091 = vld [vmem:[%s3 + $0x8] sm:$0xff]
        %v1092 = vld [vmem:[%s3 + $0x10] sm:$0xff]
        %v1093 = vld [vmem:[%s3 + $0x18] sm:$0xff]
        %v1094 = vld [vmem:[%s3 + $0x20] sm:$0xff]
        %v1095 = vld [vmem:[%s3 + $0x28] sm:$0xff]
        %v1096 = vld [vmem:[%s3 + $0x30] sm:$0xff]
        %v1097 = vld [vmem:[%s3 + $0x38] sm:$0xff]
        %v1098 = vld [vmem:[%s3 + $0x40] sm:$0xff]
        %v1099 = vld [vmem:[%s3 + $0x48] sm:$0xff]
        %v1100 = vld [vmem:[%s3 + $0x50] sm:$0xff]
        %v1101 = vld [vmem:[%s3 + $0x58] sm:$0xff]
        %v1102 = vld [vmem:[%s3 + $0x60] sm:$0xff]
        %v1103 = vld [vmem:[%s3 + $0x68] sm:$0xff]
        %v1104 = vld [vmem:[%s3 + $0x70] sm:$0xff]
        %v1105 = vld [vmem:[%s3 + $0x78] sm:$0xff]
        // While loop
        $region52: #{tpu_custom_call.1} parent=39 // loop_pre_header
          _
        $region53: #{tpu_custom_call.1} parent=39 // loop_header
          %s1107 = sphi 0, %s1109
          %p1108 = scmp.ge.s32.totalorder %s1107, %s24
          %v1112 = vphi -inf, %v1198
          %v1113 = vphi 0.0, %v1209
          %v1114 = vphi 0.0, %v1284
        $region54: #{tpu_custom_call.1} parent=39 // loop_header_branch
          %1111 = sbr.rel (%p1108) target = $region58
        $region55: #{tpu_custom_call.1} parent=39 // loop_body
          %s1115 = smul.u32 %s1107, 8
          %s1116 = sshra.s32 %s1115, 3
          %s1117 = sand.u32 %s1115, 7
          %s1118 = smul.u32 %s1116, 4
          %s1119 = smul.addr %s1118, 8
          %s1120 = scalar_lea.vmem [#allocation2], %s1119
          %v1121 = vld [vmem:[%s1120 + $0x8] sm:$0xff]
          %s1122 = smul.addr %s1118, 8
          %s1123 = scalar_lea.vmem [#allocation3], %s1122
          %v1124 = vld [vmem:[%s1123 + $0x8] sm:$0xff]
          %1125 = vmatprep.subr.mxu0 0.0
          %1126 = vmatpush1.xpose.msra.mxu0 %v1121
          %1127 = vmatprep.subr.mxu0 0.0
          %1128 = vmatpush1.xpose.msra.mxu0 0.0
          %1129 = vmatprep.subr.mxu0 0.0
          %1130 = vmatpush1.xpose.msra.mxu0 0.0
          %1131 = vmatprep.subr.mxu0 0.0
          %1132 = vmatpush1.xpose.msra.mxu0 0.0
          %1133 = vmatprep.subr.mxu0 0.0
          %1134 = vmatpush1.xpose.msra.mxu0 0.0
          %1135 = vmatprep.subr.mxu0 0.0
          %1136 = vmatpush1.xpose.msra.mxu0 0.0
          %1137 = vmatprep.subr.mxu0 0.0
          %1138 = vmatpush1.xpose.msra.mxu0 0.0
          %1139 = vmatprep.subr.mxu0 0.0
          %1140 = vmatpush1.xpose.msra.mxu0 0.0
          %1141 = vmatprep.subr.mxu0 0.0
          %1142 = vmatpush1.xpose.msra.mxu0 0.0
          %1143 = vmatprep.subr.mxu0 0.0
          %1144 = vmatpush1.xpose.msra.mxu0 0.0
          %1145 = vmatprep.subr.mxu0 0.0
          %1146 = vmatpush1.xpose.msra.mxu0 0.0
          %1147 = vmatprep.subr.mxu0 0.0
          %1148 = vmatpush1.xpose.msra.mxu0 0.0
          %1149 = vmatprep.subr.mxu0 0.0
          %1150 = vmatpush1.xpose.msra.mxu0 0.0
          %1151 = vmatprep.subr.mxu0 0.0
          %1152 = vmatpush1.xpose.msra.mxu0 0.0
          %1153 = vmatprep.subr.mxu0 0.0
          %1154 = vmatpush1.xpose.msra.mxu0 0.0
          %1155 = vmatprep.subr.mxu0 0.0
          %1156 = vmatpush1.xpose.msra.mxu0 0.0
          %1157 = vmatprep.subr.mxu0 0.0
          %1158 = vmatpush1.xpose.msra.mxu0 0.0
          %1159 = vmatprep.subr.mxu0 0.0
          %1160 = vmatpush1.xpose.msra.mxu0 0.0
          %1161 = vmatprep.subr.mxu0 0.0
          %1162 = vmatpush1.xpose.msra.mxu0 0.0
          %1163 = vmatprep.subr.mxu0 0.0
          %1164 = vmatpush1.xpose.msra.mxu0 0.0
          %1165 = vmatprep.subr.mxu0 0.0
          %1166 = vmatpush1.xpose.msra.mxu0 0.0
          %1167 = vmatprep.subr.mxu0 0.0
          %1168 = vmatpush1.xpose.msra.mxu0 0.0
          %1169 = vmatprep.subr.mxu0 0.0
          %1170 = vmatpush1.xpose.msra.mxu0 0.0
          %1171 = vmatprep.subr.mxu0 0.0
          %1172 = vmatpush1.xpose.msra.mxu0 0.0
          %1173 = vmatprep.subr.mxu0 0.0
          %1174 = vmatpush1.xpose.msra.mxu0 0.0
          %1175 = vmatprep.subr.mxu0 0.0
          %1176 = vmatpush1.xpose.msra.mxu0 0.0
          %1177 = vmatprep.subr.mxu0 0.0
          %1178 = vmatpush1.xpose.msra.mxu0 0.0
          %1179 = vmatprep.subr.mxu0 0.0
          %1180 = vmatpush1.xpose.msra.mxu0 0.0
          %1181 = vmatprep.subr.mxu0 0.0
          %1182 = vmatpush1.xpose.msra.mxu0 0.0
          %1183 = vmatprep.subr.mxu0 0.0
          %1184 = vmatpush1.xpose.msra.mxu0 0.0
          %1185 = vmatprep.subr.mxu0 0.0
          %1186 = vmatpush1.xpose.msra.mxu0 0.0
          %1187 = vmatprep.subr.mxu0 0.0
          %1188 = vmatpush1.xpose.msra.mxu0 0.0
          %1189 = vmatprep.mubr.f32.mxu0 0.0
          %1190 = vmatmul.mubr.f32.gmra.mrb[0].mxu0 %v659
          %v1191 = vpop.f32.mrb[0].mxu0
          %v1192 = vadd.f32 0.0, %v1191
          %v1193 = vpop.f32.mrb[0].mxu0
          %1194 = vdwg.mxu0
          %v1195 = vsel %vm997, %v1192, -inf
          %1196 = vmax.xlane.f32.xlu0 %v1195
          %v1197 = vpop.xlane.xlu0 %1196
          %v1198 = vmax.f32 %v1112, %v1197
          %v1199 = vsub.f32 %v1112, %v1198
          %v1200 = vmul.f32 %v1199, 1.442695
          %v1201 = vpow.pop %v1200
          %v1202 = vsub.f32 %v1192, %v1198
          %v1203 = vmul.f32 %v1202, 1.442695
          %v1204 = vpow.pop %v1203
          %v1205 = vmul.f32 %v1201, %v1113
          %v1206 = vsel %vm997, %v1204, 0.0
          %1207 = vadd.xlane.f32.xlu0 %v1206
          %v1208 = vpop.xlane.xlu0 %1207
          %v1209 = vadd.f32 %v1205, %v1208
          %v1210 = vmul.f32 %v1201, %v1114
          %v1212 = vsel %vm997, %v1204, 0
          %1214 = vmatprep.subr.mxu0 0.0
          %1215 = vmatpush1.msra.mxu0 %v1124
          %1216 = vmatprep.subr.mxu0 0.0
          %1217 = vmatpush1.msra.mxu0 0.0
          %1218 = vmatprep.subr.mxu0 0.0
          %1219 = vmatpush1.msra.mxu0 0.0
          %1220 = vmatprep.subr.mxu0 0.0
          %1221 = vmatpush1.msra.mxu0 0.0
          %1222 = vmatprep.subr.mxu0 0.0
          %1223 = vmatpush1.msra.mxu0 0.0
          %1224 = vmatprep.subr.mxu0 0.0
          %1225 = vmatpush1.msra.mxu0 0.0
          %1226 = vmatprep.subr.mxu0 0.0
          %1227 = vmatpush1.msra.mxu0 0.0
          %1228 = vmatprep.subr.mxu0 0.0
          %1229 = vmatpush1.msra.mxu0 0.0
          %1230 = vmatprep.subr.mxu0 0.0
          %1231 = vmatpush1.msra.mxu0 0.0
          %1232 = vmatprep.subr.mxu0 0.0
          %1233 = vmatpush1.msra.mxu0 0.0
          %1234 = vmatprep.subr.mxu0 0.0
          %1235 = vmatpush1.msra.mxu0 0.0
          %1236 = vmatprep.subr.mxu0 0.0
          %1237 = vmatpush1.msra.mxu0 0.0
          %1238 = vmatprep.subr.mxu0 0.0
          %1239 = vmatpush1.msra.mxu0 0.0
          %1240 = vmatprep.subr.mxu0 0.0
          %1241 = vmatpush1.msra.mxu0 0.0
          %1242 = vmatprep.subr.mxu0 0.0
          %1243 = vmatpush1.msra.mxu0 0.0
          %1244 = vmatprep.subr.mxu0 0.0
          %1245 = vmatpush1.msra.mxu0 0.0
          %1246 = vmatprep.subr.mxu0 0.0
          %1247 = vmatpush1.msra.mxu0 0.0
          %1248 = vmatprep.subr.mxu0 0.0
          %1249 = vmatpush1.msra.mxu0 0.0
          %1250 = vmatprep.subr.mxu0 0.0
          %1251 = vmatpush1.msra.mxu0 0.0
          %1252 = vmatprep.subr.mxu0 0.0
          %1253 = vmatpush1.msra.mxu0 0.0
          %1254 = vmatprep.subr.mxu0 0.0
          %1255 = vmatpush1.msra.mxu0 0.0
          %1256 = vmatprep.subr.mxu0 0.0
          %1257 = vmatpush1.msra.mxu0 0.0
          %1258 = vmatprep.subr.mxu0 0.0
          %1259 = vmatpush1.msra.mxu0 0.0
          %1260 = vmatprep.subr.mxu0 0.0
          %1261 = vmatpush1.msra.mxu0 0.0
          %1262 = vmatprep.subr.mxu0 0.0
          %1263 = vmatpush1.msra.mxu0 0.0
          %1264 = vmatprep.subr.mxu0 0.0
          %1265 = vmatpush1.msra.mxu0 0.0
          %1266 = vmatprep.subr.mxu0 0.0
          %1267 = vmatpush1.msra.mxu0 0.0
          %1268 = vmatprep.subr.mxu0 0.0
          %1269 = vmatpush1.msra.mxu0 0.0
          %1270 = vmatprep.subr.mxu0 0.0
          %1271 = vmatpush1.msra.mxu0 0.0
          %1272 = vmatprep.subr.mxu0 0.0
          %1273 = vmatpush1.msra.mxu0 0.0
          %1274 = vmatprep.subr.mxu0 0.0
          %1275 = vmatpush1.msra.mxu0 0.0
          %1276 = vmatprep.subr.mxu0 0.0
          %1277 = vmatpush1.msra.mxu0 0.0
          %1278 = vmatprep.mubr.f32.mxu0 0.0
          %1279 = vmatmul.mubr.f32.gmra.mrb[0].mxu0 %v1212
          %v1280 = vpop.f32.mrb[0].mxu0
          %v1281 = vadd.f32 0.0, %v1280
          %v1282 = vpop.f32.mrb[0].mxu0
          %1283 = vdwg.mxu0
          %v1284 = vadd.f32 %v1210, %v1281
        $region56: #{tpu_custom_call.1} parent=39 // loop_footer
          %s1109 = sadd.s32 %s1107, 1
        $region57: #{tpu_custom_call.1} parent=39 // loop_footer_branch
          %1106 = sbr.rel target = $region53
        $region58: #{tpu_custom_call.1} parent=39 // loop_exit
          _
        %v1285 = vld [vmem:[%s921 + $0x8] sm:$0xff]
        %v1286 = vld [vmem:[%s924 + $0x8] sm:$0xff]
        %1287 = vmatprep.subr.mxu0 0.0
        %1288 = vmatpush1.xpose.msra.mxu0 %v1285
        %1289 = vmatprep.subr.mxu0 0.0
        %1290 = vmatpush1.xpose.msra.mxu0 0.0
        %1291 = vmatprep.subr.mxu0 0.0
        %1292 = vmatpush1.xpose.msra.mxu0 0.0
        %1293 = vmatprep.subr.mxu0 0.0
        %1294 = vmatpush1.xpose.msra.mxu0 0.0
        %1295 = vmatprep.subr.mxu0 0.0
        %1296 = vmatpush1.xpose.msra.mxu0 0.0
        %1297 = vmatprep.subr.mxu0 0.0
        %1298 = vmatpush1.xpose.msra.mxu0 0.0
        %1299 = vmatprep.subr.mxu0 0.0
        %1300 = vmatpush1.xpose.msra.mxu0 0.0
        %1301 = vmatprep.subr.mxu0 0.0
        %1302 = vmatpush1.xpose.msra.mxu0 0.0
        %1303 = vmatprep.subr.mxu0 0.0
        %1304 = vmatpush1.xpose.msra.mxu0 0.0
        %1305 = vmatprep.subr.mxu0 0.0
        %1306 = vmatpush1.xpose.msra.mxu0 0.0
        %1307 = vmatprep.subr.mxu0 0.0
        %1308 = vmatpush1.xpose.msra.mxu0 0.0
        %1309 = vmatprep.subr.mxu0 0.0
        %1310 = vmatpush1.xpose.msra.mxu0 0.0
        %1311 = vmatprep.subr.mxu0 0.0
        %1312 = vmatpush1.xpose.msra.mxu0 0.0
        %1313 = vmatprep.subr.mxu0 0.0
        %1314 = vmatpush1.xpose.msra.mxu0 0.0
        %1315 = vmatprep.subr.mxu0 0.0
        %1316 = vmatpush1.xpose.msra.mxu0 0.0
        %1317 = vmatprep.subr.mxu0 0.0
        %1318 = vmatpush1.xpose.msra.mxu0 0.0
        %1319 = vmatprep.subr.mxu0 0.0
        %1320 = vmatpush1.xpose.msra.mxu0 0.0
        %1321 = vmatprep.subr.mxu0 0.0
        %1322 = vmatpush1.xpose.msra.mxu0 0.0
        %1323 = vmatprep.subr.mxu0 0.0
        %1324 = vmatpush1.xpose.msra.mxu0 0.0
        %1325 = vmatprep.subr.mxu0 0.0
        %1326 = vmatpush1.xpose.msra.mxu0 0.0
        %1327 = vmatprep.subr.mxu0 0.0
        %1328 = vmatpush1.xpose.msra.mxu0 0.0
        %1329 = vmatprep.subr.mxu0 0.0
        %1330 = vmatpush1.xpose.msra.mxu0 0.0
        %1331 = vmatprep.subr.mxu0 0.0
        %1332 = vmatpush1.xpose.msra.mxu0 0.0
        %1333 = vmatprep.subr.mxu0 0.0
        %1334 = vmatpush1.xpose.msra.mxu0 0.0
        %1335 = vmatprep.subr.mxu0 0.0
        %1336 = vmatpush1.xpose.msra.mxu0 0.0
        %1337 = vmatprep.subr.mxu0 0.0
        %1338 = vmatpush1.xpose.msra.mxu0 0.0
        %1339 = vmatprep.subr.mxu0 0.0
        %1340 = vmatpush1.xpose.msra.mxu0 0.0
        %1341 = vmatprep.subr.mxu0 0.0
        %1342 = vmatpush1.xpose.msra.mxu0 0.0
        %1343 = vmatprep.subr.mxu0 0.0
        %1344 = vmatpush1.xpose.msra.mxu0 0.0
        %1345 = vmatprep.subr.mxu0 0.0
        %1346 = vmatpush1.xpose.msra.mxu0 0.0
        %1347 = vmatprep.subr.mxu0 0.0
        %1348 = vmatpush1.xpose.msra.mxu0 0.0
        %1349 = vmatprep.subr.mxu0 0.0
        %1350 = vmatpush1.xpose.msra.mxu0 0.0
        %1351 = vmatprep.mubr.f32.mxu0 0.0
        %1352 = vmatmul.mubr.f32.gmra.mrb[0].mxu0 %v659
        %v1353 = vpop.f32.mrb[0].mxu0
        %v1354 = vadd.f32 0.0, %v1353
        %v1355 = vpop.f32.mrb[0].mxu0
        %1356 = vdwg.mxu0
        %v1357 = vsel %vm736, %v1354, -inf
        %v1358 = vsel %vm997, %v1357, -inf
        %1359 = vmax.xlane.f32.xlu0 %v1358
        %v1360 = vpop.xlane.xlu0 %1359
        %v1361 = vmax.f32 %v1112, %v1360
        %v1362 = vsub.f32 %v1112, %v1361
        %v1363 = vmul.f32 %v1362, 1.442695
        %v1364 = vpow.pop %v1363
        %v1365 = vsub.f32 %v1357, %v1361
        %v1366 = vmul.f32 %v1365, 1.442695
        %v1367 = vpow.pop %v1366
        %v1368 = vmul.f32 %v1364, %v1113
        %v1369 = vsel %vm997, %v1367, 0.0
        %1370 = vadd.xlane.f32.xlu0 %v1369
        %v1371 = vpop.xlane.xlu0 %1370
        %v1372 = vadd.f32 %v1368, %v1371
        %v1373 = vmul.f32 %v1364, %v1114
        %v1375 = vsel %vm997, %v1367, 0
        %1377 = vmatprep.subr.mxu0 0.0
        %1378 = vmatpush1.msra.mxu0 %v1286
        %1379 = vmatprep.subr.mxu0 0.0
        %1380 = vmatpush1.msra.mxu0 0.0
        %1381 = vmatprep.subr.mxu0 0.0
        %1382 = vmatpush1.msra.mxu0 0.0
        %1383 = vmatprep.subr.mxu0 0.0
        %1384 = vmatpush1.msra.mxu0 0.0
        %1385 = vmatprep.subr.mxu0 0.0
        %1386 = vmatpush1.msra.mxu0 0.0
        %1387 = vmatprep.subr.mxu0 0.0
        %1388 = vmatpush1.msra.mxu0 0.0
        %1389 = vmatprep.subr.mxu0 0.0
        %1390 = vmatpush1.msra.mxu0 0.0
        %1391 = vmatprep.subr.mxu0 0.0
        %1392 = vmatpush1.msra.mxu0 0.0
        %1393 = vmatprep.subr.mxu0 0.0
        %1394 = vmatpush1.msra.mxu0 0.0
        %1395 = vmatprep.subr.mxu0 0.0
        %1396 = vmatpush1.msra.mxu0 0.0
        %1397 = vmatprep.subr.mxu0 0.0
        %1398 = vmatpush1.msra.mxu0 0.0
        %1399 = vmatprep.subr.mxu0 0.0
        %1400 = vmatpush1.msra.mxu0 0.0
        %1401 = vmatprep.subr.mxu0 0.0
        %1402 = vmatpush1.msra.mxu0 0.0
        %1403 = vmatprep.subr.mxu0 0.0
        %1404 = vmatpush1.msra.mxu0 0.0
        %1405 = vmatprep.subr.mxu0 0.0
        %1406 = vmatpush1.msra.mxu0 0.0
        %1407 = vmatprep.subr.mxu0 0.0
        %1408 = vmatpush1.msra.mxu0 0.0
        %1409 = vmatprep.subr.mxu0 0.0
        %1410 = vmatpush1.msra.mxu0 0.0
        %1411 = vmatprep.subr.mxu0 0.0
        %1412 = vmatpush1.msra.mxu0 0.0
        %1413 = vmatprep.subr.mxu0 0.0
        %1414 = vmatpush1.msra.mxu0 0.0
        %1415 = vmatprep.subr.mxu0 0.0
        %1416 = vmatpush1.msra.mxu0 0.0
        %1417 = vmatprep.subr.mxu0 0.0
        %1418 = vmatpush1.msra.mxu0 0.0
        %1419 = vmatprep.subr.mxu0 0.0
        %1420 = vmatpush1.msra.mxu0 0.0
        %1421 = vmatprep.subr.mxu0 0.0
        %1422 = vmatpush1.msra.mxu0 0.0
        %1423 = vmatprep.subr.mxu0 0.0
        %1424 = vmatpush1.msra.mxu0 0.0
        %1425 = vmatprep.subr.mxu0 0.0
        %1426 = vmatpush1.msra.mxu0 0.0
        %1427 = vmatprep.subr.mxu0 0.0
        %1428 = vmatpush1.msra.mxu0 0.0
        %1429 = vmatprep.subr.mxu0 0.0
        %1430 = vmatpush1.msra.mxu0 0.0
        %1431 = vmatprep.subr.mxu0 0.0
        %1432 = vmatpush1.msra.mxu0 0.0
        %1433 = vmatprep.subr.mxu0 0.0
        %1434 = vmatpush1.msra.mxu0 0.0
        %1435 = vmatprep.subr.mxu0 0.0
        %1436 = vmatpush1.msra.mxu0 0.0
        %1437 = vmatprep.subr.mxu0 0.0
        %1438 = vmatpush1.msra.mxu0 0.0
        %1439 = vmatprep.subr.mxu0 0.0
        %1440 = vmatpush1.msra.mxu0 0.0
        %1441 = vmatprep.mubr.f32.mxu0 0.0
        %1442 = vmatmul.mubr.f32.gmra.mrb[0].mxu0 %v1375
        %v1443 = vpop.f32.mrb[0].mxu0
        %v1444 = vadd.f32 0.0, %v1443
        %v1445 = vpop.f32.mrb[0].mxu0
        %1446 = vdwg.mxu0
        %v1447 = vadd.f32 %v1373, %v1444
        %v1448 = vrcp.pop %v1372
        %v1449 = vmul.f32 %v1447, %v1448
        %v1450 = vld [vmem:[%s3 + $0x80] sm:$0xff]
        %v1451 = vld [vmem:[%s3 + $0x88] sm:$0xff]
        %v1452 = vld [vmem:[%s3 + $0x90] sm:$0xff]
        %v1453 = vld [vmem:[%s3 + $0x98] sm:$0xff]
        %v1454 = vld [vmem:[%s3 + $0xa0] sm:$0xff]
        %v1455 = vld [vmem:[%s3 + $0xa8] sm:$0xff]
        %v1456 = vld [vmem:[%s3 + $0xb0] sm:$0xff]
        %v1457 = vld [vmem:[%s3 + $0xb8] sm:$0xff]
        %v1458 = vld [vmem:[%s3 + $0xc0] sm:$0xff]
        %v1459 = vld [vmem:[%s3 + $0xc8] sm:$0xff]
        %v1460 = vld [vmem:[%s3 + $0xd0] sm:$0xff]
        %v1461 = vld [vmem:[%s3 + $0xd8] sm:$0xff]
        %v1462 = vld [vmem:[%s3 + $0xe0] sm:$0xff]
        %v1463 = vld [vmem:[%s3 + $0xe8] sm:$0xff]
        %v1464 = vld [vmem:[%s3 + $0xf0] sm:$0xff]
        %v1465 = vld [vmem:[%s3 + $0xf8] sm:$0xff]
        %1466 = vmatprep.subr.mxu0 0.0
        %1467 = vmatpush1.msra.mxu0 %v1450
        %1468 = vmatprep.subr.mxu0 0.0
        %1469 = vmatpush1.msra.mxu0 %v1451
        %1470 = vmatprep.subr.mxu0 0.0
        %1471 = vmatpush1.msra.mxu0 %v1452
        %1472 = vmatprep.subr.mxu0 0.0
        %1473 = vmatpush1.msra.mxu0 %v1453
        %1474 = vmatprep.subr.mxu0 0.0
        %1475 = vmatpush1.msra.mxu0 %v1454
        %1476 = vmatprep.subr.mxu0 0.0
        %1477 = vmatpush1.msra.mxu0 %v1455
        %1478 = vmatprep.subr.mxu0 0.0
        %1479 = vmatpush1.msra.mxu0 %v1456
        %1480 = vmatprep.subr.mxu0 0.0
        %1481 = vmatpush1.msra.mxu0 %v1457
        %1482 = vmatprep.subr.mxu0 0.0
        %1483 = vmatpush1.msra.mxu0 %v1458
        %1484 = vmatprep.subr.mxu0 0.0
        %1485 = vmatpush1.msra.mxu0 %v1459
        %1486 = vmatprep.subr.mxu0 0.0
        %1487 = vmatpush1.msra.mxu0 %v1460
        %1488 = vmatprep.subr.mxu0 0.0
        %1489 = vmatpush1.msra.mxu0 %v1461
        %1490 = vmatprep.subr.mxu0 0.0
        %1491 = vmatpush1.msra.mxu0 %v1462
        %1492 = vmatprep.subr.mxu0 0.0
        %1493 = vmatpush1.msra.mxu0 %v1463
        %1494 = vmatprep.subr.mxu0 0.0
        %1495 = vmatpush1.msra.mxu0 %v1464
        %1496 = vmatprep.subr.mxu0 0.0
        %1497 = vmatpush1.msra.mxu0 %v1465
        %1498 = vmatprep.subr.mxu0 0.0
        %1499 = vmatpush1.msra.mxu0 0.0
        %1500 = vmatprep.subr.mxu0 0.0
        %1501 = vmatpush1.msra.mxu0 0.0
        %1502 = vmatprep.subr.mxu0 0.0
        %1503 = vmatpush1.msra.mxu0 0.0
        %1504 = vmatprep.subr.mxu0 0.0
        %1505 = vmatpush1.msra.mxu0 0.0
        %1506 = vmatprep.subr.mxu0 0.0
        %1507 = vmatpush1.msra.mxu0 0.0
        %1508 = vmatprep.subr.mxu0 0.0
        %1509 = vmatpush1.msra.mxu0 0.0
        %1510 = vmatprep.subr.mxu0 0.0
        %1511 = vmatpush1.msra.mxu0 0.0
        %1512 = vmatprep.subr.mxu0 0.0
        %1513 = vmatpush1.msra.mxu0 0.0
        %1514 = vmatprep.subr.mxu0 0.0
        %1515 = vmatpush1.msra.mxu0 0.0
        %1516 = vmatprep.subr.mxu0 0.0
        %1517 = vmatpush1.msra.mxu0 0.0
        %1518 = vmatprep.subr.mxu0 0.0
        %1519 = vmatpush1.msra.mxu0 0.0
        %1520 = vmatprep.subr.mxu0 0.0
        %1521 = vmatpush1.msra.mxu0 0.0
        %1522 = vmatprep.subr.mxu0 0.0
        %1523 = vmatpush1.msra.mxu0 0.0
        %1524 = vmatprep.subr.mxu0 0.0
        %1525 = vmatpush1.msra.mxu0 0.0
        %1526 = vmatprep.subr.mxu0 0.0
        %1527 = vmatpush1.msra.mxu0 0.0
        %1528 = vmatprep.subr.mxu0 0.0
        %1529 = vmatpush1.msra.mxu0 0.0
        %1530 = vmatprep.mubr.f32.mxu0 0.0
        %1531 = vmatmul.mubr.f32.gmra.mrb[0].mxu0 %v1449
        %v1532 = vpop.f32.mrb[0].mxu0
        %v1533 = vadd.f32 0.0, %v1532
        %v1534 = vpop.f32.mrb[0].mxu0
        %1535 = vdwg.mxu0
        %1536 = vmatprep.subr.mxu0 0.0
        %1537 = vmatpush1.msra.mxu0 %v1090
        %1538 = vmatprep.subr.mxu0 0.0
        %1539 = vmatpush1.msra.mxu0 %v1091
        %1540 = vmatprep.subr.mxu0 0.0
        %1541 = vmatpush1.msra.mxu0 %v1092
        %1542 = vmatprep.subr.mxu0 0.0
        %1543 = vmatpush1.msra.mxu0 %v1093
        %1544 = vmatprep.subr.mxu0 0.0
        %1545 = vmatpush1.msra.mxu0 %v1094
        %1546 = vmatprep.subr.mxu0 0.0
        %1547 = vmatpush1.msra.mxu0 %v1095
        %1548 = vmatprep.subr.mxu0 0.0
        %1549 = vmatpush1.msra.mxu0 %v1096
        %1550 = vmatprep.subr.mxu0 0.0
        %1551 = vmatpush1.msra.mxu0 %v1097
        %1552 = vmatprep.subr.mxu0 0.0
        %1553 = vmatpush1.msra.mxu0 %v1098
        %1554 = vmatprep.subr.mxu0 0.0
        %1555 = vmatpush1.msra.mxu0 %v1099
        %1556 = vmatprep.subr.mxu0 0.0
        %1557 = vmatpush1.msra.mxu0 %v1100
        %1558 = vmatprep.subr.mxu0 0.0
        %1559 = vmatpush1.msra.mxu0 %v1101
        %1560 = vmatprep.subr.mxu0 0.0
        %1561 = vmatpush1.msra.mxu0 %v1102
        %1562 = vmatprep.subr.mxu0 0.0
        %1563 = vmatpush1.msra.mxu0 %v1103
        %1564 = vmatprep.subr.mxu0 0.0
        %1565 = vmatpush1.msra.mxu0 %v1104
        %1566 = vmatprep.subr.mxu0 0.0
        %1567 = vmatpush1.msra.mxu0 %v1105
        %1568 = vmatprep.subr.mxu0 0.0
        %1569 = vmatpush1.msra.mxu0 0.0
        %1570 = vmatprep.subr.mxu0 0.0
        %1571 = vmatpush1.msra.mxu0 0.0
        %1572 = vmatprep.subr.mxu0 0.0
        %1573 = vmatpush1.msra.mxu0 0.0
        %1574 = vmatprep.subr.mxu0 0.0
        %1575 = vmatpush1.msra.mxu0 0.0
        %1576 = vmatprep.subr.mxu0 0.0
        %1577 = vmatpush1.msra.mxu0 0.0
        %1578 = vmatprep.subr.mxu0 0.0
        %1579 = vmatpush1.msra.mxu0 0.0
        %1580 = vmatprep.subr.mxu0 0.0
        %1581 = vmatpush1.msra.mxu0 0.0
        %1582 = vmatprep.subr.mxu0 0.0
        %1583 = vmatpush1.msra.mxu0 0.0
        %1584 = vmatprep.subr.mxu0 0.0
        %1585 = vmatpush1.msra.mxu0 0.0
        %1586 = vmatprep.subr.mxu0 0.0
        %1587 = vmatpush1.msra.mxu0 0.0
        %1588 = vmatprep.subr.mxu0 0.0
        %1589 = vmatpush1.msra.mxu0 0.0
        %1590 = vmatprep.subr.mxu0 0.0
        %1591 = vmatpush1.msra.mxu0 0.0
        %1592 = vmatprep.subr.mxu0 0.0
        %1593 = vmatpush1.msra.mxu0 0.0
        %1594 = vmatprep.subr.mxu0 0.0
        %1595 = vmatpush1.msra.mxu0 0.0
        %1596 = vmatprep.subr.mxu0 0.0
        %1597 = vmatpush1.msra.mxu0 0.0
        %1598 = vmatprep.subr.mxu0 0.0
        %1599 = vmatpush1.msra.mxu0 0.0
        %1600 = vmatprep.mubr.f32.mxu0 0.0
        %1601 = vmatmul.mubr.f32.gmra.mrb[0].mxu0 %v1089
        %v1602 = vpop.f32.mrb[0].mxu0
        %v1603 = vadd.f32 %v1533, %v1602
        %v1604 = vpop.f32.mrb[0].mxu0
        %1605 = vdwg.mxu0
        // While loop
        $region59: #{tpu_custom_call.1} parent=39 // loop_pre_header
          _
        $region60: #{tpu_custom_call.1} parent=39 // loop_header
          %s1607 = sphi 0, %s1609
          %p1608 = scmp.ge.s32.totalorder %s1607, %s24
          %v1612 = vphi -inf, %v1698
          %v1613 = vphi 0.0, %v1709
          %v1614 = vphi 0.0, %v1784
        $region61: #{tpu_custom_call.1} parent=39 // loop_header_branch
          %1611 = sbr.rel (%p1608) target = $region65
        $region62: #{tpu_custom_call.1} parent=39 // loop_body
          %s1615 = smul.u32 %s1607, 8
          %s1616 = sshra.s32 %s1615, 3
          %s1617 = sand.u32 %s1615, 7
          %s1618 = smul.u32 %s1616, 4
          %s1619 = smul.addr %s1618, 8
          %s1620 = scalar_lea.vmem [#allocation2], %s1619
          %v1621 = vld [vmem:[%s1620 + $0x10] sm:$0xff]
          %s1622 = smul.addr %s1618, 8
          %s1623 = scalar_lea.vmem [#allocation3], %s1622
          %v1624 = vld [vmem:[%s1623 + $0x10] sm:$0xff]
          %1625 = vmatprep.subr.mxu0 0.0
          %1626 = vmatpush1.xpose.msra.mxu0 %v1621
          %1627 = vmatprep.subr.mxu0 0.0
          %1628 = vmatpush1.xpose.msra.mxu0 0.0
          %1629 = vmatprep.subr.mxu0 0.0
          %1630 = vmatpush1.xpose.msra.mxu0 0.0
          %1631 = vmatprep.subr.mxu0 0.0
          %1632 = vmatpush1.xpose.msra.mxu0 0.0
          %1633 = vmatprep.subr.mxu0 0.0
          %1634 = vmatpush1.xpose.msra.mxu0 0.0
          %1635 = vmatprep.subr.mxu0 0.0
          %1636 = vmatpush1.xpose.msra.mxu0 0.0
          %1637 = vmatprep.subr.mxu0 0.0
          %1638 = vmatpush1.xpose.msra.mxu0 0.0
          %1639 = vmatprep.subr.mxu0 0.0
          %1640 = vmatpush1.xpose.msra.mxu0 0.0
          %1641 = vmatprep.subr.mxu0 0.0
          %1642 = vmatpush1.xpose.msra.mxu0 0.0
          %1643 = vmatprep.subr.mxu0 0.0
          %1644 = vmatpush1.xpose.msra.mxu0 0.0
          %1645 = vmatprep.subr.mxu0 0.0
          %1646 = vmatpush1.xpose.msra.mxu0 0.0
          %1647 = vmatprep.subr.mxu0 0.0
          %1648 = vmatpush1.xpose.msra.mxu0 0.0
          %1649 = vmatprep.subr.mxu0 0.0
          %1650 = vmatpush1.xpose.msra.mxu0 0.0
          %1651 = vmatprep.subr.mxu0 0.0
          %1652 = vmatpush1.xpose.msra.mxu0 0.0
          %1653 = vmatprep.subr.mxu0 0.0
          %1654 = vmatpush1.xpose.msra.mxu0 0.0
          %1655 = vmatprep.subr.mxu0 0.0
          %1656 = vmatpush1.xpose.msra.mxu0 0.0
          %1657 = vmatprep.subr.mxu0 0.0
          %1658 = vmatpush1.xpose.msra.mxu0 0.0
          %1659 = vmatprep.subr.mxu0 0.0
          %1660 = vmatpush1.xpose.msra.mxu0 0.0
          %1661 = vmatprep.subr.mxu0 0.0
          %1662 = vmatpush1.xpose.msra.mxu0 0.0
          %1663 = vmatprep.subr.mxu0 0.0
          %1664 = vmatpush1.xpose.msra.mxu0 0.0
          %1665 = vmatprep.subr.mxu0 0.0
          %1666 = vmatpush1.xpose.msra.mxu0 0.0
          %1667 = vmatprep.subr.mxu0 0.0
          %1668 = vmatpush1.xpose.msra.mxu0 0.0
          %1669 = vmatprep.subr.mxu0 0.0
          %1670 = vmatpush1.xpose.msra.mxu0 0.0
          %1671 = vmatprep.subr.mxu0 0.0
          %1672 = vmatpush1.xpose.msra.mxu0 0.0
          %1673 = vmatprep.subr.mxu0 0.0
          %1674 = vmatpush1.xpose.msra.mxu0 0.0
          %1675 = vmatprep.subr.mxu0 0.0
          %1676 = vmatpush1.xpose.msra.mxu0 0.0
          %1677 = vmatprep.subr.mxu0 0.0
          %1678 = vmatpush1.xpose.msra.mxu0 0.0
          %1679 = vmatprep.subr.mxu0 0.0
          %1680 = vmatpush1.xpose.msra.mxu0 0.0
          %1681 = vmatprep.subr.mxu0 0.0
          %1682 = vmatpush1.xpose.msra.mxu0 0.0
          %1683 = vmatprep.subr.mxu0 0.0
          %1684 = vmatpush1.xpose.msra.mxu0 0.0
          %1685 = vmatprep.subr.mxu0 0.0
          %1686 = vmatpush1.xpose.msra.mxu0 0.0
          %1687 = vmatprep.subr.mxu0 0.0
          %1688 = vmatpush1.xpose.msra.mxu0 0.0
          %1689 = vmatprep.mubr.f32.mxu0 0.0
          %1690 = vmatmul.mubr.f32.gmra.mrb[0].mxu0 %v728
          %v1691 = vpop.f32.mrb[0].mxu0
          %v1692 = vadd.f32 0.0, %v1691
          %v1693 = vpop.f32.mrb[0].mxu0
          %1694 = vdwg.mxu0
          %v1695 = vsel %vm997, %v1692, -inf
          %1696 = vmax.xlane.f32.xlu0 %v1695
          %v1697 = vpop.xlane.xlu0 %1696
          %v1698 = vmax.f32 %v1612, %v1697
          %v1699 = vsub.f32 %v1612, %v1698
          %v1700 = vmul.f32 %v1699, 1.442695
          %v1701 = vpow.pop %v1700
          %v1702 = vsub.f32 %v1692, %v1698
          %v1703 = vmul.f32 %v1702, 1.442695
          %v1704 = vpow.pop %v1703
          %v1705 = vmul.f32 %v1701, %v1613
          %v1706 = vsel %vm997, %v1704, 0.0
          %1707 = vadd.xlane.f32.xlu0 %v1706
          %v1708 = vpop.xlane.xlu0 %1707
          %v1709 = vadd.f32 %v1705, %v1708
          %v1710 = vmul.f32 %v1701, %v1614
          %v1712 = vsel %vm997, %v1704, 0
          %1714 = vmatprep.subr.mxu0 0.0
          %1715 = vmatpush1.msra.mxu0 %v1624
          %1716 = vmatprep.subr.mxu0 0.0
          %1717 = vmatpush1.msra.mxu0 0.0
          %1718 = vmatprep.subr.mxu0 0.0
          %1719 = vmatpush1.msra.mxu0 0.0
          %1720 = vmatprep.subr.mxu0 0.0
          %1721 = vmatpush1.msra.mxu0 0.0
          %1722 = vmatprep.subr.mxu0 0.0
          %1723 = vmatpush1.msra.mxu0 0.0
          %1724 = vmatprep.subr.mxu0 0.0
          %1725 = vmatpush1.msra.mxu0 0.0
          %1726 = vmatprep.subr.mxu0 0.0
          %1727 = vmatpush1.msra.mxu0 0.0
          %1728 = vmatprep.subr.mxu0 0.0
          %1729 = vmatpush1.msra.mxu0 0.0
          %1730 = vmatprep.subr.mxu0 0.0
          %1731 = vmatpush1.msra.mxu0 0.0
          %1732 = vmatprep.subr.mxu0 0.0
          %1733 = vmatpush1.msra.mxu0 0.0
          %1734 = vmatprep.subr.mxu0 0.0
          %1735 = vmatpush1.msra.mxu0 0.0
          %1736 = vmatprep.subr.mxu0 0.0
          %1737 = vmatpush1.msra.mxu0 0.0
          %1738 = vmatprep.subr.mxu0 0.0
          %1739 = vmatpush1.msra.mxu0 0.0
          %1740 = vmatprep.subr.mxu0 0.0
          %1741 = vmatpush1.msra.mxu0 0.0
          %1742 = vmatprep.subr.mxu0 0.0
          %1743 = vmatpush1.msra.mxu0 0.0
          %1744 = vmatprep.subr.mxu0 0.0
          %1745 = vmatpush1.msra.mxu0 0.0
          %1746 = vmatprep.subr.mxu0 0.0
          %1747 = vmatpush1.msra.mxu0 0.0
          %1748 = vmatprep.subr.mxu0 0.0
          %1749 = vmatpush1.msra.mxu0 0.0
          %1750 = vmatprep.subr.mxu0 0.0
          %1751 = vmatpush1.msra.mxu0 0.0
          %1752 = vmatprep.subr.mxu0 0.0
          %1753 = vmatpush1.msra.mxu0 0.0
          %1754 = vmatprep.subr.mxu0 0.0
          %1755 = vmatpush1.msra.mxu0 0.0
          %1756 = vmatprep.subr.mxu0 0.0
          %1757 = vmatpush1.msra.mxu0 0.0
          %1758 = vmatprep.subr.mxu0 0.0
          %1759 = vmatpush1.msra.mxu0 0.0
          %1760 = vmatprep.subr.mxu0 0.0
          %1761 = vmatpush1.msra.mxu0 0.0
          %1762 = vmatprep.subr.mxu0 0.0
          %1763 = vmatpush1.msra.mxu0 0.0
          %1764 = vmatprep.subr.mxu0 0.0
          %1765 = vmatpush1.msra.mxu0 0.0
          %1766 = vmatprep.subr.mxu0 0.0
          %1767 = vmatpush1.msra.mxu0 0.0
          %1768 = vmatprep.subr.mxu0 0.0
          %1769 = vmatpush1.msra.mxu0 0.0
          %1770 = vmatprep.subr.mxu0 0.0
          %1771 = vmatpush1.msra.mxu0 0.0
          %1772 = vmatprep.subr.mxu0 0.0
          %1773 = vmatpush1.msra.mxu0 0.0
          %1774 = vmatprep.subr.mxu0 0.0
          %1775 = vmatpush1.msra.mxu0 0.0
          %1776 = vmatprep.subr.mxu0 0.0
          %1777 = vmatpush1.msra.mxu0 0.0
          %1778 = vmatprep.mubr.f32.mxu0 0.0
          %1779 = vmatmul.mubr.f32.gmra.mrb[0].mxu0 %v1712
          %v1780 = vpop.f32.mrb[0].mxu0
          %v1781 = vadd.f32 0.0, %v1780
          %v1782 = vpop.f32.mrb[0].mxu0
          %1783 = vdwg.mxu0
          %v1784 = vadd.f32 %v1710, %v1781
        $region63: #{tpu_custom_call.1} parent=39 // loop_footer
          %s1609 = sadd.s32 %s1607, 1
        $region64: #{tpu_custom_call.1} parent=39 // loop_footer_branch
          %1606 = sbr.rel target = $region60
        $region65: #{tpu_custom_call.1} parent=39 // loop_exit
          _
        %v1785 = vld [vmem:[%s921 + $0x10] sm:$0xff]
        %v1786 = vld [vmem:[%s924 + $0x10] sm:$0xff]
        %1787 = vmatprep.subr.mxu0 0.0
        %1788 = vmatpush1.xpose.msra.mxu0 %v1785
        %1789 = vmatprep.subr.mxu0 0.0
        %1790 = vmatpush1.xpose.msra.mxu0 0.0
        %1791 = vmatprep.subr.mxu0 0.0
        %1792 = vmatpush1.xpose.msra.mxu0 0.0
        %1793 = vmatprep.subr.mxu0 0.0
        %1794 = vmatpush1.xpose.msra.mxu0 0.0
        %1795 = vmatprep.subr.mxu0 0.0
        %1796 = vmatpush1.xpose.msra.mxu0 0.0
        %1797 = vmatprep.subr.mxu0 0.0
        %1798 = vmatpush1.xpose.msra.mxu0 0.0
        %1799 = vmatprep.subr.mxu0 0.0
        %1800 = vmatpush1.xpose.msra.mxu0 0.0
        %1801 = vmatprep.subr.mxu0 0.0
        %1802 = vmatpush1.xpose.msra.mxu0 0.0
        %1803 = vmatprep.subr.mxu0 0.0
        %1804 = vmatpush1.xpose.msra.mxu0 0.0
        %1805 = vmatprep.subr.mxu0 0.0
        %1806 = vmatpush1.xpose.msra.mxu0 0.0
        %1807 = vmatprep.subr.mxu0 0.0
        %1808 = vmatpush1.xpose.msra.mxu0 0.0
        %1809 = vmatprep.subr.mxu0 0.0
        %1810 = vmatpush1.xpose.msra.mxu0 0.0
        %1811 = vmatprep.subr.mxu0 0.0
        %1812 = vmatpush1.xpose.msra.mxu0 0.0
        %1813 = vmatprep.subr.mxu0 0.0
        %1814 = vmatpush1.xpose.msra.mxu0 0.0
        %1815 = vmatprep.subr.mxu0 0.0
        %1816 = vmatpush1.xpose.msra.mxu0 0.0
        %1817 = vmatprep.subr.mxu0 0.0
        %1818 = vmatpush1.xpose.msra.mxu0 0.0
        %1819 = vmatprep.subr.mxu0 0.0
        %1820 = vmatpush1.xpose.msra.mxu0 0.0
        %1821 = vmatprep.subr.mxu0 0.0
        %1822 = vmatpush1.xpose.msra.mxu0 0.0
        %1823 = vmatprep.subr.mxu0 0.0
        %1824 = vmatpush1.xpose.msra.mxu0 0.0
        %1825 = vmatprep.subr.mxu0 0.0
        %1826 = vmatpush1.xpose.msra.mxu0 0.0
        %1827 = vmatprep.subr.mxu0 0.0
        %1828 = vmatpush1.xpose.msra.mxu0 0.0
        %1829 = vmatprep.subr.mxu0 0.0
        %1830 = vmatpush1.xpose.msra.mxu0 0.0
        %1831 = vmatprep.subr.mxu0 0.0
        %1832 = vmatpush1.xpose.msra.mxu0 0.0
        %1833 = vmatprep.subr.mxu0 0.0
        %1834 = vmatpush1.xpose.msra.mxu0 0.0
        %1835 = vmatprep.subr.mxu0 0.0
        %1836 = vmatpush1.xpose.msra.mxu0 0.0
        %1837 = vmatprep.subr.mxu0 0.0
        %1838 = vmatpush1.xpose.msra.mxu0 0.0
        %1839 = vmatprep.subr.mxu0 0.0
        %1840 = vmatpush1.xpose.msra.mxu0 0.0
        %1841 = vmatprep.subr.mxu0 0.0
        %1842 = vmatpush1.xpose.msra.mxu0 0.0
        %1843 = vmatprep.subr.mxu0 0.0
        %1844 = vmatpush1.xpose.msra.mxu0 0.0
        %1845 = vmatprep.subr.mxu0 0.0
        %1846 = vmatpush1.xpose.msra.mxu0 0.0
        %1847 = vmatprep.subr.mxu0 0.0
        %1848 = vmatpush1.xpose.msra.mxu0 0.0
        %1849 = vmatprep.subr.mxu0 0.0
        %1850 = vmatpush1.xpose.msra.mxu0 0.0
        %1851 = vmatprep.mubr.f32.mxu0 0.0
        %1852 = vmatmul.mubr.f32.gmra.mrb[0].mxu0 %v728
        %v1853 = vpop.f32.mrb[0].mxu0
        %v1854 = vadd.f32 0.0, %v1853
        %v1855 = vpop.f32.mrb[0].mxu0
        %1856 = vdwg.mxu0
        %v1857 = vsel %vm736, %v1854, -inf
        %v1858 = vsel %vm997, %v1857, -inf
        %1859 = vmax.xlane.f32.xlu0 %v1858
        %v1860 = vpop.xlane.xlu0 %1859
        %v1861 = vmax.f32 %v1612, %v1860
        %v1862 = vsub.f32 %v1612, %v1861
        %v1863 = vmul.f32 %v1862, 1.442695
        %v1864 = vpow.pop %v1863
        %v1865 = vsub.f32 %v1857, %v1861
        %v1866 = vmul.f32 %v1865, 1.442695
        %v1867 = vpow.pop %v1866
        %v1868 = vmul.f32 %v1864, %v1613
        %v1869 = vsel %vm997, %v1867, 0.0
        %1870 = vadd.xlane.f32.xlu0 %v1869
        %v1871 = vpop.xlane.xlu0 %1870
        %v1872 = vadd.f32 %v1868, %v1871
        %v1873 = vmul.f32 %v1864, %v1614
        %v1875 = vsel %vm997, %v1867, 0
        %1877 = vmatprep.subr.mxu0 0.0
        %1878 = vmatpush1.msra.mxu0 %v1786
        %1879 = vmatprep.subr.mxu0 0.0
        %1880 = vmatpush1.msra.mxu0 0.0
        %1881 = vmatprep.subr.mxu0 0.0
        %1882 = vmatpush1.msra.mxu0 0.0
        %1883 = vmatprep.subr.mxu0 0.0
        %1884 = vmatpush1.msra.mxu0 0.0
        %1885 = vmatprep.subr.mxu0 0.0
        %1886 = vmatpush1.msra.mxu0 0.0
        %1887 = vmatprep.subr.mxu0 0.0
        %1888 = vmatpush1.msra.mxu0 0.0
        %1889 = vmatprep.subr.mxu0 0.0
        %1890 = vmatpush1.msra.mxu0 0.0
        %1891 = vmatprep.subr.mxu0 0.0
        %1892 = vmatpush1.msra.mxu0 0.0
        %1893 = vmatprep.subr.mxu0 0.0
        %1894 = vmatpush1.msra.mxu0 0.0
        %1895 = vmatprep.subr.mxu0 0.0
        %1896 = vmatpush1.msra.mxu0 0.0
        %1897 = vmatprep.subr.mxu0 0.0
        %1898 = vmatpush1.msra.mxu0 0.0
        %1899 = vmatprep.subr.mxu0 0.0
        %1900 = vmatpush1.msra.mxu0 0.0
        %1901 = vmatprep.subr.mxu0 0.0
        %1902 = vmatpush1.msra.mxu0 0.0
        %1903 = vmatprep.subr.mxu0 0.0
        %1904 = vmatpush1.msra.mxu0 0.0
        %1905 = vmatprep.subr.mxu0 0.0
        %1906 = vmatpush1.msra.mxu0 0.0
        %1907 = vmatprep.subr.mxu0 0.0
        %1908 = vmatpush1.msra.mxu0 0.0
        %1909 = vmatprep.subr.mxu0 0.0
        %1910 = vmatpush1.msra.mxu0 0.0
        %1911 = vmatprep.subr.mxu0 0.0
        %1912 = vmatpush1.msra.mxu0 0.0
        %1913 = vmatprep.subr.mxu0 0.0
        %1914 = vmatpush1.msra.mxu0 0.0
        %1915 = vmatprep.subr.mxu0 0.0
        %1916 = vmatpush1.msra.mxu0 0.0
        %1917 = vmatprep.subr.mxu0 0.0
        %1918 = vmatpush1.msra.mxu0 0.0
        %1919 = vmatprep.subr.mxu0 0.0
        %1920 = vmatpush1.msra.mxu0 0.0
        %1921 = vmatprep.subr.mxu0 0.0
        %1922 = vmatpush1.msra.mxu0 0.0
        %1923 = vmatprep.subr.mxu0 0.0
        %1924 = vmatpush1.msra.mxu0 0.0
        %1925 = vmatprep.subr.mxu0 0.0
        %1926 = vmatpush1.msra.mxu0 0.0
        %1927 = vmatprep.subr.mxu0 0.0
        %1928 = vmatpush1.msra.mxu0 0.0
        %1929 = vmatprep.subr.mxu0 0.0
        %1930 = vmatpush1.msra.mxu0 0.0
        %1931 = vmatprep.subr.mxu0 0.0
        %1932 = vmatpush1.msra.mxu0 0.0
        %1933 = vmatprep.subr.mxu0 0.0
        %1934 = vmatpush1.msra.mxu0 0.0
        %1935 = vmatprep.subr.mxu0 0.0
        %1936 = vmatpush1.msra.mxu0 0.0
        %1937 = vmatprep.subr.mxu0 0.0
        %1938 = vmatpush1.msra.mxu0 0.0
        %1939 = vmatprep.subr.mxu0 0.0
        %1940 = vmatpush1.msra.mxu0 0.0
        %1941 = vmatprep.mubr.f32.mxu0 0.0
        %1942 = vmatmul.mubr.f32.gmra.mrb[0].mxu0 %v1875
        %v1943 = vpop.f32.mrb[0].mxu0
        %v1944 = vadd.f32 0.0, %v1943
        %v1945 = vpop.f32.mrb[0].mxu0
        %1946 = vdwg.mxu0
        %v1947 = vadd.f32 %v1873, %v1944
        %v1948 = vrcp.pop %v1872
        %v1949 = vmul.f32 %v1947, %v1948
        %v1950 = vld [vmem:[%s3 + $0x100] sm:$0xff]
        %v1951 = vld [vmem:[%s3 + $0x108] sm:$0xff]
        %v1952 = vld [vmem:[%s3 + $0x110] sm:$0xff]
        %v1953 = vld [vmem:[%s3 + $0x118] sm:$0xff]
        %v1954 = vld [vmem:[%s3 + $0x120] sm:$0xff]
        %v1955 = vld [vmem:[%s3 + $0x128] sm:$0xff]
        %v1956 = vld [vmem:[%s3 + $0x130] sm:$0xff]
        %v1957 = vld [vmem:[%s3 + $0x138] sm:$0xff]
        %v1958 = vld [vmem:[%s3 + $0x140] sm:$0xff]
        %v1959 = vld [vmem:[%s3 + $0x148] sm:$0xff]
        %v1960 = vld [vmem:[%s3 + $0x150] sm:$0xff]
        %v1961 = vld [vmem:[%s3 + $0x158] sm:$0xff]
        %v1962 = vld [vmem:[%s3 + $0x160] sm:$0xff]
        %v1963 = vld [vmem:[%s3 + $0x168] sm:$0xff]
        %v1964 = vld [vmem:[%s3 + $0x170] sm:$0xff]
        %v1965 = vld [vmem:[%s3 + $0x178] sm:$0xff]
        %1966 = vmatprep.subr.mxu0 0.0
        %1967 = vmatpush1.msra.mxu0 %v1950
        %1968 = vmatprep.subr.mxu0 0.0
        %1969 = vmatpush1.msra.mxu0 %v1951
        %1970 = vmatprep.subr.mxu0 0.0
        %1971 = vmatpush1.msra.mxu0 %v1952
        %1972 = vmatprep.subr.mxu0 0.0
        %1973 = vmatpush1.msra.mxu0 %v1953
        %1974 = vmatprep.subr.mxu0 0.0
        %1975 = vmatpush1.msra.mxu0 %v1954
        %1976 = vmatprep.subr.mxu0 0.0
        %1977 = vmatpush1.msra.mxu0 %v1955
        %1978 = vmatprep.subr.mxu0 0.0
        %1979 = vmatpush1.msra.mxu0 %v1956
        %1980 = vmatprep.subr.mxu0 0.0
        %1981 = vmatpush1.msra.mxu0 %v1957
        %1982 = vmatprep.subr.mxu0 0.0
        %1983 = vmatpush1.msra.mxu0 %v1958
        %1984 = vmatprep.subr.mxu0 0.0
        %1985 = vmatpush1.msra.mxu0 %v1959
        %1986 = vmatprep.subr.mxu0 0.0
        %1987 = vmatpush1.msra.mxu0 %v1960
        %1988 = vmatprep.subr.mxu0 0.0
        %1989 = vmatpush1.msra.mxu0 %v1961
        %1990 = vmatprep.subr.mxu0 0.0
        %1991 = vmatpush1.msra.mxu0 %v1962
        %1992 = vmatprep.subr.mxu0 0.0
        %1993 = vmatpush1.msra.mxu0 %v1963
        %1994 = vmatprep.subr.mxu0 0.0
        %1995 = vmatpush1.msra.mxu0 %v1964
        %1996 = vmatprep.subr.mxu0 0.0
        %1997 = vmatpush1.msra.mxu0 %v1965
        %1998 = vmatprep.subr.mxu0 0.0
        %1999 = vmatpush1.msra.mxu0 0.0
        %2000 = vmatprep.subr.mxu0 0.0
        %2001 = vmatpush1.msra.mxu0 0.0
        %2002 = vmatprep.subr.mxu0 0.0
        %2003 = vmatpush1.msra.mxu0 0.0
        %2004 = vmatprep.subr.mxu0 0.0
        %2005 = vmatpush1.msra.mxu0 0.0
        %2006 = vmatprep.subr.mxu0 0.0
        %2007 = vmatpush1.msra.mxu0 0.0
        %2008 = vmatprep.subr.mxu0 0.0
        %2009 = vmatpush1.msra.mxu0 0.0
        %2010 = vmatprep.subr.mxu0 0.0
        %2011 = vmatpush1.msra.mxu0 0.0
        %2012 = vmatprep.subr.mxu0 0.0
        %2013 = vmatpush1.msra.mxu0 0.0
        %2014 = vmatprep.subr.mxu0 0.0
        %2015 = vmatpush1.msra.mxu0 0.0
        %2016 = vmatprep.subr.mxu0 0.0
        %2017 = vmatpush1.msra.mxu0 0.0
        %2018 = vmatprep.subr.mxu0 0.0
        %2019 = vmatpush1.msra.mxu0 0.0
        %2020 = vmatprep.subr.mxu0 0.0
        %2021 = vmatpush1.msra.mxu0 0.0
        %2022 = vmatprep.subr.mxu0 0.0
        %2023 = vmatpush1.msra.mxu0 0.0
        %2024 = vmatprep.subr.mxu0 0.0
        %2025 = vmatpush1.msra.mxu0 0.0
        %2026 = vmatprep.subr.mxu0 0.0
        %2027 = vmatpush1.msra.mxu0 0.0
        %2028 = vmatprep.subr.mxu0 0.0
        %2029 = vmatpush1.msra.mxu0 0.0
        %2030 = vmatprep.mubr.f32.mxu0 0.0
        %2031 = vmatmul.mubr.f32.gmra.mrb[0].mxu0 %v1949
        %v2032 = vpop.f32.mrb[0].mxu0
        %v2033 = vadd.f32 0.0, %v2032
        %v2034 = vpop.f32.mrb[0].mxu0
        %2035 = vdwg.mxu0
        %v2036 = vadd.f32 %v1603, %v2033
        // While loop
        $region66: #{tpu_custom_call.1} parent=39 // loop_pre_header
          _
        $region67: #{tpu_custom_call.1} parent=39 // loop_header
          %s2038 = sphi 0, %s2040
          %p2039 = scmp.ge.s32.totalorder %s2038, %s24
          %v2043 = vphi -inf, %v2129
          %v2044 = vphi 0.0, %v2140
          %v2045 = vphi 0.0, %v2215
        $region68: #{tpu_custom_call.1} parent=39 // loop_header_branch
          %2042 = sbr.rel (%p2039) target = $region72
        $region69: #{tpu_custom_call.1} parent=39 // loop_body
          %s2046 = smul.u32 %s2038, 8
          %s2047 = sshra.s32 %s2046, 3
          %s2048 = sand.u32 %s2046, 7
          %s2049 = smul.u32 %s2047, 4
          %s2050 = smul.addr %s2049, 8
          %s2051 = scalar_lea.vmem [#allocation2], %s2050
          %v2052 = vld [vmem:[%s2051 + $0x18] sm:$0xff]
          %s2053 = smul.addr %s2049, 8
          %s2054 = scalar_lea.vmem [#allocation3], %s2053
          %v2055 = vld [vmem:[%s2054 + $0x18] sm:$0xff]
          %2056 = vmatprep.subr.mxu0 0.0
          %2057 = vmatpush1.xpose.msra.mxu0 %v2052
          %2058 = vmatprep.subr.mxu0 0.0
          %2059 = vmatpush1.xpose.msra.mxu0 0.0
          %2060 = vmatprep.subr.mxu0 0.0
          %2061 = vmatpush1.xpose.msra.mxu0 0.0
          %2062 = vmatprep.subr.mxu0 0.0
          %2063 = vmatpush1.xpose.msra.mxu0 0.0
          %2064 = vmatprep.subr.mxu0 0.0
          %2065 = vmatpush1.xpose.msra.mxu0 0.0
          %2066 = vmatprep.subr.mxu0 0.0
          %2067 = vmatpush1.xpose.msra.mxu0 0.0
          %2068 = vmatprep.subr.mxu0 0.0
          %2069 = vmatpush1.xpose.msra.mxu0 0.0
          %2070 = vmatprep.subr.mxu0 0.0
          %2071 = vmatpush1.xpose.msra.mxu0 0.0
          %2072 = vmatprep.subr.mxu0 0.0
          %2073 = vmatpush1.xpose.msra.mxu0 0.0
          %2074 = vmatprep.subr.mxu0 0.0
          %2075 = vmatpush1.xpose.msra.mxu0 0.0
          %2076 = vmatprep.subr.mxu0 0.0
          %2077 = vmatpush1.xpose.msra.mxu0 0.0
          %2078 = vmatprep.subr.mxu0 0.0
          %2079 = vmatpush1.xpose.msra.mxu0 0.0
          %2080 = vmatprep.subr.mxu0 0.0
          %2081 = vmatpush1.xpose.msra.mxu0 0.0
          %2082 = vmatprep.subr.mxu0 0.0
          %2083 = vmatpush1.xpose.msra.mxu0 0.0
          %2084 = vmatprep.subr.mxu0 0.0
          %2085 = vmatpush1.xpose.msra.mxu0 0.0
          %2086 = vmatprep.subr.mxu0 0.0
          %2087 = vmatpush1.xpose.msra.mxu0 0.0
          %2088 = vmatprep.subr.mxu0 0.0
          %2089 = vmatpush1.xpose.msra.mxu0 0.0
          %2090 = vmatprep.subr.mxu0 0.0
          %2091 = vmatpush1.xpose.msra.mxu0 0.0
          %2092 = vmatprep.subr.mxu0 0.0
          %2093 = vmatpush1.xpose.msra.mxu0 0.0
          %2094 = vmatprep.subr.mxu0 0.0
          %2095 = vmatpush1.xpose.msra.mxu0 0.0
          %2096 = vmatprep.subr.mxu0 0.0
          %2097 = vmatpush1.xpose.msra.mxu0 0.0
          %2098 = vmatprep.subr.mxu0 0.0
          %2099 = vmatpush1.xpose.msra.mxu0 0.0
          %2100 = vmatprep.subr.mxu0 0.0
          %2101 = vmatpush1.xpose.msra.mxu0 0.0
          %2102 = vmatprep.subr.mxu0 0.0
          %2103 = vmatpush1.xpose.msra.mxu0 0.0
          %2104 = vmatprep.subr.mxu0 0.0
          %2105 = vmatpush1.xpose.msra.mxu0 0.0
          %2106 = vmatprep.subr.mxu0 0.0
          %2107 = vmatpush1.xpose.msra.mxu0 0.0
          %2108 = vmatprep.subr.mxu0 0.0
          %2109 = vmatpush1.xpose.msra.mxu0 0.0
          %2110 = vmatprep.subr.mxu0 0.0
          %2111 = vmatpush1.xpose.msra.mxu0 0.0
          %2112 = vmatprep.subr.mxu0 0.0
          %2113 = vmatpush1.xpose.msra.mxu0 0.0
          %2114 = vmatprep.subr.mxu0 0.0
          %2115 = vmatpush1.xpose.msra.mxu0 0.0
          %2116 = vmatprep.subr.mxu0 0.0
          %2117 = vmatpush1.xpose.msra.mxu0 0.0
          %2118 = vmatprep.subr.mxu0 0.0
          %2119 = vmatpush1.xpose.msra.mxu0 0.0
          %2120 = vmatprep.mubr.f32.mxu0 0.0
          %2121 = vmatmul.mubr.f32.gmra.mrb[0].mxu0 %v730
          %v2122 = vpop.f32.mrb[0].mxu0
          %v2123 = vadd.f32 0.0, %v2122
          %v2124 = vpop.f32.mrb[0].mxu0
          %2125 = vdwg.mxu0
          %v2126 = vsel %vm997, %v2123, -inf
          %2127 = vmax.xlane.f32.xlu0 %v2126
          %v2128 = vpop.xlane.xlu0 %2127
          %v2129 = vmax.f32 %v2043, %v2128
          %v2130 = vsub.f32 %v2043, %v2129
          %v2131 = vmul.f32 %v2130, 1.442695
          %v2132 = vpow.pop %v2131
          %v2133 = vsub.f32 %v2123, %v2129
          %v2134 = vmul.f32 %v2133, 1.442695
          %v2135 = vpow.pop %v2134
          %v2136 = vmul.f32 %v2132, %v2044
          %v2137 = vsel %vm997, %v2135, 0.0
          %2138 = vadd.xlane.f32.xlu0 %v2137
          %v2139 = vpop.xlane.xlu0 %2138
          %v2140 = vadd.f32 %v2136, %v2139
          %v2141 = vmul.f32 %v2132, %v2045
          %v2143 = vsel %vm997, %v2135, 0
          %2145 = vmatprep.subr.mxu0 0.0
          %2146 = vmatpush1.msra.mxu0 %v2055
          %2147 = vmatprep.subr.mxu0 0.0
          %2148 = vmatpush1.msra.mxu0 0.0
          %2149 = vmatprep.subr.mxu0 0.0
          %2150 = vmatpush1.msra.mxu0 0.0
          %2151 = vmatprep.subr.mxu0 0.0
          %2152 = vmatpush1.msra.mxu0 0.0
          %2153 = vmatprep.subr.mxu0 0.0
          %2154 = vmatpush1.msra.mxu0 0.0
          %2155 = vmatprep.subr.mxu0 0.0
          %2156 = vmatpush1.msra.mxu0 0.0
          %2157 = vmatprep.subr.mxu0 0.0
          %2158 = vmatpush1.msra.mxu0 0.0
          %2159 = vmatprep.subr.mxu0 0.0
          %2160 = vmatpush1.msra.mxu0 0.0
          %2161 = vmatprep.subr.mxu0 0.0
          %2162 = vmatpush1.msra.mxu0 0.0
          %2163 = vmatprep.subr.mxu0 0.0
          %2164 = vmatpush1.msra.mxu0 0.0
          %2165 = vmatprep.subr.mxu0 0.0
          %2166 = vmatpush1.msra.mxu0 0.0
          %2167 = vmatprep.subr.mxu0 0.0
          %2168 = vmatpush1.msra.mxu0 0.0
          %2169 = vmatprep.subr.mxu0 0.0
          %2170 = vmatpush1.msra.mxu0 0.0
          %2171 = vmatprep.subr.mxu0 0.0
          %2172 = vmatpush1.msra.mxu0 0.0
          %2173 = vmatprep.subr.mxu0 0.0
          %2174 = vmatpush1.msra.mxu0 0.0
          %2175 = vmatprep.subr.mxu0 0.0
          %2176 = vmatpush1.msra.mxu0 0.0
          %2177 = vmatprep.subr.mxu0 0.0
          %2178 = vmatpush1.msra.mxu0 0.0
          %2179 = vmatprep.subr.mxu0 0.0
          %2180 = vmatpush1.msra.mxu0 0.0
          %2181 = vmatprep.subr.mxu0 0.0
          %2182 = vmatpush1.msra.mxu0 0.0
          %2183 = vmatprep.subr.mxu0 0.0
          %2184 = vmatpush1.msra.mxu0 0.0
          %2185 = vmatprep.subr.mxu0 0.0
          %2186 = vmatpush1.msra.mxu0 0.0
          %2187 = vmatprep.subr.mxu0 0.0
          %2188 = vmatpush1.msra.mxu0 0.0
          %2189 = vmatprep.subr.mxu0 0.0
          %2190 = vmatpush1.msra.mxu0 0.0
          %2191 = vmatprep.subr.mxu0 0.0
          %2192 = vmatpush1.msra.mxu0 0.0
          %2193 = vmatprep.subr.mxu0 0.0
          %2194 = vmatpush1.msra.mxu0 0.0
          %2195 = vmatprep.subr.mxu0 0.0
          %2196 = vmatpush1.msra.mxu0 0.0
          %2197 = vmatprep.subr.mxu0 0.0
          %2198 = vmatpush1.msra.mxu0 0.0
          %2199 = vmatprep.subr.mxu0 0.0
          %2200 = vmatpush1.msra.mxu0 0.0
          %2201 = vmatprep.subr.mxu0 0.0
          %2202 = vmatpush1.msra.mxu0 0.0
          %2203 = vmatprep.subr.mxu0 0.0
          %2204 = vmatpush1.msra.mxu0 0.0
          %2205 = vmatprep.subr.mxu0 0.0
          %2206 = vmatpush1.msra.mxu0 0.0
          %2207 = vmatprep.subr.mxu0 0.0
          %2208 = vmatpush1.msra.mxu0 0.0
          %2209 = vmatprep.mubr.f32.mxu0 0.0
          %2210 = vmatmul.mubr.f32.gmra.mrb[0].mxu0 %v2143
          %v2211 = vpop.f32.mrb[0].mxu0
          %v2212 = vadd.f32 0.0, %v2211
          %v2213 = vpop.f32.mrb[0].mxu0
          %2214 = vdwg.mxu0
          %v2215 = vadd.f32 %v2141, %v2212
        $region70: #{tpu_custom_call.1} parent=39 // loop_footer
          %s2040 = sadd.s32 %s2038, 1
        $region71: #{tpu_custom_call.1} parent=39 // loop_footer_branch
          %2037 = sbr.rel target = $region67
        $region72: #{tpu_custom_call.1} parent=39 // loop_exit
          _
        %v2216 = vld [vmem:[%s921 + $0x18] sm:$0xff]
        %v2217 = vld [vmem:[%s924 + $0x18] sm:$0xff]
        %2218 = vmatprep.subr.mxu0 0.0
        %2219 = vmatpush1.xpose.msra.mxu0 %v2216
        %2220 = vmatprep.subr.mxu0 0.0
        %2221 = vmatpush1.xpose.msra.mxu0 0.0
        %2222 = vmatprep.subr.mxu0 0.0
        %2223 = vmatpush1.xpose.msra.mxu0 0.0
        %2224 = vmatprep.subr.mxu0 0.0
        %2225 = vmatpush1.xpose.msra.mxu0 0.0
        %2226 = vmatprep.subr.mxu0 0.0
        %2227 = vmatpush1.xpose.msra.mxu0 0.0
        %2228 = vmatprep.subr.mxu0 0.0
        %2229 = vmatpush1.xpose.msra.mxu0 0.0
        %2230 = vmatprep.subr.mxu0 0.0
        %2231 = vmatpush1.xpose.msra.mxu0 0.0
        %2232 = vmatprep.subr.mxu0 0.0
        %2233 = vmatpush1.xpose.msra.mxu0 0.0
        %2234 = vmatprep.subr.mxu0 0.0
        %2235 = vmatpush1.xpose.msra.mxu0 0.0
        %2236 = vmatprep.subr.mxu0 0.0
        %2237 = vmatpush1.xpose.msra.mxu0 0.0
        %2238 = vmatprep.subr.mxu0 0.0
        %2239 = vmatpush1.xpose.msra.mxu0 0.0
        %2240 = vmatprep.subr.mxu0 0.0
        %2241 = vmatpush1.xpose.msra.mxu0 0.0
        %2242 = vmatprep.subr.mxu0 0.0
        %2243 = vmatpush1.xpose.msra.mxu0 0.0
        %2244 = vmatprep.subr.mxu0 0.0
        %2245 = vmatpush1.xpose.msra.mxu0 0.0
        %2246 = vmatprep.subr.mxu0 0.0
        %2247 = vmatpush1.xpose.msra.mxu0 0.0
        %2248 = vmatprep.subr.mxu0 0.0
        %2249 = vmatpush1.xpose.msra.mxu0 0.0
        %2250 = vmatprep.subr.mxu0 0.0
        %2251 = vmatpush1.xpose.msra.mxu0 0.0
        %2252 = vmatprep.subr.mxu0 0.0
        %2253 = vmatpush1.xpose.msra.mxu0 0.0
        %2254 = vmatprep.subr.mxu0 0.0
        %2255 = vmatpush1.xpose.msra.mxu0 0.0
        %2256 = vmatprep.subr.mxu0 0.0
        %2257 = vmatpush1.xpose.msra.mxu0 0.0
        %2258 = vmatprep.subr.mxu0 0.0
        %2259 = vmatpush1.xpose.msra.mxu0 0.0
        %2260 = vmatprep.subr.mxu0 0.0
        %2261 = vmatpush1.xpose.msra.mxu0 0.0
        %2262 = vmatprep.subr.mxu0 0.0
        %2263 = vmatpush1.xpose.msra.mxu0 0.0
        %2264 = vmatprep.subr.mxu0 0.0
        %2265 = vmatpush1.xpose.msra.mxu0 0.0
        %2266 = vmatprep.subr.mxu0 0.0
        %2267 = vmatpush1.xpose.msra.mxu0 0.0
        %2268 = vmatprep.subr.mxu0 0.0
        %2269 = vmatpush1.xpose.msra.mxu0 0.0
        %2270 = vmatprep.subr.mxu0 0.0
        %2271 = vmatpush1.xpose.msra.mxu0 0.0
        %2272 = vmatprep.subr.mxu0 0.0
        %2273 = vmatpush1.xpose.msra.mxu0 0.0
        %2274 = vmatprep.subr.mxu0 0.0
        %2275 = vmatpush1.xpose.msra.mxu0 0.0
        %2276 = vmatprep.subr.mxu0 0.0
        %2277 = vmatpush1.xpose.msra.mxu0 0.0
        %2278 = vmatprep.subr.mxu0 0.0
        %2279 = vmatpush1.xpose.msra.mxu0 0.0
        %2280 = vmatprep.subr.mxu0 0.0
        %2281 = vmatpush1.xpose.msra.mxu0 0.0
        %2282 = vmatprep.mubr.f32.mxu0 0.0
        %2283 = vmatmul.mubr.f32.gmra.mrb[0].mxu0 %v730
        %v2284 = vpop.f32.mrb[0].mxu0
        %v2285 = vadd.f32 0.0, %v2284
        %v2286 = vpop.f32.mrb[0].mxu0
        %2287 = vdwg.mxu0
        %v2288 = vsel %vm736, %v2285, -inf
        %v2289 = vsel %vm997, %v2288, -inf
        %2290 = vmax.xlane.f32.xlu0 %v2289
        %v2291 = vpop.xlane.xlu0 %2290
        %v2292 = vmax.f32 %v2043, %v2291
        %v2293 = vsub.f32 %v2043, %v2292
        %v2294 = vmul.f32 %v2293, 1.442695
        %v2295 = vpow.pop %v2294
        %v2296 = vsub.f32 %v2288, %v2292
        %v2297 = vmul.f32 %v2296, 1.442695
        %v2298 = vpow.pop %v2297
        %v2299 = vmul.f32 %v2295, %v2044
        %v2300 = vsel %vm997, %v2298, 0.0
        %2301 = vadd.xlane.f32.xlu0 %v2300
        %v2302 = vpop.xlane.xlu0 %2301
        %v2303 = vadd.f32 %v2299, %v2302
        %v2304 = vmul.f32 %v2295, %v2045
        %v2306 = vsel %vm997, %v2298, 0
        %2308 = vmatprep.subr.mxu0 0.0
        %2309 = vmatpush1.msra.mxu0 %v2217
        %2310 = vmatprep.subr.mxu0 0.0
        %2311 = vmatpush1.msra.mxu0 0.0
        %2312 = vmatprep.subr.mxu0 0.0
        %2313 = vmatpush1.msra.mxu0 0.0
        %2314 = vmatprep.subr.mxu0 0.0
        %2315 = vmatpush1.msra.mxu0 0.0
        %2316 = vmatprep.subr.mxu0 0.0
        %2317 = vmatpush1.msra.mxu0 0.0
        %2318 = vmatprep.subr.mxu0 0.0
        %2319 = vmatpush1.msra.mxu0 0.0
        %2320 = vmatprep.subr.mxu0 0.0
        %2321 = vmatpush1.msra.mxu0 0.0
        %2322 = vmatprep.subr.mxu0 0.0
        %2323 = vmatpush1.msra.mxu0 0.0
        %2324 = vmatprep.subr.mxu0 0.0
        %2325 = vmatpush1.msra.mxu0 0.0
        %2326 = vmatprep.subr.mxu0 0.0
        %2327 = vmatpush1.msra.mxu0 0.0
        %2328 = vmatprep.subr.mxu0 0.0
        %2329 = vmatpush1.msra.mxu0 0.0
        %2330 = vmatprep.subr.mxu0 0.0
        %2331 = vmatpush1.msra.mxu0 0.0
        %2332 = vmatprep.subr.mxu0 0.0
        %2333 = vmatpush1.msra.mxu0 0.0
        %2334 = vmatprep.subr.mxu0 0.0
        %2335 = vmatpush1.msra.mxu0 0.0
        %2336 = vmatprep.subr.mxu0 0.0
        %2337 = vmatpush1.msra.mxu0 0.0
        %2338 = vmatprep.subr.mxu0 0.0
        %2339 = vmatpush1.msra.mxu0 0.0
        %2340 = vmatprep.subr.mxu0 0.0
        %2341 = vmatpush1.msra.mxu0 0.0
        %2342 = vmatprep.subr.mxu0 0.0
        %2343 = vmatpush1.msra.mxu0 0.0
        %2344 = vmatprep.subr.mxu0 0.0
        %2345 = vmatpush1.msra.mxu0 0.0
        %2346 = vmatprep.subr.mxu0 0.0
        %2347 = vmatpush1.msra.mxu0 0.0
        %2348 = vmatprep.subr.mxu0 0.0
        %2349 = vmatpush1.msra.mxu0 0.0
        %2350 = vmatprep.subr.mxu0 0.0
        %2351 = vmatpush1.msra.mxu0 0.0
        %2352 = vmatprep.subr.mxu0 0.0
        %2353 = vmatpush1.msra.mxu0 0.0
        %2354 = vmatprep.subr.mxu0 0.0
        %2355 = vmatpush1.msra.mxu0 0.0
        %2356 = vmatprep.subr.mxu0 0.0
        %2357 = vmatpush1.msra.mxu0 0.0
        %2358 = vmatprep.subr.mxu0 0.0
        %2359 = vmatpush1.msra.mxu0 0.0
        %2360 = vmatprep.subr.mxu0 0.0
        %2361 = vmatpush1.msra.mxu0 0.0
        %2362 = vmatprep.subr.mxu0 0.0
        %2363 = vmatpush1.msra.mxu0 0.0
        %2364 = vmatprep.subr.mxu0 0.0
        %2365 = vmatpush1.msra.mxu0 0.0
        %2366 = vmatprep.subr.mxu0 0.0
        %2367 = vmatpush1.msra.mxu0 0.0
        %2368 = vmatprep.subr.mxu0 0.0
        %2369 = vmatpush1.msra.mxu0 0.0
        %2370 = vmatprep.subr.mxu0 0.0
        %2371 = vmatpush1.msra.mxu0 0.0
        %2372 = vmatprep.mubr.f32.mxu0 0.0
        %2373 = vmatmul.mubr.f32.gmra.mrb[0].mxu0 %v2306
        %v2374 = vpop.f32.mrb[0].mxu0
        %v2375 = vadd.f32 0.0, %v2374
        %v2376 = vpop.f32.mrb[0].mxu0
        %2377 = vdwg.mxu0
        %v2378 = vadd.f32 %v2304, %v2375
        %v2379 = vrcp.pop %v2303
        %v2380 = vmul.f32 %v2378, %v2379
        %v2381 = vld [vmem:[%s3 + $0x180] sm:$0xff]
        %v2382 = vld [vmem:[%s3 + $0x188] sm:$0xff]
        %v2383 = vld [vmem:[%s3 + $0x190] sm:$0xff]
        %v2384 = vld [vmem:[%s3 + $0x198] sm:$0xff]
        %v2385 = vld [vmem:[%s3 + $0x1a0] sm:$0xff]
        %v2386 = vld [vmem:[%s3 + $0x1a8] sm:$0xff]
        %v2387 = vld [vmem:[%s3 + $0x1b0] sm:$0xff]
        %v2388 = vld [vmem:[%s3 + $0x1b8] sm:$0xff]
        %v2389 = vld [vmem:[%s3 + $0x1c0] sm:$0xff]
        %v2390 = vld [vmem:[%s3 + $0x1c8] sm:$0xff]
        %v2391 = vld [vmem:[%s3 + $0x1d0] sm:$0xff]
        %v2392 = vld [vmem:[%s3 + $0x1d8] sm:$0xff]
        %v2393 = vld [vmem:[%s3 + $0x1e0] sm:$0xff]
        %v2394 = vld [vmem:[%s3 + $0x1e8] sm:$0xff]
        %v2395 = vld [vmem:[%s3 + $0x1f0] sm:$0xff]
        %v2396 = vld [vmem:[%s3 + $0x1f8] sm:$0xff]
        %2397 = vmatprep.subr.mxu0 0.0
        %2398 = vmatpush1.msra.mxu0 %v2381
        %2399 = vmatprep.subr.mxu0 0.0
        %2400 = vmatpush1.msra.mxu0 %v2382
        %2401 = vmatprep.subr.mxu0 0.0
        %2402 = vmatpush1.msra.mxu0 %v2383
        %2403 = vmatprep.subr.mxu0 0.0
        %2404 = vmatpush1.msra.mxu0 %v2384
        %2405 = vmatprep.subr.mxu0 0.0
        %2406 = vmatpush1.msra.mxu0 %v2385
        %2407 = vmatprep.subr.mxu0 0.0
        %2408 = vmatpush1.msra.mxu0 %v2386
        %2409 = vmatprep.subr.mxu0 0.0
        %2410 = vmatpush1.msra.mxu0 %v2387
        %2411 = vmatprep.subr.mxu0 0.0
        %2412 = vmatpush1.msra.mxu0 %v2388
        %2413 = vmatprep.subr.mxu0 0.0
        %2414 = vmatpush1.msra.mxu0 %v2389
        %2415 = vmatprep.subr.mxu0 0.0
        %2416 = vmatpush1.msra.mxu0 %v2390
        %2417 = vmatprep.subr.mxu0 0.0
        %2418 = vmatpush1.msra.mxu0 %v2391
        %2419 = vmatprep.subr.mxu0 0.0
        %2420 = vmatpush1.msra.mxu0 %v2392
        %2421 = vmatprep.subr.mxu0 0.0
        %2422 = vmatpush1.msra.mxu0 %v2393
        %2423 = vmatprep.subr.mxu0 0.0
        %2424 = vmatpush1.msra.mxu0 %v2394
        %2425 = vmatprep.subr.mxu0 0.0
        %2426 = vmatpush1.msra.mxu0 %v2395
        %2427 = vmatprep.subr.mxu0 0.0
        %2428 = vmatpush1.msra.mxu0 %v2396
        %2429 = vmatprep.subr.mxu0 0.0
        %2430 = vmatpush1.msra.mxu0 0.0
        %2431 = vmatprep.subr.mxu0 0.0
        %2432 = vmatpush1.msra.mxu0 0.0
        %2433 = vmatprep.subr.mxu0 0.0
        %2434 = vmatpush1.msra.mxu0 0.0
        %2435 = vmatprep.subr.mxu0 0.0
        %2436 = vmatpush1.msra.mxu0 0.0
        %2437 = vmatprep.subr.mxu0 0.0
        %2438 = vmatpush1.msra.mxu0 0.0
        %2439 = vmatprep.subr.mxu0 0.0
        %2440 = vmatpush1.msra.mxu0 0.0
        %2441 = vmatprep.subr.mxu0 0.0
        %2442 = vmatpush1.msra.mxu0 0.0
        %2443 = vmatprep.subr.mxu0 0.0
        %2444 = vmatpush1.msra.mxu0 0.0
        %2445 = vmatprep.subr.mxu0 0.0
        %2446 = vmatpush1.msra.mxu0 0.0
        %2447 = vmatprep.subr.mxu0 0.0
        %2448 = vmatpush1.msra.mxu0 0.0
        %2449 = vmatprep.subr.mxu0 0.0
        %2450 = vmatpush1.msra.mxu0 0.0
        %2451 = vmatprep.subr.mxu0 0.0
        %2452 = vmatpush1.msra.mxu0 0.0
        %2453 = vmatprep.subr.mxu0 0.0
        %2454 = vmatpush1.msra.mxu0 0.0
        %2455 = vmatprep.subr.mxu0 0.0
        %2456 = vmatpush1.msra.mxu0 0.0
        %2457 = vmatprep.subr.mxu0 0.0
        %2458 = vmatpush1.msra.mxu0 0.0
        %2459 = vmatprep.subr.mxu0 0.0
        %2460 = vmatpush1.msra.mxu0 0.0
        %2461 = vmatprep.mubr.f32.mxu0 0.0
        %2462 = vmatmul.mubr.f32.gmra.mrb[0].mxu0 %v2380
        %v2463 = vpop.f32.mrb[0].mxu0
        %v2464 = vadd.f32 0.0, %v2463
        %v2465 = vpop.f32.mrb[0].mxu0
        %2466 = vdwg.mxu0
        %v2467 = vadd.f32 %v2036, %v2464
        %v2468 = vld [vmem:[%s4] sm:$0x1]
        %v2470 = vlaneseq
        %v2471 = vshrl.u32 %v2470, 7
        %v2472 = vsub.s32 0, %v2471
        %v2473 = vrot.slane %v2468, %v2472
        %v2475 = vadd.f32 %v2467, %v2473
        %2476 = vst.msk [vmem:[%s229] sm:$0xff] %vm586, %v2475
        %s2477 = sand.u32 %s151, 1
        %s2478 = scalar_lea.sflag [#allocation5], %s2477
        %s2479 = sand.u32 %s151, 1
        %s2480 = smul.addr %s2479, 8
        %s2481 = scalar_lea.vmem [#allocation4], %s2480
        // Predicated region
        $region73: #{tpu_custom_call.1} parent=39 // pred_check
          %p2482 = pneg %p161
        $region74: #{tpu_custom_call.1} parent=39 // pred_check_branch
          %2484 = sbr.rel (%p2482) target = $region76
        $region75: #{tpu_custom_call.1} parent=39 // pred_region
          %s2486 = ssub.s32 128, 128
          %2487 = vsyncadd %s2478, %s2486
          %s2488 = sadd.s32 %s24, %s23
          %s2489 = smul.addr %s2488, 128
          %s2490 = scalar_lea.hbm %s5, %s2489
          %s2492 = sshll.u32 %s2481, 4
          %s2493 = int_to_ptr.vmem [resolvable:$true] %s2492
          %2495 = dma.vmem_to_hbm [thread:$0]  %s2493, 128, %s2490, %s2478
        $region76: #{tpu_custom_call.1} parent=39 // pred_fallthru
          _
      $region40: #{tpu_custom_call.1} parent=5 // pred_fallthru
        _
      %p2496 = scmp.le.s32.totalorder 2, %s14
      // Predicated region
      $region77: #{tpu_custom_call.1} parent=5 // pred_check
        %p2497 = pneg %p2496
      $region78: #{tpu_custom_call.1} parent=5 // pred_check_branch
        %2499 = sbr.rel (%p2497) target = $region80
      $region79: #{tpu_custom_call.1} parent=5 // pred_region
        %s2500 = ssub.s32 %s14, 2
        // Predicated region
        $region81: #{tpu_custom_call.1} parent=79 // pred_check
          %p2501 = pneg %p167
        $region82: #{tpu_custom_call.1} parent=79 // pred_check_branch
          %2503 = sbr.rel (%p2501) target = $region84
        $region83: #{tpu_custom_call.1} parent=79 // pred_region
          %s2504 = sand.u32 %s152, 1
          %s2505 = scalar_lea.sflag [#allocation5], %s2504
          %s2506 = sand.u32 %s152, 1
          %s2507 = smul.addr %s2506, 8
          %s2508 = scalar_lea.vmem [#allocation4], %s2507
          %2509 = dma.done %s2505, 128
        $region84: #{tpu_custom_call.1} parent=79 // pred_fallthru
          _
      $region80: #{tpu_custom_call.1} parent=5 // pred_fallthru
        _
    $region6: #{tpu_custom_call.1} parent=1 // loop_footer
      %s18 = sadd.s32 1, %s14
    $region7: #{tpu_custom_call.1} parent=1 // loop_footer_branch
      %13 = sbr.rel target = $region3
    $region8: #{tpu_custom_call.1} parent=1 // loop_exit
      _
    %2510 = vsyncpa [#allocation5], 1
    %s2511 = scalar_lea.sflag [#allocation5], 1
    %2512 = vsyncpa %s2511, 1

</llo_original>
